<compile_context>
chip_gen: v7x
topology: tpu7x:2x2x1
jax: 0.10.0
libtpu: 0.0.40
codegen_flags: <defaults>
</compile_context>

<pallas_src>
import functools

import jax
import jax.numpy as jnp
from jax.experimental import pallas as pl
from jax.experimental.pallas import tpu as pltpu

HIDDEN = 256   # Projector3: conv1 / conv2 both project to 256 channels
LN_EPS = 1e-5  # nn.LayerNorm default


# ---------------- kernel (shared by both heads) ----------------

def _head_kernel(x_ref, wa_ref, ba_ref, w3_ref, b3_ref, y_ref, *, layernorm):
    """y = w3^T @ relu(wa^T @ maybe_LN(x) + ba) + b3 on a [C_in, tpix] tile.

    Channels live on the sublane axis, pixels on the lane axis, so both MXU
    results ([256, tpix] and [out_dim, tpix]) and the output store are
    lane-dense (no masked vst).
    """
    x = x_ref[...]
    if layernorm:
        # LayerNorm over channels (sublane axis); affine pre-folded into wa/ba.
        x = x.astype(jnp.float32)
        mu = jnp.mean(x, axis=0, keepdims=True)
        var = jnp.mean(jnp.square(x - mu), axis=0, keepdims=True)  # two-pass form
        x = (x - mu) * jax.lax.rsqrt(var + LN_EPS)
    x = x.astype(jnp.bfloat16)

    h = jnp.dot(wa_ref[...], x, preferred_element_type=jnp.float32)   # [256, tpix]
    h = jnp.maximum(h + ba_ref[...], 0.0).astype(jnp.bfloat16)
    y = jnp.dot(w3_ref[...], h, preferred_element_type=jnp.float32)   # [out, tpix]
    y_ref[...] = (y + b3_ref[...]).astype(y_ref.dtype)


# ---------------- static tiling / VMEM budgeting ----------------

def _pick_pixel_tile(n_pix, n_batch, target_steps=8, max_tile=2048):
    """Largest 128-multiple divisor of n_pix such that batch*tiles >= target
    grid steps; otherwise the smallest 128-multiple divisor (max steps).
    Falls back to the full pixel extent when n_pix is not a multiple of 128
    (full-dim blocks are always legal)."""
    if n_pix % 128 != 0:
        return n_pix
    cands = [t for t in range(128, min(n_pix, max_tile) + 1, 128)
             if n_pix % t == 0]
    if not cands:
        return n_pix
    for t in sorted(cands, reverse=True):
        if n_batch * (n_pix // t) >= target_steps:
            return t
    return cands[0]


def _vmem_limit_bytes(c_in, tpix, out_dim, in_itemsize):
    """Explicit footprint: double-buffered in/out blocks, resident weights
    (counted double-buffered), and the [256, tpix] hidden intermediates."""
    blocks = 2 * (c_in * tpix * in_itemsize) + 2 * (out_dim * tpix * 4)
    weights = 2 * (2 * (HIDDEN * c_in + HIDDEN * out_dim) + 4 * (HIDDEN + out_dim))
    inter = HIDDEN * tpix * (4 + 2) + c_in * tpix * 4   # f32 h, bf16 h, f32 LN tmp
    est = blocks + weights + inter
    # generous headroom, but stay well under v7x's 64 MiB physical VMEM
    return int(min(max(32 << 20, 2 * est), 56 << 20))


# ---------------- one head = one pallas_call ----------------

def _run_head(x_cf, wa_t, ba, w3_t, b3, *, layernorm, out_dtype):
    """x_cf: [batch, C_in, pixels] channels-first activations.
    wa_t: [256, C_in] bf16; ba: [256, 1] f32; w3_t: [out, 256] bf16; b3: [out, 1].
    Returns [batch, out, pixels]."""
    nb, c_in, n_pix = x_cf.shape
    out_dim = w3_t.shape[0]
    tpix = _pick_pixel_tile(n_pix, nb)
    n_tiles = n_pix // tpix

    kernel = functools.partial(_head_kernel, layernorm=layernorm)
    return pl.pallas_call(
        kernel,
        out_shape=jax.ShapeDtypeStruct((nb, out_dim, n_pix), out_dtype),
        grid_spec=pltpu.PrefetchScalarGridSpec(
            num_scalar_prefetch=0,
            grid=(nb, n_tiles),
            in_specs=[
                pl.BlockSpec((None, c_in, tpix), lambda b, i: (b, 0, i)),
                pl.BlockSpec((HIDDEN, c_in), lambda b, i: (0, 0)),
                pl.BlockSpec((HIDDEN, 1), lambda b, i: (0, 0)),
                pl.BlockSpec((out_dim, HIDDEN), lambda b, i: (0, 0)),
                pl.BlockSpec((out_dim, 1), lambda b, i: (0, 0)),
            ],
            out_specs=pl.BlockSpec((None, out_dim, tpix), lambda b, i: (b, 0, i)),
        ),
        compiler_params=pltpu.CompilerParams(
            dimension_semantics=("parallel", "parallel"),
            vmem_limit_bytes=_vmem_limit_bytes(
                c_in, tpix, out_dim, x_cf.dtype.itemsize)),
    )(x_cf, wa_t, ba, w3_t, b3)


# ---------------- Projector3 forward ----------------

def init_projector3_params(key, in_dim1, in_dim2, out_dim):
    ks = jax.random.split(key, 6)
    scale = 0.05
    return {
        # 1x1 conv weights stored as [Cin, Cout] (pytorch stores [Cout, Cin, 1, 1])
        "w1": jax.random.normal(ks[0], (in_dim1, HIDDEN), jnp.float32) * scale,
        "b1": jax.random.normal(ks[1], (HIDDEN,), jnp.float32) * scale,
        "w2": jax.random.normal(ks[2], (in_dim2, HIDDEN), jnp.float32) * scale,
        "b2": jax.random.normal(ks[3], (HIDDEN,), jnp.float32) * scale,
        "w3": jax.random.normal(ks[4], (HIDDEN, out_dim), jnp.float32) * scale,
        "b3": jax.random.normal(ks[5], (out_dim,), jnp.float32) * scale,
        "gamma": jnp.ones((in_dim2,), jnp.float32),   # LayerNorm weight
        "beta": jnp.zeros((in_dim2,), jnp.float32),   # LayerNorm bias
    }


def projector3_forward(params, x1, x2, *, out_dtype=jnp.float32):
    """x1: NCHW [B, in_dim1, H, W]; x2: [..., in_dim2] with numel == B2*28*28*in_dim2.
    Returns (y1, y2) in NCHW, matching the PyTorch module."""
    c1 = params["w1"].shape[0]
    c2 = params["w2"].shape[0]
    out_dim = params["w3"].shape[1]

    B, _, H, W = x1.shape
    # A 1x1 conv in NCHW is a per-pixel matmul over channels with channels on
    # sublanes and pixels on lanes: merge H,W (free reshape, no transpose, no cast).
    x1_cf = x1.reshape(B, c1, H * W)

    # x2: LayerNorm over the last dim, then view(-1,28,28,C).permute(0,3,1,2).
    # LN is per pixel, so we apply the (module-mandated) permute first and
    # normalise over the channel/sublane axis inside the kernel.
    x2_rows = x2.reshape(-1, 28 * 28, c2)          # [B2, 784, C2]
    B2 = x2_rows.shape[0]
    x2_cf = jnp.transpose(x2_rows, (0, 2, 1))      # [B2, C2, 784]  (the permute)

    # Fold the LayerNorm affine into conv2 (exact algebra):
    #   (xhat*gamma + beta) @ w2 + b2 == xhat @ (gamma[:,None]*w2) + (beta@w2 + b2)
    w2f = params["gamma"][:, None] * params["w2"]
    b2f = params["b2"] + params["beta"] @ params["w2"]

    # Channels-first (transposed) bf16 weights; [C, 1] f32 biases.
    w1_t = params["w1"].T.astype(jnp.bfloat16)     # [256, C1]
    w2_t = w2f.T.astype(jnp.bfloat16)              # [256, C2]
    w3_t = params["w3"].T.astype(jnp.bfloat16)     # [out, 256]
    b1 = params["b1"].reshape(-1, 1).astype(jnp.float32)
    b2 = b2f.reshape(-1, 1).astype(jnp.float32)
    b3 = params["b3"].reshape(-1, 1).astype(jnp.float32)

    y1 = _run_head(x1_cf, w1_t, b1, w3_t, b3, layernorm=False, out_dtype=out_dtype)
    y2 = _run_head(x2_cf, w2_t, b2, w3_t, b3, layernorm=True, out_dtype=out_dtype)

    # Outputs are already channels-first: only free reshapes remain (NCHW).
    return (y1.reshape(B, out_dim, H, W), y2.reshape(B2, out_dim, 28, 28))


# ---------------- pure-JAX reference for verification ----------------

def _reference(params, x1, x2):
    out_dim = params["w3"].shape[1]
    B, c1, H, W = x1.shape
    x1r = jnp.transpose(x1, (0, 2, 3, 1)).reshape(-1, c1)
    h1 = jnp.maximum(x1r @ params["w1"] + params["b1"], 0.0)
    y1 = (h1 @ params["w3"] + params["b3"]).reshape(B, H, W, out_dim)
    y1 = jnp.transpose(y1, (0, 3, 1, 2))

    c2 = params["w2"].shape[0]
    x2r = x2.reshape(-1, c2)
    mu = jnp.mean(x2r, axis=-1, keepdims=True)
    var = jnp.mean(jnp.square(x2r - mu), axis=-1, keepdims=True)
    xn = (x2r - mu) / jnp.sqrt(var + LN_EPS) * params["gamma"] + params["beta"]
    h2 = jnp.maximum(xn @ params["w2"] + params["b2"], 0.0)
    y2r = h2 @ params["w3"] + params["b3"]
    B2 = x2r.shape[0] // (28 * 28)
    y2 = jnp.transpose(y2r.reshape(B2, 28, 28, out_dim), (0, 3, 1, 2))
    return y1, y2


if __name__ == "__main__":
    in_dim1, in_dim2, out_dim = 8, 16, 32
    B, H, W = 2, 16, 16        # free spatial size for x1
    B2 = 2                     # x2 spatial is hardwired to 28x28 by the module

    key = jax.random.PRNGKey(0)
    kp, kx1, kx2, kg, kb = jax.random.split(key, 5)
    params = init_projector3_params(kp, in_dim1, in_dim2, out_dim)
    # Non-trivial LN affine so the folded-weight path is actually exercised.
    params["gamma"] = 1.0 + 0.1 * jax.random.normal(kg, (in_dim2,), jnp.float32)
    params["beta"] = 0.1 * jax.random.normal(kb, (in_dim2,), jnp.float32)

    x1 = jax.random.normal(kx1, (B, in_dim1, H, W), jnp.float32)
    x2 = jax.random.normal(kx2, (B2, 28 * 28, in_dim2), jnp.float32)

    y1, y2 = jax.jit(projector3_forward)(params, x1, x2)
    jax.block_until_ready((y1, y2))

    r1, r2 = _reference(params, x1, x2)
    assert y1.shape == (B, out_dim, H, W)
    assert y2.shape == (B2, out_dim, 28, 28)
    assert jnp.allclose(y1, r1, atol=1e-2, rtol=1e-2)
    assert jnp.allclose(y2, r2, atol=1e-2, rtol=1e-2)

    print("KERNEL_OK")
</pallas_src>

<mosaic_0001>
module attributes {stable_mosaic.version = 11 : i64} {
  func.func @_head_kernel(%arg0: i32, %arg1: i32, %arg2: memref<1x16x784xf32, #tpu.memory_space<vmem>>, %arg3: memref<256x16xbf16, #tpu.memory_space<vmem>>, %arg4: memref<256x1xf32, #tpu.memory_space<vmem>>, %arg5: memref<32x256xbf16, #tpu.memory_space<vmem>>, %arg6: memref<32x1xf32, #tpu.memory_space<vmem>>, %arg7: memref<1x32x784xf32, #tpu.memory_space<vmem>>) attributes {dimension_semantics = [#tpu.dimension_semantics<parallel>, #tpu.dimension_semantics<parallel>], iteration_bounds = array<i64: 2, 1>, scalar_prefetch = 0 : i64, scratch_operands = 0 : i64, tpu.core_type = #tpu.core_type<tc>, window_params = [{transform_indices = @transform_0, window_bounds = array<i64: 1, 16, 784>}, {pipeline_mode = #tpu.pipeline_mode<synchronous>, transform_indices = @transform_1, window_bounds = array<i64: 256, 16>}, {pipeline_mode = #tpu.pipeline_mode<synchronous>, transform_indices = @transform_2, window_bounds = array<i64: 256, 1>}, {pipeline_mode = #tpu.pipeline_mode<synchronous>, transform_indices = @transform_3, window_bounds = array<i64: 32, 256>}, {pipeline_mode = #tpu.pipeline_mode<synchronous>, transform_indices = @transform_4, window_bounds = array<i64: 32, 1>}, {transform_indices = @transform_5, window_bounds = array<i64: 1, 32, 784>}]} {
    %c0 = arith.constant 0 : index
    %c0_0 = arith.constant 0 : index
    %c0_1 = arith.constant 0 : index
    %0 = vector.load %arg2[%c0, %c0_0, %c0_1] : memref<1x16x784xf32, #tpu.memory_space<vmem>>, vector<1x16x784xf32>
    %1 = vector.shape_cast %0 : vector<1x16x784xf32> to vector<16x784xf32>
    %cst = arith.constant dense<0.000000e+00> : vector<784xf32>
    %2 = vector.multi_reduction <add>, %1, %cst [0] : vector<16x784xf32> to vector<784xf32>
    %3 = vector.shape_cast %2 : vector<784xf32> to vector<1x784xf32>
    %cst_2 = arith.constant 1.600000e+01 : f32
    %4 = vector.broadcast %cst_2 : f32 to vector<1x784xf32>
    %5 = arith.divf %3, %4 : vector<1x784xf32>
    %6 = vector.broadcast %5 : vector<1x784xf32> to vector<16x784xf32>
    %7 = arith.subf %1, %6 : vector<16x784xf32>
    %8 = arith.mulf %7, %7 : vector<16x784xf32>
    %cst_3 = arith.constant dense<0.000000e+00> : vector<784xf32>
    %9 = vector.multi_reduction <add>, %8, %cst_3 [0] : vector<16x784xf32> to vector<784xf32>
    %10 = vector.shape_cast %9 : vector<784xf32> to vector<1x784xf32>
    %cst_4 = arith.constant 1.600000e+01 : f32
    %11 = vector.broadcast %cst_4 : f32 to vector<1x784xf32>
    %12 = arith.divf %10, %11 : vector<1x784xf32>
    %13 = vector.broadcast %5 : vector<1x784xf32> to vector<16x784xf32>
    %14 = arith.subf %1, %13 : vector<16x784xf32>
    %cst_5 = arith.constant 9.99999974E-6 : f32
    %15 = vector.broadcast %cst_5 : f32 to vector<1x784xf32>
    %16 = arith.addf %12, %15 : vector<1x784xf32>
    %17 = math.rsqrt %16 : vector<1x784xf32>
    %18 = vector.broadcast %17 : vector<1x784xf32> to vector<16x784xf32>
    %19 = arith.mulf %14, %18 : vector<16x784xf32>
    %20 = arith.truncf %19 : vector<16x784xf32> to vector<16x784xbf16>
    %c0_6 = arith.constant 0 : index
    %c0_7 = arith.constant 0 : index
    %21 = vector.load %arg3[%c0_6, %c0_7] : memref<256x16xbf16, #tpu.memory_space<vmem>>, vector<256x16xbf16>
    %cst_8 = arith.constant dense<0.000000e+00> : vector<256x784xf32>
    %22 = tpu.matmul %21, %20, %cst_8 {dimension_numbers = #tpu.dot_dimension_numbers<[1], [0], [0], [1], [0, 0, 1, 1], [], []>} : vector<256x16xbf16>, vector<16x784xbf16>, vector<256x784xf32> -> vector<256x784xf32>
    %c0_9 = arith.constant 0 : index
    %c0_10 = arith.constant 0 : index
    %23 = vector.load %arg4[%c0_9, %c0_10] : memref<256x1xf32, #tpu.memory_space<vmem>>, vector<256x1xf32>
    %24 = vector.broadcast %23 : vector<256x1xf32> to vector<256x784xf32>
    %25 = arith.addf %22, %24 : vector<256x784xf32>
    %cst_11 = arith.constant 0.000000e+00 : f32
    %26 = vector.broadcast %cst_11 : f32 to vector<256x784xf32>
    %27 = arith.maximumf %25, %26 : vector<256x784xf32>
    %28 = arith.truncf %27 : vector<256x784xf32> to vector<256x784xbf16>
    %c0_12 = arith.constant 0 : index
    %c0_13 = arith.constant 0 : index
    %29 = vector.load %arg5[%c0_12, %c0_13] : memref<32x256xbf16, #tpu.memory_space<vmem>>, vector<32x256xbf16>
    %cst_14 = arith.constant dense<0.000000e+00> : vector<32x784xf32>
    %30 = tpu.matmul %29, %28, %cst_14 {dimension_numbers = #tpu.dot_dimension_numbers<[1], [0], [0], [1], [0, 0, 1, 1], [], []>} : vector<32x256xbf16>, vector<256x784xbf16>, vector<32x784xf32> -> vector<32x784xf32>
    %c0_15 = arith.constant 0 : index
    %c0_16 = arith.constant 0 : index
    %31 = vector.load %arg6[%c0_15, %c0_16] : memref<32x1xf32, #tpu.memory_space<vmem>>, vector<32x1xf32>
    %32 = vector.broadcast %31 : vector<32x1xf32> to vector<32x784xf32>
    %33 = arith.addf %30, %32 : vector<32x784xf32>
    %c0_17 = arith.constant 0 : index
    %c0_18 = arith.constant 0 : index
    %c0_19 = arith.constant 0 : index
    %34 = vector.load %arg7[%c0_17, %c0_18, %c0_19] : memref<1x32x784xf32, #tpu.memory_space<vmem>>, vector<1x32x784xf32>
    %35 = vector.shape_cast %34 : vector<1x32x784xf32> to vector<32x784xf32>
    %36 = vector.shape_cast %33 : vector<32x784xf32> to vector<1x32x784xf32>
    tpu.vector_store %arg7[%c0_17, %c0_18, %c0_19], %36 {strides = array<i32>} : memref<1x32x784xf32, #tpu.memory_space<vmem>>, vector<1x32x784xf32>,
    return
  }
  func.func @transform_0(%arg0: i32, %arg1: i32) -> (i32, i32, i32) {
    %c0_i32 = arith.constant 0 : i32
    %c0_i32_0 = arith.constant 0 : i32
    return %arg0, %c0_i32, %arg1 : i32, i32, i32
  }
  func.func @transform_1(%arg0: i32, %arg1: i32) -> (i32, i32) {
    %c0_i32 = arith.constant 0 : i32
    %c0_i32_0 = arith.constant 0 : i32
    %c0_i32_1 = arith.constant 0 : i32
    return %c0_i32, %c0_i32_0 : i32, i32
  }
  func.func @transform_2(%arg0: i32, %arg1: i32) -> (i32, i32) {
    %c0_i32 = arith.constant 0 : i32
    %c0_i32_0 = arith.constant 0 : i32
    %c0_i32_1 = arith.constant 0 : i32
    return %c0_i32, %c0_i32_0 : i32, i32
  }
  func.func @transform_3(%arg0: i32, %arg1: i32) -> (i32, i32) {
    %c0_i32 = arith.constant 0 : i32
    %c0_i32_0 = arith.constant 0 : i32
    %c0_i32_1 = arith.constant 0 : i32
    return %c0_i32, %c0_i32_0 : i32, i32
  }
  func.func @transform_4(%arg0: i32, %arg1: i32) -> (i32, i32) {
    %c0_i32 = arith.constant 0 : i32
    %c0_i32_0 = arith.constant 0 : i32
    %c0_i32_1 = arith.constant 0 : i32
    return %c0_i32, %c0_i32_0 : i32, i32
  }
  func.func @transform_5(%arg0: i32, %arg1: i32) -> (i32, i32, i32) {
    %c0_i32 = arith.constant 0 : i32
    %c0_i32_0 = arith.constant 0 : i32
    return %arg0, %c0_i32, %arg1 : i32, i32, i32
  }
}

module attributes {stable_mosaic.version = 11 : i64} {
  func.func @_head_kernel(%arg0: i32, %arg1: i32, %arg2: memref<1x8x128xf32, #tpu.memory_space<vmem>>, %arg3: memref<256x8xbf16, #tpu.memory_space<vmem>>, %arg4: memref<256x1xf32, #tpu.memory_space<vmem>>, %arg5: memref<32x256xbf16, #tpu.memory_space<vmem>>, %arg6: memref<32x1xf32, #tpu.memory_space<vmem>>, %arg7: memref<1x32x128xf32, #tpu.memory_space<vmem>>) attributes {dimension_semantics = [#tpu.dimension_semantics<parallel>, #tpu.dimension_semantics<parallel>], iteration_bounds = array<i64: 2, 2>, scalar_prefetch = 0 : i64, scratch_operands = 0 : i64, tpu.core_type = #tpu.core_type<tc>, window_params = [{transform_indices = @transform_0, window_bounds = array<i64: 1, 8, 128>}, {pipeline_mode = #tpu.pipeline_mode<synchronous>, transform_indices = @transform_1, window_bounds = array<i64: 256, 8>}, {pipeline_mode = #tpu.pipeline_mode<synchronous>, transform_indices = @transform_2, window_bounds = array<i64: 256, 1>}, {pipeline_mode = #tpu.pipeline_mode<synchronous>, transform_indices = @transform_3, window_bounds = array<i64: 32, 256>}, {pipeline_mode = #tpu.pipeline_mode<synchronous>, transform_indices = @transform_4, window_bounds = array<i64: 32, 1>}, {transform_indices = @transform_5, window_bounds = array<i64: 1, 32, 128>}]} {
    %c0 = arith.constant 0 : index
    %c0_0 = arith.constant 0 : index
    %c0_1 = arith.constant 0 : index
    %0 = vector.load %arg2[%c0, %c0_0, %c0_1] : memref<1x8x128xf32, #tpu.memory_space<vmem>>, vector<1x8x128xf32>
    %1 = vector.shape_cast %0 : vector<1x8x128xf32> to vector<8x128xf32>
    %2 = arith.truncf %1 : vector<8x128xf32> to vector<8x128xbf16>
    %c0_2 = arith.constant 0 : index
    %c0_3 = arith.constant 0 : index
    %3 = vector.load %arg3[%c0_2, %c0_3] : memref<256x8xbf16, #tpu.memory_space<vmem>>, vector<256x8xbf16>
    %cst = arith.constant dense<0.000000e+00> : vector<256x128xf32>
    %4 = tpu.matmul %3, %2, %cst {dimension_numbers = #tpu.dot_dimension_numbers<[1], [0], [0], [1], [0, 0, 1, 1], [], []>} : vector<256x8xbf16>, vector<8x128xbf16>, vector<256x128xf32> -> vector<256x128xf32>
    %c0_4 = arith.constant 0 : index
    %c0_5 = arith.constant 0 : index
    %5 = vector.load %arg4[%c0_4, %c0_5] : memref<256x1xf32, #tpu.memory_space<vmem>>, vector<256x1xf32>
    %6 = vector.broadcast %5 : vector<256x1xf32> to vector<256x128xf32>
    %7 = arith.addf %4, %6 : vector<256x128xf32>
    %cst_6 = arith.constant 0.000000e+00 : f32
    %8 = vector.broadcast %cst_6 : f32 to vector<256x128xf32>
    %9 = arith.maximumf %7, %8 : vector<256x128xf32>
    %10 = arith.truncf %9 : vector<256x128xf32> to vector<256x128xbf16>
    %c0_7 = arith.constant 0 : index
    %c0_8 = arith.constant 0 : index
    %11 = vector.load %arg5[%c0_7, %c0_8] : memref<32x256xbf16, #tpu.memory_space<vmem>>, vector<32x256xbf16>
    %cst_9 = arith.constant dense<0.000000e+00> : vector<32x128xf32>
    %12 = tpu.matmul %11, %10, %cst_9 {dimension_numbers = #tpu.dot_dimension_numbers<[1], [0], [0], [1], [0, 0, 1, 1], [], []>} : vector<32x256xbf16>, vector<256x128xbf16>, vector<32x128xf32> -> vector<32x128xf32>
    %c0_10 = arith.constant 0 : index
    %c0_11 = arith.constant 0 : index
    %13 = vector.load %arg6[%c0_10, %c0_11] : memref<32x1xf32, #tpu.memory_space<vmem>>, vector<32x1xf32>
    %14 = vector.broadcast %13 : vector<32x1xf32> to vector<32x128xf32>
    %15 = arith.addf %12, %14 : vector<32x128xf32>
    %c0_12 = arith.constant 0 : index
    %c0_13 = arith.constant 0 : index
    %c0_14 = arith.constant 0 : index
    %16 = vector.load %arg7[%c0_12, %c0_13, %c0_14] : memref<1x32x128xf32, #tpu.memory_space<vmem>>, vector<1x32x128xf32>
    %17 = vector.shape_cast %16 : vector<1x32x128xf32> to vector<32x128xf32>
    %18 = vector.shape_cast %15 : vector<32x128xf32> to vector<1x32x128xf32>
    tpu.vector_store %arg7[%c0_12, %c0_13, %c0_14], %18 {strides = array<i32>} : memref<1x32x128xf32, #tpu.memory_space<vmem>>, vector<1x32x128xf32>,
    return
  }
  func.func @transform_0(%arg0: i32, %arg1: i32) -> (i32, i32, i32) {
    %c0_i32 = arith.constant 0 : i32
    %c0_i32_0 = arith.constant 0 : i32
    return %arg0, %c0_i32, %arg1 : i32, i32, i32
  }
  func.func @transform_1(%arg0: i32, %arg1: i32) -> (i32, i32) {
    %c0_i32 = arith.constant 0 : i32
    %c0_i32_0 = arith.constant 0 : i32
    %c0_i32_1 = arith.constant 0 : i32
    return %c0_i32, %c0_i32_0 : i32, i32
  }
  func.func @transform_2(%arg0: i32, %arg1: i32) -> (i32, i32) {
    %c0_i32 = arith.constant 0 : i32
    %c0_i32_0 = arith.constant 0 : i32
    %c0_i32_1 = arith.constant 0 : i32
    return %c0_i32, %c0_i32_0 : i32, i32
  }
  func.func @transform_3(%arg0: i32, %arg1: i32) -> (i32, i32) {
    %c0_i32 = arith.constant 0 : i32
    %c0_i32_0 = arith.constant 0 : i32
    %c0_i32_1 = arith.constant 0 : i32
    return %c0_i32, %c0_i32_0 : i32, i32
  }
  func.func @transform_4(%arg0: i32, %arg1: i32) -> (i32, i32) {
    %c0_i32 = arith.constant 0 : i32
    %c0_i32_0 = arith.constant 0 : i32
    %c0_i32_1 = arith.constant 0 : i32
    return %c0_i32, %c0_i32_0 : i32, i32
  }
  func.func @transform_5(%arg0: i32, %arg1: i32) -> (i32, i32, i32) {
    %c0_i32 = arith.constant 0 : i32
    %c0_i32_0 = arith.constant 0 : i32
    return %arg0, %c0_i32, %arg1 : i32, i32, i32
  }
}

</mosaic_0001>

<llo_original>
// kernel: projector3_forward.2
$region0: #{projector3_forward.2}
  #allocation0 [shape = 'u32[]', space=smem, size = 0x4, offset = 0x4, fixed_abs, tag = 'smem constant byte address 0x4 - core index']
  #allocation1 [shape = 'u32[144,128]{1,0:T(1,128)}', space=vmem, size = 0x12000, scoped, tag = 'internal scratch']
  %s0 = inlined_call_operand.vmem [shape: f32[2,8,256], index: 0, kind: input, shape index: {}]
  %s1 = inlined_call_operand.vmem [shape: bf16[256,8], index: 1, kind: input, shape index: {}]
  %s2 = inlined_call_operand.vmem [shape: f32[256,1], index: 2, kind: input, shape index: {}]
  %s3 = inlined_call_operand.vmem [shape: bf16[32,256], index: 3, kind: input, shape index: {}]
  %s4 = inlined_call_operand.vmem [shape: f32[32,1], index: 4, kind: input, shape index: {}]
  %s5 = inlined_call_operand.vmem [shape: f32[2,32,256], index: 5, kind: output, shape index: {}]
  %s6 = sld [smem:[#allocation0]]
  $region87: #{projector3_forward.2} parent=0
    _
  %s8 = ssub.s32 1, %s6
  %s9 = scalar_select 0, %s8, %s6
  $region1: #{projector3_forward.2} parent=0
    #allocation2 [shape = 'u8[32768]{0}', space=vmem, size = 0x8000, scoped, tag = 'output window, operand 0']
    loop: start=0, step=1, limit=6
    $region2: #{projector3_forward.2} parent=1 // loop_pre_header
      _
    $region3: #{projector3_forward.2} parent=1 // loop_header
      %s11 = sphi 0, %s15
      %p12 = scmp.ge.s32.totalorder %s11, 6
      %s18 = sphi 0, %s30
      %s19 = sphi 0, %s26
      %s20 = sphi 0, %s18
      %s21 = sphi 0, %s19
      %s22 = sphi 0, %s20
      %s23 = sphi 0, %s21
      %s35 = sphi 0, %s37
      %s38 = sphi 0, %s35
      %s39 = sphi 0, %s38
      %s55 = sphi 0, %s39
      %s59 = sphi 0, %s59
      %s61 = sphi 0, %s59
      %s62 = sphi 0, %s61
      %s76 = sphi 0, %s62
      %s80 = sphi 0, %s80
      %s82 = sphi 0, %s80
      %s83 = sphi 0, %s82
      %s97 = sphi 0, %s83
      %s101 = sphi 0, %s101
      %s103 = sphi 0, %s101
      %s104 = sphi 0, %s103
      %s118 = sphi 0, %s104
      %s122 = sphi 0, %s122
      %s124 = sphi 0, %s122
      %s125 = sphi 0, %s124
      %s139 = sphi 0, %s125
      %s147 = sphi 0, %s149
      %s150 = sphi 0, %s147
      %s151 = sphi 0, %s150
      %s167 = sphi 0, %s151
    $region4: #{projector3_forward.2} parent=1 // loop_header_branch
      %14 = sbr.rel (%p12) target = $region8
    $region5: #{projector3_forward.2} parent=1 // loop_body
      %s16 = ssub.s32 %s11, 1
      %s17 = ssub.s32 %s11, 2
      %s24 = sadd.s32 1, %s19
      %p25 = scmp.ge.s32.totalorder %s24, 2
      %s26 = scalar_select %p25, 0, %s24
      %s27 = sadd.s32 1, %s18
      %s28 = scalar_select %p25, %s27, %s18
      %p29 = scmp.ge.s32.totalorder %s28, 2
      %s30 = scalar_select %p29, 0, %s28
      %s31 = ssub.s32 %s18, %s30
      %s32 = ssub.s32 %s19, %s26
      %s33 = sor.u32 %s31, %s32
      %p34 = scmp.eq.s32.totalorder %s33, 0
      %s36 = sadd.s32 %s35, 1
      %s37 = scalar_select %p34, %s35, %s36
      %p40 = pneg %p34
      %p41 = scmp.eq.s32.totalorder %s11, 3
      %p42 = por %p40, %p41
      %p43 = scmp.ne.s32.totalorder %s35, %s38
      %p44 = scmp.eq.s32.totalorder %s11, 0
      %p45 = por %p43, %p44
      %p46 = scmp.ne.s32.totalorder %s35, %s38
      %p47 = scmp.eq.s32.totalorder %s16, 3
      %p48 = por %p46, %p47
      %p49 = scmp.ne.s32.totalorder %s38, %s39
      %p50 = scmp.eq.s32.totalorder %s16, 0
      %p51 = por %p49, %p50
      %p52 = scmp.ne.s32.totalorder %s38, %s39
      %p53 = scmp.eq.s32.totalorder %s17, 3
      %p54 = por %p52, %p53
      %p56 = scmp.ne.s32.totalorder %s39, %s55
      %p57 = scmp.eq.s32.totalorder %s17, 0
      %p58 = por %p56, %p57
      %s60 = sadd.s32 %s59, 1
      %p63 = scmp.eq.s32.totalorder %s11, 3
      %p64 = scmp.ne.s32.totalorder %s59, %s61
      %p65 = scmp.eq.s32.totalorder %s11, 0
      %p66 = por %p64, %p65
      %p67 = scmp.ne.s32.totalorder %s59, %s61
      %p68 = scmp.eq.s32.totalorder %s16, 3
      %p69 = por %p67, %p68
      %p70 = scmp.ne.s32.totalorder %s61, %s62
      %p71 = scmp.eq.s32.totalorder %s16, 0
      %p72 = por %p70, %p71
      %p73 = scmp.ne.s32.totalorder %s61, %s62
      %p74 = scmp.eq.s32.totalorder %s17, 3
      %p75 = por %p73, %p74
      %p77 = scmp.ne.s32.totalorder %s62, %s76
      %p78 = scmp.eq.s32.totalorder %s17, 0
      %p79 = por %p77, %p78
      %s81 = sadd.s32 %s80, 1
      %p84 = scmp.eq.s32.totalorder %s11, 3
      %p85 = scmp.ne.s32.totalorder %s80, %s82
      %p86 = scmp.eq.s32.totalorder %s11, 0
      %p87 = por %p85, %p86
      %p88 = scmp.ne.s32.totalorder %s80, %s82
      %p89 = scmp.eq.s32.totalorder %s16, 3
      %p90 = por %p88, %p89
      %p91 = scmp.ne.s32.totalorder %s82, %s83
      %p92 = scmp.eq.s32.totalorder %s16, 0
      %p93 = por %p91, %p92
      %p94 = scmp.ne.s32.totalorder %s82, %s83
      %p95 = scmp.eq.s32.totalorder %s17, 3
      %p96 = por %p94, %p95
      %p98 = scmp.ne.s32.totalorder %s83, %s97
      %p99 = scmp.eq.s32.totalorder %s17, 0
      %p100 = por %p98, %p99
      %s102 = sadd.s32 %s101, 1
      %p105 = scmp.eq.s32.totalorder %s11, 3
      %p106 = scmp.ne.s32.totalorder %s101, %s103
      %p107 = scmp.eq.s32.totalorder %s11, 0
      %p108 = por %p106, %p107
      %p109 = scmp.ne.s32.totalorder %s101, %s103
      %p110 = scmp.eq.s32.totalorder %s16, 3
      %p111 = por %p109, %p110
      %p112 = scmp.ne.s32.totalorder %s103, %s104
      %p113 = scmp.eq.s32.totalorder %s16, 0
      %p114 = por %p112, %p113
      %p115 = scmp.ne.s32.totalorder %s103, %s104
      %p116 = scmp.eq.s32.totalorder %s17, 3
      %p117 = por %p115, %p116
      %p119 = scmp.ne.s32.totalorder %s104, %s118
      %p120 = scmp.eq.s32.totalorder %s17, 0
      %p121 = por %p119, %p120
      %s123 = sadd.s32 %s122, 1
      %p126 = scmp.eq.s32.totalorder %s11, 3
      %p127 = scmp.ne.s32.totalorder %s122, %s124
      %p128 = scmp.eq.s32.totalorder %s11, 0
      %p129 = por %p127, %p128
      %p130 = scmp.ne.s32.totalorder %s122, %s124
      %p131 = scmp.eq.s32.totalorder %s16, 3
      %p132 = por %p130, %p131
      %p133 = scmp.ne.s32.totalorder %s124, %s125
      %p134 = scmp.eq.s32.totalorder %s16, 0
      %p135 = por %p133, %p134
      %p136 = scmp.ne.s32.totalorder %s124, %s125
      %p137 = scmp.eq.s32.totalorder %s17, 3
      %p138 = por %p136, %p137
      %p140 = scmp.ne.s32.totalorder %s125, %s139
      %p141 = scmp.eq.s32.totalorder %s17, 0
      %p142 = por %p140, %p141
      %s143 = ssub.s32 %s18, %s30
      %s144 = ssub.s32 %s19, %s26
      %s145 = sor.u32 %s143, %s144
      %p146 = scmp.eq.s32.totalorder %s145, 0
      %s148 = sadd.s32 %s147, 1
      %s149 = scalar_select %p146, %s147, %s148
      %p152 = pneg %p146
      %p153 = scmp.eq.s32.totalorder %s11, 3
      %p154 = por %p152, %p153
      %p155 = scmp.ne.s32.totalorder %s147, %s150
      %p156 = scmp.eq.s32.totalorder %s11, 0
      %p157 = por %p155, %p156
      %p158 = scmp.ne.s32.totalorder %s147, %s150
      %p159 = scmp.eq.s32.totalorder %s16, 3
      %p160 = por %p158, %p159
      %p161 = scmp.ne.s32.totalorder %s150, %s151
      %p162 = scmp.eq.s32.totalorder %s16, 0
      %p163 = por %p161, %p162
      %p164 = scmp.ne.s32.totalorder %s150, %s151
      %p165 = scmp.eq.s32.totalorder %s17, 3
      %p166 = por %p164, %p165
      %p168 = scmp.ne.s32.totalorder %s151, %s167
      %p169 = scmp.eq.s32.totalorder %s17, 0
      %p170 = por %p168, %p169
      %p171 = scmp.le.s32.totalorder 1, %s11
      %p172 = scmp.lt.s32.totalorder %s11, 5
      %p173 = pnand %p171, %p172
      %p174 = pneg %p173
      // Predicated region
      $region9: #{projector3_forward.2} parent=5 // pred_check
        _
      $region10: #{projector3_forward.2} parent=5 // pred_check_branch
        %176 = sbr.rel (%p173) target = $region12
      $region11: #{projector3_forward.2} parent=5 // pred_region
        %s177 = ssub.s32 %s11, 1
        // Predicated region
        $region13: #{projector3_forward.2} parent=11 // pred_check
          %p178 = pneg %p72
        $region14: #{projector3_forward.2} parent=11 // pred_check_branch
          %180 = sbr.rel (%p178) target = $region16
        $region15: #{projector3_forward.2} parent=11 // pred_region
          _
        $region16: #{projector3_forward.2} parent=11 // pred_fallthru
          _
        // Predicated region
        $region17: #{projector3_forward.2} parent=11 // pred_check
          %p181 = pneg %p93
        $region18: #{projector3_forward.2} parent=11 // pred_check_branch
          %183 = sbr.rel (%p181) target = $region20
        $region19: #{projector3_forward.2} parent=11 // pred_region
          _
        $region20: #{projector3_forward.2} parent=11 // pred_fallthru
          _
        // Predicated region
        $region21: #{projector3_forward.2} parent=11 // pred_check
          %p184 = pneg %p114
        $region22: #{projector3_forward.2} parent=11 // pred_check_branch
          %186 = sbr.rel (%p184) target = $region24
        $region23: #{projector3_forward.2} parent=11 // pred_region
          _
        $region24: #{projector3_forward.2} parent=11 // pred_fallthru
          _
        // Predicated region
        $region25: #{projector3_forward.2} parent=11 // pred_check
          %p187 = pneg %p135
        $region26: #{projector3_forward.2} parent=11 // pred_check_branch
          %189 = sbr.rel (%p187) target = $region28
        $region27: #{projector3_forward.2} parent=11 // pred_region
          _
        $region28: #{projector3_forward.2} parent=11 // pred_fallthru
          _
      $region12: #{projector3_forward.2} parent=5 // pred_fallthru
        _
      %p190 = scmp.lt.s32.totalorder %s11, 4
      // Predicated region
      $region29: #{projector3_forward.2} parent=5 // pred_check
        %p191 = pneg %p190
      $region30: #{projector3_forward.2} parent=5 // pred_check_branch
        %193 = sbr.rel (%p191) target = $region32
      $region31: #{projector3_forward.2} parent=5 // pred_region
        // Predicated region
        $region33: #{projector3_forward.2} parent=31 // pred_check
          %p194 = pneg %p45
        $region34: #{projector3_forward.2} parent=31 // pred_check_branch
          %196 = sbr.rel (%p194) target = $region36
        $region35: #{projector3_forward.2} parent=31 // pred_region
          %p197 = scmp.lt.s32.totalorder %s18, 1
          %s198 = scalar_select %p197, %s18, 1
          %p199 = scmp.lt.s32.totalorder %s19, 1
          %s200 = scalar_select %p199, %s19, 1
          %s201 = smul.addr %s198, 2
          %s202 = sadd.s32 %s200, %s201
          %s203 = smul.addr %s202, 8
          %s204 = scalar_lea.vmem %s0, %s203
        $region36: #{projector3_forward.2} parent=31 // pred_fallthru
          _
      $region32: #{projector3_forward.2} parent=5 // pred_fallthru
        _
      %p205 = scmp.le.s32.totalorder 1, %s11
      %p206 = scmp.lt.s32.totalorder %s11, 5
      %p207 = pnand %p205, %p206
      %p208 = pneg %p207
      // Predicated region
      $region37: #{projector3_forward.2} parent=5 // pred_check
        _
      $region38: #{projector3_forward.2} parent=5 // pred_check_branch
        %210 = sbr.rel (%p207) target = $region40
      $region39: #{projector3_forward.2} parent=5 // pred_region
        %s211 = ssub.s32 %s11, 1
        %p212 = scmp.lt.s32.totalorder %s20, 1
        %s213 = scalar_select %p212, %s20, 1
        %p214 = scmp.lt.s32.totalorder %s21, 1
        %s215 = scalar_select %p214, %s21, 1
        %s216 = smul.addr %s213, 2
        %s217 = sadd.s32 %s215, %s216
        %s218 = smul.addr %s217, 8
        %s219 = scalar_lea.vmem %s0, %s218
        %p220 = pneg %p51
        %p221 = pneg %p48
        %p222 = pneg %p72
        %p223 = pneg %p69
        %p224 = pneg %p93
        %p225 = pneg %p90
        %p226 = pneg %p114
        %p227 = pneg %p111
        %p228 = pneg %p135
        %p229 = pneg %p132
        %p230 = pneg %p163
        %p231 = pneg %p160
        %s232 = sand.u32 %s150, 1
        %s233 = sand.u32 %s150, 1
        %s234 = smul.addr %s233, 32
        %s235 = scalar_lea.vmem [#allocation2], %s234
        %p236 = scmp.lt.s32.totalorder %s20, 1
        %s237 = scalar_select %p236, %s20, 1
        %p238 = scmp.lt.s32.totalorder %s21, 1
        %s239 = scalar_select %p238, %s21, 1
        %s240 = smul.addr %s237, 2
        %s241 = sadd.s32 %s239, %s240
        %s242 = smul.addr %s241, 8
        %s243 = scalar_lea.vmem %s0, %s242
        %v245 = vld [vmem:[%s243] sm:$0xff]
        %v246 = vpack.c.bf16 %v245, %v245
        %v247 = vld [vmem:[%s1] sm:$0xf]
        %v248 = vld [vmem:[%s1 + $0x4] sm:$0xf]
        %v249 = vld [vmem:[%s1 + $0x8] sm:$0xf]
        %v250 = vld [vmem:[%s1 + $0xc] sm:$0xf]
        %v251 = vld [vmem:[%s1 + $0x10] sm:$0xf]
        %v252 = vld [vmem:[%s1 + $0x14] sm:$0xf]
        %v253 = vld [vmem:[%s1 + $0x18] sm:$0xf]
        %v254 = vld [vmem:[%s1 + $0x1c] sm:$0xf]
        %v255 = vld [vmem:[%s1 + $0x20] sm:$0xf]
        %v256 = vld [vmem:[%s1 + $0x24] sm:$0xf]
        %v257 = vld [vmem:[%s1 + $0x28] sm:$0xf]
        %v258 = vld [vmem:[%s1 + $0x2c] sm:$0xf]
        %v259 = vld [vmem:[%s1 + $0x30] sm:$0xf]
        %v260 = vld [vmem:[%s1 + $0x34] sm:$0xf]
        %v261 = vld [vmem:[%s1 + $0x38] sm:$0xf]
        %v262 = vld [vmem:[%s1 + $0x3c] sm:$0xf]
        %v263 = vld [vmem:[%s1 + $0x40] sm:$0xf]
        %v264 = vld [vmem:[%s1 + $0x44] sm:$0xf]
        %v265 = vld [vmem:[%s1 + $0x48] sm:$0xf]
        %v266 = vld [vmem:[%s1 + $0x4c] sm:$0xf]
        %v267 = vld [vmem:[%s1 + $0x50] sm:$0xf]
        %v268 = vld [vmem:[%s1 + $0x54] sm:$0xf]
        %v269 = vld [vmem:[%s1 + $0x58] sm:$0xf]
        %v270 = vld [vmem:[%s1 + $0x5c] sm:$0xf]
        %v271 = vld [vmem:[%s1 + $0x60] sm:$0xf]
        %v272 = vld [vmem:[%s1 + $0x64] sm:$0xf]
        %v273 = vld [vmem:[%s1 + $0x68] sm:$0xf]
        %v274 = vld [vmem:[%s1 + $0x6c] sm:$0xf]
        %v275 = vld [vmem:[%s1 + $0x70] sm:$0xf]
        %v276 = vld [vmem:[%s1 + $0x74] sm:$0xf]
        %v277 = vld [vmem:[%s1 + $0x78] sm:$0xf]
        %v278 = vld [vmem:[%s1 + $0x7c] sm:$0xf]
        %v279 = vld [vmem:[%s2] sm:$0xff]
        %v280 = vld [vmem:[%s2 + $0x8] sm:$0xff]
        %v281 = vld [vmem:[%s2 + $0x10] sm:$0xff]
        %v282 = vld [vmem:[%s2 + $0x18] sm:$0xff]
        %v283 = vld [vmem:[%s2 + $0x20] sm:$0xff]
        %v284 = vld [vmem:[%s2 + $0x28] sm:$0xff]
        %v285 = vld [vmem:[%s2 + $0x30] sm:$0xff]
        %v286 = vld [vmem:[%s2 + $0x38] sm:$0xff]
        %v287 = vld [vmem:[%s2 + $0x40] sm:$0xff]
        %v288 = vld [vmem:[%s2 + $0x48] sm:$0xff]
        %v289 = vld [vmem:[%s2 + $0x50] sm:$0xff]
        %v290 = vld [vmem:[%s2 + $0x58] sm:$0xff]
        %v291 = vld [vmem:[%s2 + $0x60] sm:$0xff]
        %v292 = vld [vmem:[%s2 + $0x68] sm:$0xff]
        %v293 = vld [vmem:[%s2 + $0x70] sm:$0xff]
        %v294 = vld [vmem:[%s2 + $0x78] sm:$0xff]
        %v295 = vld [vmem:[%s2 + $0x80] sm:$0xff]
        %v296 = vld [vmem:[%s2 + $0x88] sm:$0xff]
        %v297 = vld [vmem:[%s2 + $0x90] sm:$0xff]
        %v298 = vld [vmem:[%s2 + $0x98] sm:$0xff]
        %v299 = vld [vmem:[%s2 + $0xa0] sm:$0xff]
        %v300 = vld [vmem:[%s2 + $0xa8] sm:$0xff]
        %v301 = vld [vmem:[%s2 + $0xb0] sm:$0xff]
        %v302 = vld [vmem:[%s2 + $0xb8] sm:$0xff]
        %v303 = vld [vmem:[%s2 + $0xc0] sm:$0xff]
        %v304 = vld [vmem:[%s2 + $0xc8] sm:$0xff]
        %v305 = vld [vmem:[%s2 + $0xd0] sm:$0xff]
        %v306 = vld [vmem:[%s2 + $0xd8] sm:$0xff]
        %v307 = vld [vmem:[%s2 + $0xe0] sm:$0xff]
        %v308 = vld [vmem:[%s2 + $0xe8] sm:$0xff]
        %v309 = vld [vmem:[%s2 + $0xf0] sm:$0xff]
        %v310 = vld [vmem:[%s2 + $0xf8] sm:$0xff]
        %312 = vset.pattern.permute.xlu0 0
        %313 = vperm.xlu0 %312, %v279
        %v314 = vpop.permute.xlu0 %313
        %317 = vset.pattern.permute.xlu0 0
        %318 = vperm.xlu0 %317, %v280
        %v319 = vpop.permute.xlu0 %318
        %322 = vset.pattern.permute.xlu0 0
        %323 = vperm.xlu0 %322, %v281
        %v324 = vpop.permute.xlu0 %323
        %327 = vset.pattern.permute.xlu0 0
        %328 = vperm.xlu0 %327, %v282
        %v329 = vpop.permute.xlu0 %328
        %332 = vset.pattern.permute.xlu0 0
        %333 = vperm.xlu0 %332, %v283
        %v334 = vpop.permute.xlu0 %333
        %337 = vset.pattern.permute.xlu0 0
        %338 = vperm.xlu0 %337, %v284
        %v339 = vpop.permute.xlu0 %338
        %342 = vset.pattern.permute.xlu0 0
        %343 = vperm.xlu0 %342, %v285
        %v344 = vpop.permute.xlu0 %343
        %347 = vset.pattern.permute.xlu0 0
        %348 = vperm.xlu0 %347, %v286
        %v349 = vpop.permute.xlu0 %348
        %352 = vset.pattern.permute.xlu0 0
        %353 = vperm.xlu0 %352, %v287
        %v354 = vpop.permute.xlu0 %353
        %357 = vset.pattern.permute.xlu0 0
        %358 = vperm.xlu0 %357, %v288
        %v359 = vpop.permute.xlu0 %358
        %362 = vset.pattern.permute.xlu0 0
        %363 = vperm.xlu0 %362, %v289
        %v364 = vpop.permute.xlu0 %363
        %367 = vset.pattern.permute.xlu0 0
        %368 = vperm.xlu0 %367, %v290
        %v369 = vpop.permute.xlu0 %368
        %372 = vset.pattern.permute.xlu0 0
        %373 = vperm.xlu0 %372, %v291
        %v374 = vpop.permute.xlu0 %373
        %377 = vset.pattern.permute.xlu0 0
        %378 = vperm.xlu0 %377, %v292
        %v379 = vpop.permute.xlu0 %378
        %382 = vset.pattern.permute.xlu0 0
        %383 = vperm.xlu0 %382, %v293
        %v384 = vpop.permute.xlu0 %383
        %387 = vset.pattern.permute.xlu0 0
        %388 = vperm.xlu0 %387, %v294
        %v389 = vpop.permute.xlu0 %388
        %392 = vset.pattern.permute.xlu0 0
        %393 = vperm.xlu0 %392, %v295
        %v394 = vpop.permute.xlu0 %393
        %397 = vset.pattern.permute.xlu0 0
        %398 = vperm.xlu0 %397, %v296
        %v399 = vpop.permute.xlu0 %398
        %402 = vset.pattern.permute.xlu0 0
        %403 = vperm.xlu0 %402, %v297
        %v404 = vpop.permute.xlu0 %403
        %407 = vset.pattern.permute.xlu0 0
        %408 = vperm.xlu0 %407, %v298
        %v409 = vpop.permute.xlu0 %408
        %412 = vset.pattern.permute.xlu0 0
        %413 = vperm.xlu0 %412, %v299
        %v414 = vpop.permute.xlu0 %413
        %417 = vset.pattern.permute.xlu0 0
        %418 = vperm.xlu0 %417, %v300
        %v419 = vpop.permute.xlu0 %418
        %422 = vset.pattern.permute.xlu0 0
        %423 = vperm.xlu0 %422, %v301
        %v424 = vpop.permute.xlu0 %423
        %427 = vset.pattern.permute.xlu0 0
        %428 = vperm.xlu0 %427, %v302
        %v429 = vpop.permute.xlu0 %428
        %432 = vset.pattern.permute.xlu0 0
        %433 = vperm.xlu0 %432, %v303
        %v434 = vpop.permute.xlu0 %433
        %437 = vset.pattern.permute.xlu0 0
        %438 = vperm.xlu0 %437, %v304
        %v439 = vpop.permute.xlu0 %438
        %442 = vset.pattern.permute.xlu0 0
        %443 = vperm.xlu0 %442, %v305
        %v444 = vpop.permute.xlu0 %443
        %447 = vset.pattern.permute.xlu0 0
        %448 = vperm.xlu0 %447, %v306
        %v449 = vpop.permute.xlu0 %448
        %452 = vset.pattern.permute.xlu0 0
        %453 = vperm.xlu0 %452, %v307
        %v454 = vpop.permute.xlu0 %453
        %457 = vset.pattern.permute.xlu0 0
        %458 = vperm.xlu0 %457, %v308
        %v459 = vpop.permute.xlu0 %458
        %462 = vset.pattern.permute.xlu0 0
        %463 = vperm.xlu0 %462, %v309
        %v464 = vpop.permute.xlu0 %463
        %467 = vset.pattern.permute.xlu0 0
        %468 = vperm.xlu0 %467, %v310
        %v469 = vpop.permute.xlu0 %468
        %v503 = vunpack.c.l.b16 %v247
        %v504 = vunpack.c.l.b16 %v248
        %v505 = vunpack.c.l.b16 %v249
        %v506 = vunpack.c.l.b16 %v250
        %v507 = vunpack.c.l.b16 %v251
        %v508 = vunpack.c.l.b16 %v252
        %v509 = vunpack.c.l.b16 %v253
        %v510 = vunpack.c.l.b16 %v254
        %v511 = vunpack.c.l.b16 %v255
        %v512 = vunpack.c.l.b16 %v256
        %v513 = vunpack.c.l.b16 %v257
        %v514 = vunpack.c.l.b16 %v258
        %v515 = vunpack.c.l.b16 %v259
        %v516 = vunpack.c.l.b16 %v260
        %v517 = vunpack.c.l.b16 %v261
        %v518 = vunpack.c.l.b16 %v262
        %v519 = vunpack.c.l.b16 %v263
        %v520 = vunpack.c.l.b16 %v264
        %v521 = vunpack.c.l.b16 %v265
        %v522 = vunpack.c.l.b16 %v266
        %v523 = vunpack.c.l.b16 %v267
        %v524 = vunpack.c.l.b16 %v268
        %v525 = vunpack.c.l.b16 %v269
        %v526 = vunpack.c.l.b16 %v270
        %v527 = vunpack.c.l.b16 %v271
        %v528 = vunpack.c.l.b16 %v272
        %v529 = vunpack.c.l.b16 %v273
        %v530 = vunpack.c.l.b16 %v274
        %v531 = vunpack.c.l.b16 %v275
        %v532 = vunpack.c.l.b16 %v276
        %v533 = vunpack.c.l.b16 %v277
        %v534 = vunpack.c.l.b16 %v278
        %v535 = vpack.c.b16 %v504, %v503
        %v536 = vpack.c.b16 %v506, %v505
        %v537 = vpack.c.b16 %v508, %v507
        %v538 = vpack.c.b16 %v510, %v509
        %v539 = vpack.c.b16 %v512, %v511
        %v540 = vpack.c.b16 %v514, %v513
        %v541 = vpack.c.b16 %v516, %v515
        %v542 = vpack.c.b16 %v518, %v517
        %v543 = vpack.c.b16 %v520, %v519
        %v544 = vpack.c.b16 %v522, %v521
        %v545 = vpack.c.b16 %v524, %v523
        %v546 = vpack.c.b16 %v526, %v525
        %v547 = vpack.c.b16 %v528, %v527
        %v548 = vpack.c.b16 %v530, %v529
        %v549 = vpack.c.b16 %v532, %v531
        %v550 = vpack.c.b16 %v534, %v533
        %vm551 = vcmask 64512
        %v553 = vsel %vm551, %v535, 0
        %v556 = vsel %vm551, %v536, 0
        %v559 = vsel %vm551, %v537, 0
        %v562 = vsel %vm551, %v538, 0
        %v565 = vsel %vm551, %v539, 0
        %v568 = vsel %vm551, %v540, 0
        %v571 = vsel %vm551, %v541, 0
        %v574 = vsel %vm551, %v542, 0
        %v577 = vsel %vm551, %v543, 0
        %v580 = vsel %vm551, %v544, 0
        %v583 = vsel %vm551, %v545, 0
        %v586 = vsel %vm551, %v546, 0
        %v589 = vsel %vm551, %v547, 0
        %v592 = vsel %vm551, %v548, 0
        %v595 = vsel %vm551, %v549, 0
        %v598 = vsel %vm551, %v550, 0
        %vm600 = vcmask 1043456
        %v602 = vsel %vm600, %v246, 0
        %604 = vmatprep.subr.bf16.mxu0 0
        %605 = vmatpush1.bf16.msra.mxu0 %v602
        %606 = vmatprep.subr.bf16.mxu0 0
        %607 = vmatpush1.bf16.msra.mxu0 0
        %608 = vmatprep.subr.bf16.mxu0 0
        %609 = vmatpush1.bf16.msra.mxu0 0
        %610 = vmatprep.subr.bf16.mxu0 0
        %611 = vmatpush1.bf16.msra.mxu0 0
        %612 = vmatprep.subr.bf16.mxu0 0
        %613 = vmatpush1.bf16.msra.mxu0 0
        %614 = vmatprep.subr.bf16.mxu0 0
        %615 = vmatpush1.bf16.msra.mxu0 0
        %616 = vmatprep.subr.bf16.mxu0 0
        %617 = vmatpush1.bf16.msra.mxu0 0
        %618 = vmatprep.subr.bf16.mxu0 0
        %619 = vmatpush1.bf16.msra.mxu0 0
        %620 = vmatprep.subr.bf16.mxu0 0
        %621 = vmatpush1.bf16.msra.mxu0 0
        %622 = vmatprep.subr.bf16.mxu0 0
        %623 = vmatpush1.bf16.msra.mxu0 0
        %624 = vmatprep.subr.bf16.mxu0 0
        %625 = vmatpush1.bf16.msra.mxu0 0
        %626 = vmatprep.subr.bf16.mxu0 0
        %627 = vmatpush1.bf16.msra.mxu0 0
        %628 = vmatprep.subr.bf16.mxu0 0
        %629 = vmatpush1.bf16.msra.mxu0 0
        %630 = vmatprep.subr.bf16.mxu0 0
        %631 = vmatpush1.bf16.msra.mxu0 0
        %632 = vmatprep.subr.bf16.mxu0 0
        %633 = vmatpush1.bf16.msra.mxu0 0
        %634 = vmatprep.subr.bf16.mxu0 0
        %635 = vmatpush1.bf16.msra.mxu0 0
        %636 = vmatprep.mubr.bf16.mxu0 0
        %637 = vmatmul.mubr.bf16.gmra.mrb[0].mxu0 %v553
        %v638 = vpop.f32.mrb[0].mxu0
        %v639 = vadd.f32 %v314, %v638
        %v640 = vpop.f32.mrb[0].mxu0
        %v641 = vpop.f32.mrb[0].mxu0
        %v642 = vadd.f32 %v319, %v641
        %v643 = vpop.f32.mrb[0].mxu0
        %644 = vmatprep.mubr.bf16.mxu0 0
        %645 = vmatmul.mubr.bf16.gmra.mrb[0].mxu0 %v556
        %v646 = vpop.f32.mrb[0].mxu0
        %v647 = vadd.f32 %v324, %v646
        %v648 = vpop.f32.mrb[0].mxu0
        %v649 = vpop.f32.mrb[0].mxu0
        %v650 = vadd.f32 %v329, %v649
        %v651 = vpop.f32.mrb[0].mxu0
        %652 = vmatprep.mubr.bf16.mxu0 0
        %653 = vmatmul.mubr.bf16.gmra.mrb[0].mxu0 %v559
        %v654 = vpop.f32.mrb[0].mxu0
        %v655 = vadd.f32 %v334, %v654
        %v656 = vpop.f32.mrb[0].mxu0
        %v657 = vpop.f32.mrb[0].mxu0
        %v658 = vadd.f32 %v339, %v657
        %v659 = vpop.f32.mrb[0].mxu0
        %660 = vmatprep.mubr.bf16.mxu0 0
        %661 = vmatmul.mubr.bf16.gmra.mrb[0].mxu0 %v562
        %v662 = vpop.f32.mrb[0].mxu0
        %v663 = vadd.f32 %v344, %v662
        %v664 = vpop.f32.mrb[0].mxu0
        %v665 = vpop.f32.mrb[0].mxu0
        %v666 = vadd.f32 %v349, %v665
        %v667 = vpop.f32.mrb[0].mxu0
        %668 = vmatprep.mubr.bf16.mxu0 0
        %669 = vmatmul.mubr.bf16.gmra.mrb[0].mxu0 %v565
        %v670 = vpop.f32.mrb[0].mxu0
        %v671 = vadd.f32 %v354, %v670
        %v672 = vpop.f32.mrb[0].mxu0
        %v673 = vpop.f32.mrb[0].mxu0
        %v674 = vadd.f32 %v359, %v673
        %v675 = vpop.f32.mrb[0].mxu0
        %676 = vmatprep.mubr.bf16.mxu0 0
        %677 = vmatmul.mubr.bf16.gmra.mrb[0].mxu0 %v568
        %v678 = vpop.f32.mrb[0].mxu0
        %v679 = vadd.f32 %v364, %v678
        %v680 = vpop.f32.mrb[0].mxu0
        %v681 = vpop.f32.mrb[0].mxu0
        %v682 = vadd.f32 %v369, %v681
        %v683 = vpop.f32.mrb[0].mxu0
        %684 = vmatprep.mubr.bf16.mxu0 0
        %685 = vmatmul.mubr.bf16.gmra.mrb[0].mxu0 %v571
        %v686 = vpop.f32.mrb[0].mxu0
        %v687 = vadd.f32 %v374, %v686
        %v688 = vpop.f32.mrb[0].mxu0
        %v689 = vpop.f32.mrb[0].mxu0
        %v690 = vadd.f32 %v379, %v689
        %v691 = vpop.f32.mrb[0].mxu0
        %692 = vmatprep.mubr.bf16.mxu0 0
        %693 = vmatmul.mubr.bf16.gmra.mrb[0].mxu0 %v574
        %v694 = vpop.f32.mrb[0].mxu0
        %v695 = vadd.f32 %v384, %v694
        %v696 = vpop.f32.mrb[0].mxu0
        %v697 = vpop.f32.mrb[0].mxu0
        %v698 = vadd.f32 %v389, %v697
        %v699 = vpop.f32.mrb[0].mxu0
        %700 = vmatprep.mubr.bf16.mxu0 0
        %701 = vmatmul.mubr.bf16.gmra.mrb[0].mxu0 %v577
        %v702 = vpop.f32.mrb[0].mxu0
        %v703 = vadd.f32 %v394, %v702
        %v704 = vpop.f32.mrb[0].mxu0
        %v705 = vpop.f32.mrb[0].mxu0
        %v706 = vadd.f32 %v399, %v705
        %v707 = vpop.f32.mrb[0].mxu0
        %708 = vmatprep.mubr.bf16.mxu0 0
        %709 = vmatmul.mubr.bf16.gmra.mrb[0].mxu0 %v580
        %v710 = vpop.f32.mrb[0].mxu0
        %v711 = vadd.f32 %v404, %v710
        %v712 = vpop.f32.mrb[0].mxu0
        %v713 = vpop.f32.mrb[0].mxu0
        %v714 = vadd.f32 %v409, %v713
        %v715 = vpop.f32.mrb[0].mxu0
        %716 = vmatprep.mubr.bf16.mxu0 0
        %717 = vmatmul.mubr.bf16.gmra.mrb[0].mxu0 %v583
        %v718 = vpop.f32.mrb[0].mxu0
        %v719 = vadd.f32 %v414, %v718
        %v720 = vpop.f32.mrb[0].mxu0
        %v721 = vpop.f32.mrb[0].mxu0
        %v722 = vadd.f32 %v419, %v721
        %v723 = vpop.f32.mrb[0].mxu0
        %724 = vmatprep.mubr.bf16.mxu0 0
        %725 = vmatmul.mubr.bf16.gmra.mrb[0].mxu0 %v586
        %v726 = vpop.f32.mrb[0].mxu0
        %v727 = vadd.f32 %v424, %v726
        %v728 = vpop.f32.mrb[0].mxu0
        %v729 = vpop.f32.mrb[0].mxu0
        %v730 = vadd.f32 %v429, %v729
        %v731 = vpop.f32.mrb[0].mxu0
        %732 = vmatprep.mubr.bf16.mxu0 0
        %733 = vmatmul.mubr.bf16.gmra.mrb[0].mxu0 %v589
        %v734 = vpop.f32.mrb[0].mxu0
        %v735 = vadd.f32 %v434, %v734
        %v736 = vpop.f32.mrb[0].mxu0
        %v737 = vpop.f32.mrb[0].mxu0
        %v738 = vadd.f32 %v439, %v737
        %v739 = vpop.f32.mrb[0].mxu0
        %740 = vmatprep.mubr.bf16.mxu0 0
        %741 = vmatmul.mubr.bf16.gmra.mrb[0].mxu0 %v592
        %v742 = vpop.f32.mrb[0].mxu0
        %v743 = vadd.f32 %v444, %v742
        %v744 = vpop.f32.mrb[0].mxu0
        %v745 = vpop.f32.mrb[0].mxu0
        %v746 = vadd.f32 %v449, %v745
        %v747 = vpop.f32.mrb[0].mxu0
        %748 = vmatprep.mubr.bf16.mxu0 0
        %749 = vmatmul.mubr.bf16.gmra.mrb[0].mxu0 %v595
        %v750 = vpop.f32.mrb[0].mxu0
        %v751 = vadd.f32 %v454, %v750
        %v752 = vpop.f32.mrb[0].mxu0
        %v753 = vpop.f32.mrb[0].mxu0
        %v754 = vadd.f32 %v459, %v753
        %v755 = vpop.f32.mrb[0].mxu0
        %756 = vmatprep.mubr.bf16.mxu0 0
        %757 = vmatmul.mubr.bf16.gmra.mrb[0].mxu0 %v598
        %v758 = vpop.f32.mrb[0].mxu0
        %v759 = vadd.f32 %v464, %v758
        %v760 = vpop.f32.mrb[0].mxu0
        %v761 = vpop.f32.mrb[0].mxu0
        %v762 = vadd.f32 %v469, %v761
        %v763 = vpop.f32.mrb[0].mxu0
        %764 = vdwg.mxu0
        %v765 = vmax.f32 %v639, 0.0
        %v766 = vmax.f32 %v642, 0.0
        %v767 = vmax.f32 %v647, 0.0
        %v768 = vmax.f32 %v650, 0.0
        %v769 = vmax.f32 %v655, 0.0
        %v770 = vmax.f32 %v658, 0.0
        %v771 = vmax.f32 %v663, 0.0
        %v772 = vmax.f32 %v666, 0.0
        %v773 = vmax.f32 %v671, 0.0
        %v774 = vmax.f32 %v674, 0.0
        %v775 = vmax.f32 %v679, 0.0
        %v776 = vmax.f32 %v682, 0.0
        %v777 = vmax.f32 %v687, 0.0
        %v778 = vmax.f32 %v690, 0.0
        %v779 = vmax.f32 %v695, 0.0
        %v780 = vmax.f32 %v698, 0.0
        %v781 = vmax.f32 %v703, 0.0
        %v782 = vmax.f32 %v706, 0.0
        %v783 = vmax.f32 %v711, 0.0
        %v784 = vmax.f32 %v714, 0.0
        %v785 = vmax.f32 %v719, 0.0
        %v786 = vmax.f32 %v722, 0.0
        %v787 = vmax.f32 %v727, 0.0
        %v788 = vmax.f32 %v730, 0.0
        %v789 = vmax.f32 %v735, 0.0
        %v790 = vmax.f32 %v738, 0.0
        %v791 = vmax.f32 %v743, 0.0
        %v792 = vmax.f32 %v746, 0.0
        %v793 = vmax.f32 %v751, 0.0
        %v794 = vmax.f32 %v754, 0.0
        %v795 = vmax.f32 %v759, 0.0
        %v796 = vmax.f32 %v762, 0.0
        %v797 = vpack.c.bf16 %v766, %v765
        %v798 = vpack.c.bf16 %v768, %v767
        %v799 = vpack.c.bf16 %v770, %v769
        %v800 = vpack.c.bf16 %v772, %v771
        %v801 = vpack.c.bf16 %v774, %v773
        %v802 = vpack.c.bf16 %v776, %v775
        %v803 = vpack.c.bf16 %v778, %v777
        %v804 = vpack.c.bf16 %v780, %v779
        %v805 = vpack.c.bf16 %v782, %v781
        %v806 = vpack.c.bf16 %v784, %v783
        %v807 = vpack.c.bf16 %v786, %v785
        %v808 = vpack.c.bf16 %v788, %v787
        %v809 = vpack.c.bf16 %v790, %v789
        %v810 = vpack.c.bf16 %v792, %v791
        %v811 = vpack.c.bf16 %v794, %v793
        %v812 = vpack.c.bf16 %v796, %v795
        %v813 = vld [vmem:[%s3] sm:$0xff]
        %v814 = vld [vmem:[%s3 + $0x8] sm:$0xff]
        %v815 = vld [vmem:[%s3 + $0x10] sm:$0xff]
        %v816 = vld [vmem:[%s3 + $0x18] sm:$0xff]
        %v817 = vld [vmem:[%s4] sm:$0xff]
        %v818 = vld [vmem:[%s4 + $0x8] sm:$0xff]
        %v819 = vld [vmem:[%s4 + $0x10] sm:$0xff]
        %v820 = vld [vmem:[%s4 + $0x18] sm:$0xff]
        %822 = vset.pattern.permute.xlu0 0
        %823 = vperm.xlu0 %822, %v817
        %v824 = vpop.permute.xlu0 %823
        %827 = vset.pattern.permute.xlu0 0
        %828 = vperm.xlu0 %827, %v818
        %v829 = vpop.permute.xlu0 %828
        %832 = vset.pattern.permute.xlu0 0
        %833 = vperm.xlu0 %832, %v819
        %v834 = vpop.permute.xlu0 %833
        %837 = vset.pattern.permute.xlu0 0
        %838 = vperm.xlu0 %837, %v820
        %v839 = vpop.permute.xlu0 %838
        %v845 = vunpack.c.l.b16 %v813
        %v846 = vunpack.c.h.b16 %v813
        %v847 = vunpack.c.l.b16 %v814
        %v848 = vunpack.c.h.b16 %v814
        %v849 = vunpack.c.l.b16 %v815
        %v850 = vunpack.c.h.b16 %v815
        %v851 = vunpack.c.l.b16 %v816
        %v852 = vunpack.c.h.b16 %v816
        %v853 = vpack.c.b16 %v847, %v845
        %v854 = vpack.c.b16 %v848, %v846
        %v855 = vpack.c.b16 %v851, %v849
        %v856 = vpack.c.b16 %v852, %v850
        %861 = vmatprep.subr.bf16.mxu0 0
        %862 = vmatpush1.bf16.msra.mxu0 %v797
        %863 = vmatprep.subr.bf16.mxu0 0
        %864 = vmatpush1.bf16.msra.mxu0 %v798
        %865 = vmatprep.subr.bf16.mxu0 0
        %866 = vmatpush1.bf16.msra.mxu0 %v799
        %867 = vmatprep.subr.bf16.mxu0 0
        %868 = vmatpush1.bf16.msra.mxu0 %v800
        %869 = vmatprep.subr.bf16.mxu0 0
        %870 = vmatpush1.bf16.msra.mxu0 %v801
        %871 = vmatprep.subr.bf16.mxu0 0
        %872 = vmatpush1.bf16.msra.mxu0 %v802
        %873 = vmatprep.subr.bf16.mxu0 0
        %874 = vmatpush1.bf16.msra.mxu0 %v803
        %875 = vmatprep.subr.bf16.mxu0 0
        %876 = vmatpush1.bf16.msra.mxu0 %v804
        %877 = vmatprep.subr.bf16.mxu0 0
        %878 = vmatpush1.bf16.msra.mxu0 %v805
        %879 = vmatprep.subr.bf16.mxu0 0
        %880 = vmatpush1.bf16.msra.mxu0 %v806
        %881 = vmatprep.subr.bf16.mxu0 0
        %882 = vmatpush1.bf16.msra.mxu0 %v807
        %883 = vmatprep.subr.bf16.mxu0 0
        %884 = vmatpush1.bf16.msra.mxu0 %v808
        %885 = vmatprep.subr.bf16.mxu0 0
        %886 = vmatpush1.bf16.msra.mxu0 %v809
        %887 = vmatprep.subr.bf16.mxu0 0
        %888 = vmatpush1.bf16.msra.mxu0 %v810
        %889 = vmatprep.subr.bf16.mxu0 0
        %890 = vmatpush1.bf16.msra.mxu0 %v811
        %891 = vmatprep.subr.bf16.mxu0 0
        %892 = vmatpush1.bf16.msra.mxu0 %v812
        %893 = vmatprep.mubr.bf16.mxu0 %v854
        %894 = vmatmul.mubr.bf16.gmra.mrb[0].mxu0 %v853
        %v895 = vpop.f32.mrb[0].mxu0
        %v896 = vadd.f32 %v824, %v895
        %v897 = vpop.f32.mrb[0].mxu0
        %v898 = vpop.f32.mrb[0].mxu0
        %v899 = vadd.f32 %v829, %v898
        %v900 = vpop.f32.mrb[0].mxu0
        %901 = vmatprep.mubr.bf16.mxu0 %v856
        %902 = vmatmul.mubr.bf16.gmra.mrb[0].mxu0 %v855
        %v903 = vpop.f32.mrb[0].mxu0
        %v904 = vadd.f32 %v834, %v903
        %v905 = vpop.f32.mrb[0].mxu0
        %v906 = vpop.f32.mrb[0].mxu0
        %v907 = vadd.f32 %v839, %v906
        %v908 = vpop.f32.mrb[0].mxu0
        %909 = vdwg.mxu0
        %910 = vst [vmem:[%s235] sm:$0xff] %v896
        %911 = vst [vmem:[%s235 + $0x8] sm:$0xff] %v899
        %912 = vst [vmem:[%s235 + $0x10] sm:$0xff] %v904
        %913 = vst [vmem:[%s235 + $0x18] sm:$0xff] %v907
        %s914 = sand.u32 %s150, 1
        %s915 = sand.u32 %s150, 1
        %s916 = smul.addr %s915, 32
        %s917 = scalar_lea.vmem [#allocation2], %s916
        // Predicated region
        $region41: #{projector3_forward.2} parent=39 // pred_check
          %p918 = pneg %p160
        $region42: #{projector3_forward.2} parent=39 // pred_check_branch
          %920 = sbr.rel (%p918) target = $region44
        $region43: #{projector3_forward.2} parent=39 // pred_region
          %s921 = smul.addr %s20, 8
          %s922 = sadd.s32 %s21, %s921
          %s923 = smul.addr %s922, 8
          %s924 = scalar_lea.vmem %s5, %s923
          // Predicated region
          $region45: #{projector3_forward.2} parent=43 // pred_check
            _
          $region46: #{projector3_forward.2} parent=43 // pred_check_branch
            %926 = sbr.rel (0) target = $region48
          $region47: #{projector3_forward.2} parent=43 // pred_region
            // Predicated region
            $region49: #{projector3_forward.2} parent=47 // pred_check
              _
            $region50: #{projector3_forward.2} parent=47 // pred_check_branch
              %928 = sbr.rel (0) target = $region52
            $region51: #{projector3_forward.2} parent=47 // pred_region
              // Predicated region
              $region64: #{projector3_forward.2} parent=51 // pred_check
                _
              $region65: #{projector3_forward.2} parent=51 // pred_check_branch
                %949 = sbr.rel (0) target = $region67
              $region66: #{projector3_forward.2} parent=51 // pred_region
                loop: start=0, step=1, limit=1
                $region68: #{projector3_forward.2} parent=66 // loop_pre_header
                  _
                $region69: #{projector3_forward.2} parent=66 // loop_header
                  %s951 = sphi 0, %s955
                  %p952 = scmp.ge.s32.totalorder %s951, 1
                  %s956 = sphi %s917, %s917
                  %s957 = sphi %s924, %s924
                $region70: #{projector3_forward.2} parent=66 // loop_header_branch
                  %954 = sbr.rel (%p952) target = $region74
                $region71: #{projector3_forward.2} parent=66 // loop_body
                  %v958 = vld [vmem:[%s956] sm:$0xff]
                  %959 = vst [vmem:[%s957] sm:$0xff] %v958
                  %v960 = vld [vmem:[%s956 + $0x8] sm:$0xff]
                  %961 = vst [vmem:[%s957 + $0x10] sm:$0xff] %v960
                  %v962 = vld [vmem:[%s956 + $0x10] sm:$0xff]
                  %963 = vst [vmem:[%s957 + $0x20] sm:$0xff] %v962
                  %v964 = vld [vmem:[%s956 + $0x18] sm:$0xff]
                  %965 = vst [vmem:[%s957 + $0x30] sm:$0xff] %v964
                $region72: #{projector3_forward.2} parent=66 // loop_footer
                  %s955 = sadd.s32 1, %s951
                $region73: #{projector3_forward.2} parent=66 // loop_footer_branch
                  %950 = sbr.rel target = $region69
                $region74: #{projector3_forward.2} parent=66 // loop_exit
                  _
              $region67: #{projector3_forward.2} parent=51 // pred_fallthru
                _
              // Predicated region
              $region75: #{projector3_forward.2} parent=51 // pred_check
                _
              $region76: #{projector3_forward.2} parent=51 // pred_check_branch
                %967 = sbr.rel target = $region78
              $region77: #{projector3_forward.2} parent=51 // pred_region
                _
              $region78: #{projector3_forward.2} parent=51 // pred_fallthru
                _
            $region52: #{projector3_forward.2} parent=47 // pred_fallthru
              _
            // Predicated region
            $region53: #{projector3_forward.2} parent=47 // pred_check
              _
            $region54: #{projector3_forward.2} parent=47 // pred_check_branch
              %930 = sbr.rel target = $region56
            $region55: #{projector3_forward.2} parent=47 // pred_region
              loop: start=0, step=1, limit=1
              $region57: #{projector3_forward.2} parent=55 // loop_pre_header
                _
              $region58: #{projector3_forward.2} parent=55 // loop_header
                %s933 = sphi 0, %s937
                %p934 = scmp.ge.s32.totalorder %s933, 1
                %s938 = sphi %s917, %s917
                %s939 = sphi %s924, %s924
              $region59: #{projector3_forward.2} parent=55 // loop_header_branch
                %936 = sbr.rel (%p934) target = $region63
              $region60: #{projector3_forward.2} parent=55 // loop_body
                %v940 = vld [vmem:[%s938] sm:$0xff]
                %941 = vst [vmem:[%s939] sm:$0xff] %v940
                %v942 = vld [vmem:[%s938 + $0x8] sm:$0xff]
                %943 = vst [vmem:[%s939 + $0x10] sm:$0xff] %v942
                %v944 = vld [vmem:[%s938 + $0x10] sm:$0xff]
                %945 = vst [vmem:[%s939 + $0x20] sm:$0xff] %v944
                %v946 = vld [vmem:[%s938 + $0x18] sm:$0xff]
                %947 = vst [vmem:[%s939 + $0x30] sm:$0xff] %v946
              $region61: #{projector3_forward.2} parent=55 // loop_footer
                %s937 = sadd.s32 1, %s933
              $region62: #{projector3_forward.2} parent=55 // loop_footer_branch
                %932 = sbr.rel target = $region58
              $region63: #{projector3_forward.2} parent=55 // loop_exit
                _
            $region56: #{projector3_forward.2} parent=47 // pred_fallthru
              _
          $region48: #{projector3_forward.2} parent=43 // pred_fallthru
            _
          %968 = vnop
        $region44: #{projector3_forward.2} parent=39 // pred_fallthru
          _
      $region40: #{projector3_forward.2} parent=5 // pred_fallthru
        _
      %p969 = scmp.le.s32.totalorder 2, %s11
      // Predicated region
      $region79: #{projector3_forward.2} parent=5 // pred_check
        %p970 = pneg %p969
      $region80: #{projector3_forward.2} parent=5 // pred_check_branch
        %972 = sbr.rel (%p970) target = $region82
      $region81: #{projector3_forward.2} parent=5 // pred_region
        %s973 = ssub.s32 %s11, 2
        // Predicated region
        $region83: #{projector3_forward.2} parent=81 // pred_check
          %p974 = pneg %p166
        $region84: #{projector3_forward.2} parent=81 // pred_check_branch
          %976 = sbr.rel (%p974) target = $region86
        $region85: #{projector3_forward.2} parent=81 // pred_region
          %s977 = sand.u32 %s151, 1
          %s978 = sand.u32 %s151, 1
          %s979 = smul.addr %s978, 32
          %s980 = scalar_lea.vmem [#allocation2], %s979
        $region86: #{projector3_forward.2} parent=81 // pred_fallthru
          _
      $region82: #{projector3_forward.2} parent=5 // pred_fallthru
        _
    $region6: #{projector3_forward.2} parent=1 // loop_footer
      %s15 = sadd.s32 1, %s11
    $region7: #{projector3_forward.2} parent=1 // loop_footer_branch
      %10 = sbr.rel target = $region3
    $region8: #{projector3_forward.2} parent=1 // loop_exit
      _

// kernel: projector3_forward.3
$region0: #{projector3_forward.3}
  #allocation0 [shape = 'u32[]', space=smem, size = 0x4, offset = 0x4, fixed_abs, tag = 'smem constant byte address 0x4 - core index']
  #allocation1 [shape = 'u32[144,128]{1,0:T(1,128)}', space=vmem, size = 0x12000, scoped, tag = 'internal scratch']
  %s0 = inlined_call_operand.vmem [shape: f32[2,16,784], index: 0, kind: input, shape index: {}]
  %s1 = inlined_call_operand.vmem [shape: bf16[256,16], index: 1, kind: input, shape index: {}]
  %s2 = inlined_call_operand.vmem [shape: f32[256,1], index: 2, kind: input, shape index: {}]
  %s3 = inlined_call_operand.vmem [shape: bf16[32,256], index: 3, kind: input, shape index: {}]
  %s4 = inlined_call_operand.vmem [shape: f32[32,1], index: 4, kind: input, shape index: {}]
  %s5 = inlined_call_operand.vmem [shape: f32[2,32,784], index: 5, kind: output, shape index: {}]
  %s6 = sld [smem:[#allocation0]]
  $region53: #{projector3_forward.3} parent=0
    _
  %s8 = ssub.s32 1, %s6
  %s9 = scalar_select 0, %s8, %s6
  loop: start=0, step=1, limit=4
  $region2: #{projector3_forward.3} parent=0 // loop_pre_header
    _
  $region3: #{projector3_forward.3} parent=0 // loop_header
    %s11 = sphi 0, %s15
    %p12 = scmp.ge.s32.totalorder %s11, 4
    %s18 = sphi 0, %s30
    %s19 = sphi 0, %s26
    %s20 = sphi 0, %s18
    %s21 = sphi 0, %s19
    %s22 = sphi 0, %s20
    %s23 = sphi 0, %s21
    %s35 = sphi 0, %s37
    %s38 = sphi 0, %s35
    %s39 = sphi 0, %s38
    %s55 = sphi 0, %s39
    %s59 = sphi 0, %s59
    %s61 = sphi 0, %s59
    %s62 = sphi 0, %s61
    %s76 = sphi 0, %s62
    %s80 = sphi 0, %s80
    %s82 = sphi 0, %s80
    %s83 = sphi 0, %s82
    %s97 = sphi 0, %s83
    %s101 = sphi 0, %s101
    %s103 = sphi 0, %s101
    %s104 = sphi 0, %s103
    %s118 = sphi 0, %s104
    %s122 = sphi 0, %s122
    %s124 = sphi 0, %s122
    %s125 = sphi 0, %s124
    %s139 = sphi 0, %s125
    %s147 = sphi 0, %s149
    %s150 = sphi 0, %s147
    %s151 = sphi 0, %s150
    %s167 = sphi 0, %s151
  $region4: #{projector3_forward.3} parent=0 // loop_header_branch
    %14 = sbr.rel (%p12) target = $region8
  $region5: #{projector3_forward.3} parent=0 // loop_body
    %s16 = ssub.s32 %s11, 1
    %s17 = ssub.s32 %s11, 2
    %s24 = sadd.s32 1, %s19
    %p25 = scmp.ge.s32.totalorder %s24, 1
    %s26 = scalar_select %p25, 0, %s24
    %s27 = sadd.s32 1, %s18
    %s28 = scalar_select %p25, %s27, %s18
    %p29 = scmp.ge.s32.totalorder %s28, 2
    %s30 = scalar_select %p29, 0, %s28
    %s31 = ssub.s32 %s18, %s30
    %s32 = ssub.s32 %s19, %s26
    %s33 = sor.u32 %s31, %s32
    %p34 = scmp.eq.s32.totalorder %s33, 0
    %s36 = sadd.s32 %s35, 1
    %s37 = scalar_select %p34, %s35, %s36
    %p40 = pneg %p34
    %p41 = scmp.eq.s32.totalorder %s11, 1
    %p42 = por %p40, %p41
    %p43 = scmp.ne.s32.totalorder %s35, %s38
    %p44 = scmp.eq.s32.totalorder %s11, 0
    %p45 = por %p43, %p44
    %p46 = scmp.ne.s32.totalorder %s35, %s38
    %p47 = scmp.eq.s32.totalorder %s16, 1
    %p48 = por %p46, %p47
    %p49 = scmp.ne.s32.totalorder %s38, %s39
    %p50 = scmp.eq.s32.totalorder %s16, 0
    %p51 = por %p49, %p50
    %p52 = scmp.ne.s32.totalorder %s38, %s39
    %p53 = scmp.eq.s32.totalorder %s17, 1
    %p54 = por %p52, %p53
    %p56 = scmp.ne.s32.totalorder %s39, %s55
    %p57 = scmp.eq.s32.totalorder %s17, 0
    %p58 = por %p56, %p57
    %s60 = sadd.s32 %s59, 1
    %p63 = scmp.eq.s32.totalorder %s11, 1
    %p64 = scmp.ne.s32.totalorder %s59, %s61
    %p65 = scmp.eq.s32.totalorder %s11, 0
    %p66 = por %p64, %p65
    %p67 = scmp.ne.s32.totalorder %s59, %s61
    %p68 = scmp.eq.s32.totalorder %s16, 1
    %p69 = por %p67, %p68
    %p70 = scmp.ne.s32.totalorder %s61, %s62
    %p71 = scmp.eq.s32.totalorder %s16, 0
    %p72 = por %p70, %p71
    %p73 = scmp.ne.s32.totalorder %s61, %s62
    %p74 = scmp.eq.s32.totalorder %s17, 1
    %p75 = por %p73, %p74
    %p77 = scmp.ne.s32.totalorder %s62, %s76
    %p78 = scmp.eq.s32.totalorder %s17, 0
    %p79 = por %p77, %p78
    %s81 = sadd.s32 %s80, 1
    %p84 = scmp.eq.s32.totalorder %s11, 1
    %p85 = scmp.ne.s32.totalorder %s80, %s82
    %p86 = scmp.eq.s32.totalorder %s11, 0
    %p87 = por %p85, %p86
    %p88 = scmp.ne.s32.totalorder %s80, %s82
    %p89 = scmp.eq.s32.totalorder %s16, 1
    %p90 = por %p88, %p89
    %p91 = scmp.ne.s32.totalorder %s82, %s83
    %p92 = scmp.eq.s32.totalorder %s16, 0
    %p93 = por %p91, %p92
    %p94 = scmp.ne.s32.totalorder %s82, %s83
    %p95 = scmp.eq.s32.totalorder %s17, 1
    %p96 = por %p94, %p95
    %p98 = scmp.ne.s32.totalorder %s83, %s97
    %p99 = scmp.eq.s32.totalorder %s17, 0
    %p100 = por %p98, %p99
    %s102 = sadd.s32 %s101, 1
    %p105 = scmp.eq.s32.totalorder %s11, 1
    %p106 = scmp.ne.s32.totalorder %s101, %s103
    %p107 = scmp.eq.s32.totalorder %s11, 0
    %p108 = por %p106, %p107
    %p109 = scmp.ne.s32.totalorder %s101, %s103
    %p110 = scmp.eq.s32.totalorder %s16, 1
    %p111 = por %p109, %p110
    %p112 = scmp.ne.s32.totalorder %s103, %s104
    %p113 = scmp.eq.s32.totalorder %s16, 0
    %p114 = por %p112, %p113
    %p115 = scmp.ne.s32.totalorder %s103, %s104
    %p116 = scmp.eq.s32.totalorder %s17, 1
    %p117 = por %p115, %p116
    %p119 = scmp.ne.s32.totalorder %s104, %s118
    %p120 = scmp.eq.s32.totalorder %s17, 0
    %p121 = por %p119, %p120
    %s123 = sadd.s32 %s122, 1
    %p126 = scmp.eq.s32.totalorder %s11, 1
    %p127 = scmp.ne.s32.totalorder %s122, %s124
    %p128 = scmp.eq.s32.totalorder %s11, 0
    %p129 = por %p127, %p128
    %p130 = scmp.ne.s32.totalorder %s122, %s124
    %p131 = scmp.eq.s32.totalorder %s16, 1
    %p132 = por %p130, %p131
    %p133 = scmp.ne.s32.totalorder %s124, %s125
    %p134 = scmp.eq.s32.totalorder %s16, 0
    %p135 = por %p133, %p134
    %p136 = scmp.ne.s32.totalorder %s124, %s125
    %p137 = scmp.eq.s32.totalorder %s17, 1
    %p138 = por %p136, %p137
    %p140 = scmp.ne.s32.totalorder %s125, %s139
    %p141 = scmp.eq.s32.totalorder %s17, 0
    %p142 = por %p140, %p141
    %s143 = ssub.s32 %s18, %s30
    %s144 = ssub.s32 %s19, %s26
    %s145 = sor.u32 %s143, %s144
    %p146 = scmp.eq.s32.totalorder %s145, 0
    %s148 = sadd.s32 %s147, 1
    %s149 = scalar_select %p146, %s147, %s148
    %p152 = pneg %p146
    %p153 = scmp.eq.s32.totalorder %s11, 1
    %p154 = por %p152, %p153
    %p155 = scmp.ne.s32.totalorder %s147, %s150
    %p156 = scmp.eq.s32.totalorder %s11, 0
    %p157 = por %p155, %p156
    %p158 = scmp.ne.s32.totalorder %s147, %s150
    %p159 = scmp.eq.s32.totalorder %s16, 1
    %p160 = por %p158, %p159
    %p161 = scmp.ne.s32.totalorder %s150, %s151
    %p162 = scmp.eq.s32.totalorder %s16, 0
    %p163 = por %p161, %p162
    %p164 = scmp.ne.s32.totalorder %s150, %s151
    %p165 = scmp.eq.s32.totalorder %s17, 1
    %p166 = por %p164, %p165
    %p168 = scmp.ne.s32.totalorder %s151, %s167
    %p169 = scmp.eq.s32.totalorder %s17, 0
    %p170 = por %p168, %p169
    %p171 = scmp.le.s32.totalorder 1, %s11
    %p172 = scmp.lt.s32.totalorder %s11, 3
    %p173 = pnand %p171, %p172
    %p174 = pneg %p173
    // Predicated region
    $region9: #{projector3_forward.3} parent=5 // pred_check
      _
    $region10: #{projector3_forward.3} parent=5 // pred_check_branch
      %176 = sbr.rel (%p173) target = $region12
    $region11: #{projector3_forward.3} parent=5 // pred_region
      %s177 = ssub.s32 %s11, 1
      // Predicated region
      $region13: #{projector3_forward.3} parent=11 // pred_check
        %p178 = pneg %p72
      $region14: #{projector3_forward.3} parent=11 // pred_check_branch
        %180 = sbr.rel (%p178) target = $region16
      $region15: #{projector3_forward.3} parent=11 // pred_region
        _
      $region16: #{projector3_forward.3} parent=11 // pred_fallthru
        _
      // Predicated region
      $region17: #{projector3_forward.3} parent=11 // pred_check
        %p181 = pneg %p93
      $region18: #{projector3_forward.3} parent=11 // pred_check_branch
        %183 = sbr.rel (%p181) target = $region20
      $region19: #{projector3_forward.3} parent=11 // pred_region
        _
      $region20: #{projector3_forward.3} parent=11 // pred_fallthru
        _
      // Predicated region
      $region21: #{projector3_forward.3} parent=11 // pred_check
        %p184 = pneg %p114
      $region22: #{projector3_forward.3} parent=11 // pred_check_branch
        %186 = sbr.rel (%p184) target = $region24
      $region23: #{projector3_forward.3} parent=11 // pred_region
        _
      $region24: #{projector3_forward.3} parent=11 // pred_fallthru
        _
      // Predicated region
      $region25: #{projector3_forward.3} parent=11 // pred_check
        %p187 = pneg %p135
      $region26: #{projector3_forward.3} parent=11 // pred_check_branch
        %189 = sbr.rel (%p187) target = $region28
      $region27: #{projector3_forward.3} parent=11 // pred_region
        _
      $region28: #{projector3_forward.3} parent=11 // pred_fallthru
        _
    $region12: #{projector3_forward.3} parent=5 // pred_fallthru
      _
    %p190 = scmp.lt.s32.totalorder %s11, 2
    // Predicated region
    $region29: #{projector3_forward.3} parent=5 // pred_check
      %p191 = pneg %p190
    $region30: #{projector3_forward.3} parent=5 // pred_check_branch
      %193 = sbr.rel (%p191) target = $region32
    $region31: #{projector3_forward.3} parent=5 // pred_region
      // Predicated region
      $region33: #{projector3_forward.3} parent=31 // pred_check
        %p194 = pneg %p45
      $region34: #{projector3_forward.3} parent=31 // pred_check_branch
        %196 = sbr.rel (%p194) target = $region36
      $region35: #{projector3_forward.3} parent=31 // pred_region
        %s197 = smul.u32 7, %s19
        %p198 = scmp.lt.s32.totalorder %s18, 1
        %s199 = scalar_select %p198, %s18, 1
        %p200 = scmp.lt.s32.totalorder %s197, 6
        %s201 = scalar_select %p200, %s197, 6
        %s202 = smul.addr %s199, 14
        %s203 = sadd.s32 %s201, %s202
        %s204 = smul.addr %s203, 8
        %s205 = scalar_lea.vmem %s0, %s204
        %s206 = smul.u32 7, %s19
      $region36: #{projector3_forward.3} parent=31 // pred_fallthru
        _
    $region32: #{projector3_forward.3} parent=5 // pred_fallthru
      _
    %p207 = scmp.le.s32.totalorder 1, %s11
    %p208 = scmp.lt.s32.totalorder %s11, 3
    %p209 = pnand %p207, %p208
    %p210 = pneg %p209
    // Predicated region
    $region37: #{projector3_forward.3} parent=5 // pred_check
      _
    $region38: #{projector3_forward.3} parent=5 // pred_check_branch
      %212 = sbr.rel (%p209) target = $region40
    $region39: #{projector3_forward.3} parent=5 // pred_region
      %s213 = ssub.s32 %s11, 1
      %s214 = smul.u32 7, %s21
      %p215 = scmp.lt.s32.totalorder %s20, 1
      %s216 = scalar_select %p215, %s20, 1
      %p217 = scmp.lt.s32.totalorder %s214, 6
      %s218 = scalar_select %p217, %s214, 6
      %s219 = smul.addr %s216, 14
      %s220 = sadd.s32 %s218, %s219
      %s221 = smul.addr %s220, 8
      %s222 = scalar_lea.vmem %s0, %s221
      %p223 = pneg %p51
      %p224 = pneg %p48
      %p225 = pneg %p72
      %p226 = pneg %p69
      %p227 = pneg %p93
      %p228 = pneg %p90
      %p229 = pneg %p114
      %p230 = pneg %p111
      %p231 = pneg %p135
      %p232 = pneg %p132
      %p233 = pneg %p163
      %p234 = pneg %p160
      %s235 = smul.u32 7, %s21
      %p236 = scmp.lt.s32.totalorder %s20, 1
      %s237 = scalar_select %p236, %s20, 1
      %p238 = scmp.lt.s32.totalorder %s235, 6
      %s239 = scalar_select %p238, %s235, 6
      %s240 = smul.addr %s237, 28
      %s241 = sadd.s32 %s239, %s240
      %s242 = smul.addr %s241, 8
      %s243 = scalar_lea.vmem %s5, %s242
      %s244 = smul.u32 7, %s21
      %p245 = scmp.lt.s32.totalorder %s20, 1
      %s246 = scalar_select %p245, %s20, 1
      %p247 = scmp.lt.s32.totalorder %s244, 6
      %s248 = scalar_select %p247, %s244, 6
      %s249 = smul.addr %s246, 14
      %s250 = sadd.s32 %s248, %s249
      %s251 = smul.addr %s250, 8
      %s252 = scalar_lea.vmem %s0, %s251
      %s253 = smul.u32 7, %s21
      %s254 = smul.u32 7, %s21
      %p255 = scmp.lt.s32.totalorder %s20, 1
      %s256 = scalar_select %p255, %s20, 1
      %p257 = scmp.lt.s32.totalorder %s254, 6
      %s258 = scalar_select %p257, %s254, 6
      %s259 = smul.addr %s256, 28
      %s260 = sadd.s32 %s258, %s259
      %s261 = smul.addr %s260, 8
      %s262 = scalar_lea.vmem %s5, %s261
      %s263 = smul.u32 7, %s21
      %v265 = vld [vmem:[%s252] sm:$0xff]
      %v266 = vld [vmem:[%s252 + $0x8] sm:$0xff]
      %v267 = vld [vmem:[%s252 + $0x10] sm:$0xff]
      %v268 = vld [vmem:[%s252 + $0x18] sm:$0xff]
      %v269 = vld [vmem:[%s252 + $0x20] sm:$0xff]
      %v270 = vld [vmem:[%s252 + $0x28] sm:$0xff]
      %v271 = vld [vmem:[%s252 + $0x30] sm:$0xff]
      %v272 = vld [vmem:[%s252 + $0x38] sm:$0xff]
      %v273 = vld [vmem:[%s252 + $0x40] sm:$0xff]
      %v274 = vld [vmem:[%s252 + $0x48] sm:$0xff]
      %v275 = vld [vmem:[%s252 + $0x50] sm:$0xff]
      %v276 = vld [vmem:[%s252 + $0x58] sm:$0xff]
      %v277 = vld [vmem:[%s252 + $0x60] sm:$0xff]
      %v278 = vld [vmem:[%s252 + $0x68] sm:$0xff]
      %v279 = vadd.f32 %v265, %v272
      %v280 = vrot.slane %v279, 4
      %v281 = vadd.f32 %v279, %v280
      %v282 = vrot.slane %v281, 2
      %v283 = vadd.f32 %v281, %v282
      %v284 = vrot.slane %v283, 1
      %v285 = vadd.f32 %v283, %v284
      %v286 = vadd.f32 %v266, %v273
      %v287 = vrot.slane %v286, 4
      %v288 = vadd.f32 %v286, %v287
      %v289 = vrot.slane %v288, 2
      %v290 = vadd.f32 %v288, %v289
      %v291 = vrot.slane %v290, 1
      %v292 = vadd.f32 %v290, %v291
      %v293 = vadd.f32 %v267, %v274
      %v294 = vrot.slane %v293, 4
      %v295 = vadd.f32 %v293, %v294
      %v296 = vrot.slane %v295, 2
      %v297 = vadd.f32 %v295, %v296
      %v298 = vrot.slane %v297, 1
      %v299 = vadd.f32 %v297, %v298
      %v300 = vadd.f32 %v268, %v275
      %v301 = vrot.slane %v300, 4
      %v302 = vadd.f32 %v300, %v301
      %v303 = vrot.slane %v302, 2
      %v304 = vadd.f32 %v302, %v303
      %v305 = vrot.slane %v304, 1
      %v306 = vadd.f32 %v304, %v305
      %v307 = vadd.f32 %v269, %v276
      %v308 = vrot.slane %v307, 4
      %v309 = vadd.f32 %v307, %v308
      %v310 = vrot.slane %v309, 2
      %v311 = vadd.f32 %v309, %v310
      %v312 = vrot.slane %v311, 1
      %v313 = vadd.f32 %v311, %v312
      %v314 = vadd.f32 %v270, %v277
      %v315 = vrot.slane %v314, 4
      %v316 = vadd.f32 %v314, %v315
      %v317 = vrot.slane %v316, 2
      %v318 = vadd.f32 %v316, %v317
      %v319 = vrot.slane %v318, 1
      %v320 = vadd.f32 %v318, %v319
      %vm321 = vcmask 130048
      %v322 = vsel %vm321, %v271, 0.0
      %v323 = vsel %vm321, %v278, 0.0
      %v324 = vadd.f32 %v322, %v323
      %v325 = vrot.slane %v324, 4
      %v326 = vadd.f32 %v324, %v325
      %v327 = vrot.slane %v326, 2
      %v328 = vadd.f32 %v326, %v327
      %v329 = vrot.slane %v328, 1
      %v330 = vadd.f32 %v328, %v329
      %v331 = vrcp.pop 16.0
      %v332 = vmul.f32 %v285, %v331
      %v333 = vmul.f32 %v292, %v331
      %v334 = vmul.f32 %v299, %v331
      %v335 = vmul.f32 %v306, %v331
      %v336 = vmul.f32 %v313, %v331
      %v337 = vmul.f32 %v320, %v331
      %v338 = vmul.f32 %v330, %v331
      %v339 = vsub.f32 %v265, %v332
      %v340 = vsub.f32 %v266, %v333
      %v341 = vsub.f32 %v267, %v334
      %v342 = vsub.f32 %v268, %v335
      %v343 = vsub.f32 %v269, %v336
      %v344 = vsub.f32 %v270, %v337
      %v345 = vsub.f32 %v271, %v338
      %v346 = vsub.f32 %v272, %v332
      %v347 = vsub.f32 %v273, %v333
      %v348 = vsub.f32 %v274, %v334
      %v349 = vsub.f32 %v275, %v335
      %v350 = vsub.f32 %v276, %v336
      %v351 = vsub.f32 %v277, %v337
      %v352 = vsub.f32 %v278, %v338
      %v353 = vmul.f32 %v339, %v339
      %v354 = vmul.f32 %v340, %v340
      %v355 = vmul.f32 %v341, %v341
      %v356 = vmul.f32 %v342, %v342
      %v357 = vmul.f32 %v343, %v343
      %v358 = vmul.f32 %v344, %v344
      %v359 = vmul.f32 %v345, %v345
      %v360 = vmul.f32 %v346, %v346
      %v361 = vmul.f32 %v347, %v347
      %v362 = vmul.f32 %v348, %v348
      %v363 = vmul.f32 %v349, %v349
      %v364 = vmul.f32 %v350, %v350
      %v365 = vmul.f32 %v351, %v351
      %v366 = vmul.f32 %v352, %v352
      %v367 = vadd.f32 %v353, %v360
      %v368 = vrot.slane %v367, 4
      %v369 = vadd.f32 %v367, %v368
      %v370 = vrot.slane %v369, 2
      %v371 = vadd.f32 %v369, %v370
      %v372 = vrot.slane %v371, 1
      %v373 = vadd.f32 %v371, %v372
      %v374 = vadd.f32 %v354, %v361
      %v375 = vrot.slane %v374, 4
      %v376 = vadd.f32 %v374, %v375
      %v377 = vrot.slane %v376, 2
      %v378 = vadd.f32 %v376, %v377
      %v379 = vrot.slane %v378, 1
      %v380 = vadd.f32 %v378, %v379
      %v381 = vadd.f32 %v355, %v362
      %v382 = vrot.slane %v381, 4
      %v383 = vadd.f32 %v381, %v382
      %v384 = vrot.slane %v383, 2
      %v385 = vadd.f32 %v383, %v384
      %v386 = vrot.slane %v385, 1
      %v387 = vadd.f32 %v385, %v386
      %v388 = vadd.f32 %v356, %v363
      %v389 = vrot.slane %v388, 4
      %v390 = vadd.f32 %v388, %v389
      %v391 = vrot.slane %v390, 2
      %v392 = vadd.f32 %v390, %v391
      %v393 = vrot.slane %v392, 1
      %v394 = vadd.f32 %v392, %v393
      %v395 = vadd.f32 %v357, %v364
      %v396 = vrot.slane %v395, 4
      %v397 = vadd.f32 %v395, %v396
      %v398 = vrot.slane %v397, 2
      %v399 = vadd.f32 %v397, %v398
      %v400 = vrot.slane %v399, 1
      %v401 = vadd.f32 %v399, %v400
      %v402 = vadd.f32 %v358, %v365
      %v403 = vrot.slane %v402, 4
      %v404 = vadd.f32 %v402, %v403
      %v405 = vrot.slane %v404, 2
      %v406 = vadd.f32 %v404, %v405
      %v407 = vrot.slane %v406, 1
      %v408 = vadd.f32 %v406, %v407
      %v409 = vsel %vm321, %v359, 0.0
      %v410 = vsel %vm321, %v366, 0.0
      %v411 = vadd.f32 %v409, %v410
      %v412 = vrot.slane %v411, 4
      %v413 = vadd.f32 %v411, %v412
      %v414 = vrot.slane %v413, 2
      %v415 = vadd.f32 %v413, %v414
      %v416 = vrot.slane %v415, 1
      %v417 = vadd.f32 %v415, %v416
      %v418 = vmul.f32 %v373, %v331
      %v419 = vmul.f32 %v380, %v331
      %v420 = vmul.f32 %v387, %v331
      %v421 = vmul.f32 %v394, %v331
      %v422 = vmul.f32 %v401, %v331
      %v423 = vmul.f32 %v408, %v331
      %v424 = vmul.f32 %v417, %v331
      %v425 = vadd.f32 %v418, 1e-05
      %v426 = vadd.f32 %v419, 1e-05
      %v427 = vadd.f32 %v420, 1e-05
      %v428 = vadd.f32 %v421, 1e-05
      %v429 = vadd.f32 %v422, 1e-05
      %v430 = vadd.f32 %v423, 1e-05
      %v431 = vadd.f32 %v424, 1e-05
      %v432 = vrsqrt.pop %v425
      %v433 = vrsqrt.pop %v426
      %v434 = vrsqrt.pop %v427
      %v435 = vrsqrt.pop %v428
      %v436 = vrsqrt.pop %v429
      %v437 = vrsqrt.pop %v430
      %v438 = vrsqrt.pop %v431
      %v439 = vmul.f32 %v339, %v432
      %v440 = vmul.f32 %v340, %v433
      %v441 = vmul.f32 %v341, %v434
      %v442 = vmul.f32 %v342, %v435
      %v443 = vmul.f32 %v343, %v436
      %v444 = vmul.f32 %v344, %v437
      %v445 = vmul.f32 %v345, %v438
      %v446 = vmul.f32 %v346, %v432
      %v447 = vmul.f32 %v347, %v433
      %v448 = vmul.f32 %v348, %v434
      %v449 = vmul.f32 %v349, %v435
      %v450 = vmul.f32 %v350, %v436
      %v451 = vmul.f32 %v351, %v437
      %v452 = vmul.f32 %v352, %v438
      %v453 = vpack.c.bf16 %v446, %v439
      %v454 = vpack.c.bf16 %v447, %v440
      %v455 = vpack.c.bf16 %v448, %v441
      %v456 = vpack.c.bf16 %v449, %v442
      %v457 = vpack.c.bf16 %v450, %v443
      %v458 = vpack.c.bf16 %v451, %v444
      %v459 = vpack.c.bf16 %v452, %v445
      %v460 = vld [vmem:[%s1] sm:$0xf]
      %v461 = vld [vmem:[%s1 + $0x4] sm:$0xf]
      %v462 = vld [vmem:[%s1 + $0x8] sm:$0xf]
      %v463 = vld [vmem:[%s1 + $0xc] sm:$0xf]
      %v464 = vld [vmem:[%s1 + $0x10] sm:$0xf]
      %v465 = vld [vmem:[%s1 + $0x14] sm:$0xf]
      %v466 = vld [vmem:[%s1 + $0x18] sm:$0xf]
      %v467 = vld [vmem:[%s1 + $0x1c] sm:$0xf]
      %v468 = vld [vmem:[%s1 + $0x20] sm:$0xf]
      %v469 = vld [vmem:[%s1 + $0x24] sm:$0xf]
      %v470 = vld [vmem:[%s1 + $0x28] sm:$0xf]
      %v471 = vld [vmem:[%s1 + $0x2c] sm:$0xf]
      %v472 = vld [vmem:[%s1 + $0x30] sm:$0xf]
      %v473 = vld [vmem:[%s1 + $0x34] sm:$0xf]
      %v474 = vld [vmem:[%s1 + $0x38] sm:$0xf]
      %v475 = vld [vmem:[%s1 + $0x3c] sm:$0xf]
      %v476 = vld [vmem:[%s1 + $0x40] sm:$0xf]
      %v477 = vld [vmem:[%s1 + $0x44] sm:$0xf]
      %v478 = vld [vmem:[%s1 + $0x48] sm:$0xf]
      %v479 = vld [vmem:[%s1 + $0x4c] sm:$0xf]
      %v480 = vld [vmem:[%s1 + $0x50] sm:$0xf]
      %v481 = vld [vmem:[%s1 + $0x54] sm:$0xf]
      %v482 = vld [vmem:[%s1 + $0x58] sm:$0xf]
      %v483 = vld [vmem:[%s1 + $0x5c] sm:$0xf]
      %v484 = vld [vmem:[%s1 + $0x60] sm:$0xf]
      %v485 = vld [vmem:[%s1 + $0x64] sm:$0xf]
      %v486 = vld [vmem:[%s1 + $0x68] sm:$0xf]
      %v487 = vld [vmem:[%s1 + $0x6c] sm:$0xf]
      %v488 = vld [vmem:[%s1 + $0x70] sm:$0xf]
      %v489 = vld [vmem:[%s1 + $0x74] sm:$0xf]
      %v490 = vld [vmem:[%s1 + $0x78] sm:$0xf]
      %v491 = vld [vmem:[%s1 + $0x7c] sm:$0xf]
      %v492 = vld [vmem:[%s2] sm:$0xff]
      %v493 = vld [vmem:[%s2 + $0x8] sm:$0xff]
      %v494 = vld [vmem:[%s2 + $0x10] sm:$0xff]
      %v495 = vld [vmem:[%s2 + $0x18] sm:$0xff]
      %v496 = vld [vmem:[%s2 + $0x20] sm:$0xff]
      %v497 = vld [vmem:[%s2 + $0x28] sm:$0xff]
      %v498 = vld [vmem:[%s2 + $0x30] sm:$0xff]
      %v499 = vld [vmem:[%s2 + $0x38] sm:$0xff]
      %v500 = vld [vmem:[%s2 + $0x40] sm:$0xff]
      %v501 = vld [vmem:[%s2 + $0x48] sm:$0xff]
      %v502 = vld [vmem:[%s2 + $0x50] sm:$0xff]
      %v503 = vld [vmem:[%s2 + $0x58] sm:$0xff]
      %v504 = vld [vmem:[%s2 + $0x60] sm:$0xff]
      %v505 = vld [vmem:[%s2 + $0x68] sm:$0xff]
      %v506 = vld [vmem:[%s2 + $0x70] sm:$0xff]
      %v507 = vld [vmem:[%s2 + $0x78] sm:$0xff]
      %v508 = vld [vmem:[%s2 + $0x80] sm:$0xff]
      %v509 = vld [vmem:[%s2 + $0x88] sm:$0xff]
      %v510 = vld [vmem:[%s2 + $0x90] sm:$0xff]
      %v511 = vld [vmem:[%s2 + $0x98] sm:$0xff]
      %v512 = vld [vmem:[%s2 + $0xa0] sm:$0xff]
      %v513 = vld [vmem:[%s2 + $0xa8] sm:$0xff]
      %v514 = vld [vmem:[%s2 + $0xb0] sm:$0xff]
      %v515 = vld [vmem:[%s2 + $0xb8] sm:$0xff]
      %v516 = vld [vmem:[%s2 + $0xc0] sm:$0xff]
      %v517 = vld [vmem:[%s2 + $0xc8] sm:$0xff]
      %v518 = vld [vmem:[%s2 + $0xd0] sm:$0xff]
      %v519 = vld [vmem:[%s2 + $0xd8] sm:$0xff]
      %v520 = vld [vmem:[%s2 + $0xe0] sm:$0xff]
      %v521 = vld [vmem:[%s2 + $0xe8] sm:$0xff]
      %v522 = vld [vmem:[%s2 + $0xf0] sm:$0xff]
      %v523 = vld [vmem:[%s2 + $0xf8] sm:$0xff]
      %525 = vset.pattern.permute.xlu0 0
      %526 = vperm.xlu0 %525, %v492
      %v527 = vpop.permute.xlu0 %526
      %530 = vset.pattern.permute.xlu0 0
      %531 = vperm.xlu0 %530, %v493
      %v532 = vpop.permute.xlu0 %531
      %535 = vset.pattern.permute.xlu0 0
      %536 = vperm.xlu0 %535, %v494
      %v537 = vpop.permute.xlu0 %536
      %540 = vset.pattern.permute.xlu0 0
      %541 = vperm.xlu0 %540, %v495
      %v542 = vpop.permute.xlu0 %541
      %545 = vset.pattern.permute.xlu0 0
      %546 = vperm.xlu0 %545, %v496
      %v547 = vpop.permute.xlu0 %546
      %550 = vset.pattern.permute.xlu0 0
      %551 = vperm.xlu0 %550, %v497
      %v552 = vpop.permute.xlu0 %551
      %555 = vset.pattern.permute.xlu0 0
      %556 = vperm.xlu0 %555, %v498
      %v557 = vpop.permute.xlu0 %556
      %560 = vset.pattern.permute.xlu0 0
      %561 = vperm.xlu0 %560, %v499
      %v562 = vpop.permute.xlu0 %561
      %565 = vset.pattern.permute.xlu0 0
      %566 = vperm.xlu0 %565, %v500
      %v567 = vpop.permute.xlu0 %566
      %570 = vset.pattern.permute.xlu0 0
      %571 = vperm.xlu0 %570, %v501
      %v572 = vpop.permute.xlu0 %571
      %575 = vset.pattern.permute.xlu0 0
      %576 = vperm.xlu0 %575, %v502
      %v577 = vpop.permute.xlu0 %576
      %580 = vset.pattern.permute.xlu0 0
      %581 = vperm.xlu0 %580, %v503
      %v582 = vpop.permute.xlu0 %581
      %585 = vset.pattern.permute.xlu0 0
      %586 = vperm.xlu0 %585, %v504
      %v587 = vpop.permute.xlu0 %586
      %590 = vset.pattern.permute.xlu0 0
      %591 = vperm.xlu0 %590, %v505
      %v592 = vpop.permute.xlu0 %591
      %595 = vset.pattern.permute.xlu0 0
      %596 = vperm.xlu0 %595, %v506
      %v597 = vpop.permute.xlu0 %596
      %600 = vset.pattern.permute.xlu0 0
      %601 = vperm.xlu0 %600, %v507
      %v602 = vpop.permute.xlu0 %601
      %605 = vset.pattern.permute.xlu0 0
      %606 = vperm.xlu0 %605, %v508
      %v607 = vpop.permute.xlu0 %606
      %610 = vset.pattern.permute.xlu0 0
      %611 = vperm.xlu0 %610, %v509
      %v612 = vpop.permute.xlu0 %611
      %615 = vset.pattern.permute.xlu0 0
      %616 = vperm.xlu0 %615, %v510
      %v617 = vpop.permute.xlu0 %616
      %620 = vset.pattern.permute.xlu0 0
      %621 = vperm.xlu0 %620, %v511
      %v622 = vpop.permute.xlu0 %621
      %625 = vset.pattern.permute.xlu0 0
      %626 = vperm.xlu0 %625, %v512
      %v627 = vpop.permute.xlu0 %626
      %630 = vset.pattern.permute.xlu0 0
      %631 = vperm.xlu0 %630, %v513
      %v632 = vpop.permute.xlu0 %631
      %635 = vset.pattern.permute.xlu0 0
      %636 = vperm.xlu0 %635, %v514
      %v637 = vpop.permute.xlu0 %636
      %640 = vset.pattern.permute.xlu0 0
      %641 = vperm.xlu0 %640, %v515
      %v642 = vpop.permute.xlu0 %641
      %645 = vset.pattern.permute.xlu0 0
      %646 = vperm.xlu0 %645, %v516
      %v647 = vpop.permute.xlu0 %646
      %650 = vset.pattern.permute.xlu0 0
      %651 = vperm.xlu0 %650, %v517
      %v652 = vpop.permute.xlu0 %651
      %655 = vset.pattern.permute.xlu0 0
      %656 = vperm.xlu0 %655, %v518
      %v657 = vpop.permute.xlu0 %656
      %660 = vset.pattern.permute.xlu0 0
      %661 = vperm.xlu0 %660, %v519
      %v662 = vpop.permute.xlu0 %661
      %665 = vset.pattern.permute.xlu0 0
      %666 = vperm.xlu0 %665, %v520
      %v667 = vpop.permute.xlu0 %666
      %670 = vset.pattern.permute.xlu0 0
      %671 = vperm.xlu0 %670, %v521
      %v672 = vpop.permute.xlu0 %671
      %675 = vset.pattern.permute.xlu0 0
      %676 = vperm.xlu0 %675, %v522
      %v677 = vpop.permute.xlu0 %676
      %680 = vset.pattern.permute.xlu0 0
      %681 = vperm.xlu0 %680, %v523
      %v682 = vpop.permute.xlu0 %681
      %v716 = vunpack.c.l.b16 %v460
      %v717 = vunpack.c.l.b16 %v461
      %v718 = vunpack.c.l.b16 %v462
      %v719 = vunpack.c.l.b16 %v463
      %v720 = vunpack.c.l.b16 %v464
      %v721 = vunpack.c.l.b16 %v465
      %v722 = vunpack.c.l.b16 %v466
      %v723 = vunpack.c.l.b16 %v467
      %v724 = vunpack.c.l.b16 %v468
      %v725 = vunpack.c.l.b16 %v469
      %v726 = vunpack.c.l.b16 %v470
      %v727 = vunpack.c.l.b16 %v471
      %v728 = vunpack.c.l.b16 %v472
      %v729 = vunpack.c.l.b16 %v473
      %v730 = vunpack.c.l.b16 %v474
      %v731 = vunpack.c.l.b16 %v475
      %v732 = vunpack.c.l.b16 %v476
      %v733 = vunpack.c.l.b16 %v477
      %v734 = vunpack.c.l.b16 %v478
      %v735 = vunpack.c.l.b16 %v479
      %v736 = vunpack.c.l.b16 %v480
      %v737 = vunpack.c.l.b16 %v481
      %v738 = vunpack.c.l.b16 %v482
      %v739 = vunpack.c.l.b16 %v483
      %v740 = vunpack.c.l.b16 %v484
      %v741 = vunpack.c.l.b16 %v485
      %v742 = vunpack.c.l.b16 %v486
      %v743 = vunpack.c.l.b16 %v487
      %v744 = vunpack.c.l.b16 %v488
      %v745 = vunpack.c.l.b16 %v489
      %v746 = vunpack.c.l.b16 %v490
      %v747 = vunpack.c.l.b16 %v491
      %v748 = vpack.c.b16 %v717, %v716
      %v749 = vpack.c.b16 %v719, %v718
      %v750 = vpack.c.b16 %v721, %v720
      %v751 = vpack.c.b16 %v723, %v722
      %v752 = vpack.c.b16 %v725, %v724
      %v753 = vpack.c.b16 %v727, %v726
      %v754 = vpack.c.b16 %v729, %v728
      %v755 = vpack.c.b16 %v731, %v730
      %v756 = vpack.c.b16 %v733, %v732
      %v757 = vpack.c.b16 %v735, %v734
      %v758 = vpack.c.b16 %v737, %v736
      %v759 = vpack.c.b16 %v739, %v738
      %v760 = vpack.c.b16 %v741, %v740
      %v761 = vpack.c.b16 %v743, %v742
      %v762 = vpack.c.b16 %v745, %v744
      %v763 = vpack.c.b16 %v747, %v746
      %v765 = vsel %vm321, %v748, 0
      %v768 = vsel %vm321, %v749, 0
      %v771 = vsel %vm321, %v750, 0
      %v774 = vsel %vm321, %v751, 0
      %v777 = vsel %vm321, %v752, 0
      %v780 = vsel %vm321, %v753, 0
      %v783 = vsel %vm321, %v754, 0
      %v786 = vsel %vm321, %v755, 0
      %v789 = vsel %vm321, %v756, 0
      %v792 = vsel %vm321, %v757, 0
      %v795 = vsel %vm321, %v758, 0
      %v798 = vsel %vm321, %v759, 0
      %v801 = vsel %vm321, %v760, 0
      %v804 = vsel %vm321, %v761, 0
      %v807 = vsel %vm321, %v762, 0
      %v810 = vsel %vm321, %v763, 0
      %812 = vmatprep.subr.bf16.mxu0 %v454
      %813 = vmatpush1.bf16.msra.mxu0 %v453
      %814 = vmatprep.subr.bf16.mxu0 0
      %815 = vmatpush1.bf16.msra.mxu0 0
      %816 = vmatprep.subr.bf16.mxu0 0
      %817 = vmatpush1.bf16.msra.mxu0 0
      %818 = vmatprep.subr.bf16.mxu0 0
      %819 = vmatpush1.bf16.msra.mxu0 0
      %820 = vmatprep.subr.bf16.mxu0 0
      %821 = vmatpush1.bf16.msra.mxu0 0
      %822 = vmatprep.subr.bf16.mxu0 0
      %823 = vmatpush1.bf16.msra.mxu0 0
      %824 = vmatprep.subr.bf16.mxu0 0
      %825 = vmatpush1.bf16.msra.mxu0 0
      %826 = vmatprep.subr.bf16.mxu0 0
      %827 = vmatpush1.bf16.msra.mxu0 0
      %828 = vmatprep.subr.bf16.mxu0 0
      %829 = vmatpush1.bf16.msra.mxu0 0
      %830 = vmatprep.subr.bf16.mxu0 0
      %831 = vmatpush1.bf16.msra.mxu0 0
      %832 = vmatprep.subr.bf16.mxu0 0
      %833 = vmatpush1.bf16.msra.mxu0 0
      %834 = vmatprep.subr.bf16.mxu0 0
      %835 = vmatpush1.bf16.msra.mxu0 0
      %836 = vmatprep.subr.bf16.mxu0 0
      %837 = vmatpush1.bf16.msra.mxu0 0
      %838 = vmatprep.subr.bf16.mxu0 0
      %839 = vmatpush1.bf16.msra.mxu0 0
      %840 = vmatprep.subr.bf16.mxu0 0
      %841 = vmatpush1.bf16.msra.mxu0 0
      %842 = vmatprep.subr.bf16.mxu0 0
      %843 = vmatpush1.bf16.msra.mxu0 0
      %844 = vmatprep.mubr.bf16.mxu0 0
      %845 = vmatmul.mubr.bf16.gmra.mrb[0].mxu0 %v765
      %v846 = vpop.f32.mrb[0].mxu0
      %v847 = vadd.f32 %v527, %v846
      %v848 = vpop.f32.mrb[0].mxu0
      %v849 = vadd.f32 %v527, %v848
      %v850 = vpop.f32.mrb[0].mxu0
      %v851 = vadd.f32 %v532, %v850
      %v852 = vpop.f32.mrb[0].mxu0
      %v853 = vadd.f32 %v532, %v852
      %854 = vmatprep.mubr.bf16.mxu0 0
      %855 = vmatmul.mubr.bf16.gmra.mrb[0].mxu0 %v768
      %v856 = vpop.f32.mrb[0].mxu0
      %v857 = vadd.f32 %v537, %v856
      %v858 = vpop.f32.mrb[0].mxu0
      %v859 = vadd.f32 %v537, %v858
      %v860 = vpop.f32.mrb[0].mxu0
      %v861 = vadd.f32 %v542, %v860
      %v862 = vpop.f32.mrb[0].mxu0
      %v863 = vadd.f32 %v542, %v862
      %864 = vmatprep.mubr.bf16.mxu0 0
      %865 = vmatmul.mubr.bf16.gmra.mrb[0].mxu0 %v771
      %v866 = vpop.f32.mrb[0].mxu0
      %v867 = vadd.f32 %v547, %v866
      %v868 = vpop.f32.mrb[0].mxu0
      %v869 = vadd.f32 %v547, %v868
      %v870 = vpop.f32.mrb[0].mxu0
      %v871 = vadd.f32 %v552, %v870
      %v872 = vpop.f32.mrb[0].mxu0
      %v873 = vadd.f32 %v552, %v872
      %874 = vmatprep.mubr.bf16.mxu0 0
      %875 = vmatmul.mubr.bf16.gmra.mrb[0].mxu0 %v774
      %v876 = vpop.f32.mrb[0].mxu0
      %v877 = vadd.f32 %v557, %v876
      %v878 = vpop.f32.mrb[0].mxu0
      %v879 = vadd.f32 %v557, %v878
      %v880 = vpop.f32.mrb[0].mxu0
      %v881 = vadd.f32 %v562, %v880
      %v882 = vpop.f32.mrb[0].mxu0
      %v883 = vadd.f32 %v562, %v882
      %884 = vmatprep.mubr.bf16.mxu0 0
      %885 = vmatmul.mubr.bf16.gmra.mrb[0].mxu0 %v777
      %v886 = vpop.f32.mrb[0].mxu0
      %v887 = vadd.f32 %v567, %v886
      %v888 = vpop.f32.mrb[0].mxu0
      %v889 = vadd.f32 %v567, %v888
      %v890 = vpop.f32.mrb[0].mxu0
      %v891 = vadd.f32 %v572, %v890
      %v892 = vpop.f32.mrb[0].mxu0
      %v893 = vadd.f32 %v572, %v892
      %894 = vmatprep.mubr.bf16.mxu0 0
      %895 = vmatmul.mubr.bf16.gmra.mrb[0].mxu0 %v780
      %v896 = vpop.f32.mrb[0].mxu0
      %v897 = vadd.f32 %v577, %v896
      %v898 = vpop.f32.mrb[0].mxu0
      %v899 = vadd.f32 %v577, %v898
      %v900 = vpop.f32.mrb[0].mxu0
      %v901 = vadd.f32 %v582, %v900
      %v902 = vpop.f32.mrb[0].mxu0
      %v903 = vadd.f32 %v582, %v902
      %904 = vmatprep.mubr.bf16.mxu0 0
      %905 = vmatmul.mubr.bf16.gmra.mrb[0].mxu0 %v783
      %v906 = vpop.f32.mrb[0].mxu0
      %v907 = vadd.f32 %v587, %v906
      %v908 = vpop.f32.mrb[0].mxu0
      %v909 = vadd.f32 %v587, %v908
      %v910 = vpop.f32.mrb[0].mxu0
      %v911 = vadd.f32 %v592, %v910
      %v912 = vpop.f32.mrb[0].mxu0
      %v913 = vadd.f32 %v592, %v912
      %914 = vmatprep.mubr.bf16.mxu0 0
      %915 = vmatmul.mubr.bf16.gmra.mrb[0].mxu0 %v786
      %v916 = vpop.f32.mrb[0].mxu0
      %v917 = vadd.f32 %v597, %v916
      %v918 = vpop.f32.mrb[0].mxu0
      %v919 = vadd.f32 %v597, %v918
      %v920 = vpop.f32.mrb[0].mxu0
      %v921 = vadd.f32 %v602, %v920
      %v922 = vpop.f32.mrb[0].mxu0
      %v923 = vadd.f32 %v602, %v922
      %924 = vmatprep.mubr.bf16.mxu0 0
      %925 = vmatmul.mubr.bf16.gmra.mrb[0].mxu0 %v789
      %v926 = vpop.f32.mrb[0].mxu0
      %v927 = vadd.f32 %v607, %v926
      %v928 = vpop.f32.mrb[0].mxu0
      %v929 = vadd.f32 %v607, %v928
      %v930 = vpop.f32.mrb[0].mxu0
      %v931 = vadd.f32 %v612, %v930
      %v932 = vpop.f32.mrb[0].mxu0
      %v933 = vadd.f32 %v612, %v932
      %934 = vmatprep.mubr.bf16.mxu0 0
      %935 = vmatmul.mubr.bf16.gmra.mrb[0].mxu0 %v792
      %v936 = vpop.f32.mrb[0].mxu0
      %v937 = vadd.f32 %v617, %v936
      %v938 = vpop.f32.mrb[0].mxu0
      %v939 = vadd.f32 %v617, %v938
      %v940 = vpop.f32.mrb[0].mxu0
      %v941 = vadd.f32 %v622, %v940
      %v942 = vpop.f32.mrb[0].mxu0
      %v943 = vadd.f32 %v622, %v942
      %944 = vmatprep.mubr.bf16.mxu0 0
      %945 = vmatmul.mubr.bf16.gmra.mrb[0].mxu0 %v795
      %v946 = vpop.f32.mrb[0].mxu0
      %v947 = vadd.f32 %v627, %v946
      %v948 = vpop.f32.mrb[0].mxu0
      %v949 = vadd.f32 %v627, %v948
      %v950 = vpop.f32.mrb[0].mxu0
      %v951 = vadd.f32 %v632, %v950
      %v952 = vpop.f32.mrb[0].mxu0
      %v953 = vadd.f32 %v632, %v952
      %954 = vmatprep.mubr.bf16.mxu0 0
      %955 = vmatmul.mubr.bf16.gmra.mrb[0].mxu0 %v798
      %v956 = vpop.f32.mrb[0].mxu0
      %v957 = vadd.f32 %v637, %v956
      %v958 = vpop.f32.mrb[0].mxu0
      %v959 = vadd.f32 %v637, %v958
      %v960 = vpop.f32.mrb[0].mxu0
      %v961 = vadd.f32 %v642, %v960
      %v962 = vpop.f32.mrb[0].mxu0
      %v963 = vadd.f32 %v642, %v962
      %964 = vmatprep.mubr.bf16.mxu0 0
      %965 = vmatmul.mubr.bf16.gmra.mrb[0].mxu0 %v801
      %v966 = vpop.f32.mrb[0].mxu0
      %v967 = vadd.f32 %v647, %v966
      %v968 = vpop.f32.mrb[0].mxu0
      %v969 = vadd.f32 %v647, %v968
      %v970 = vpop.f32.mrb[0].mxu0
      %v971 = vadd.f32 %v652, %v970
      %v972 = vpop.f32.mrb[0].mxu0
      %v973 = vadd.f32 %v652, %v972
      %974 = vmatprep.mubr.bf16.mxu0 0
      %975 = vmatmul.mubr.bf16.gmra.mrb[0].mxu0 %v804
      %v976 = vpop.f32.mrb[0].mxu0
      %v977 = vadd.f32 %v657, %v976
      %v978 = vpop.f32.mrb[0].mxu0
      %v979 = vadd.f32 %v657, %v978
      %v980 = vpop.f32.mrb[0].mxu0
      %v981 = vadd.f32 %v662, %v980
      %v982 = vpop.f32.mrb[0].mxu0
      %v983 = vadd.f32 %v662, %v982
      %984 = vmatprep.mubr.bf16.mxu0 0
      %985 = vmatmul.mubr.bf16.gmra.mrb[0].mxu0 %v807
      %v986 = vpop.f32.mrb[0].mxu0
      %v987 = vadd.f32 %v667, %v986
      %v988 = vpop.f32.mrb[0].mxu0
      %v989 = vadd.f32 %v667, %v988
      %v990 = vpop.f32.mrb[0].mxu0
      %v991 = vadd.f32 %v672, %v990
      %v992 = vpop.f32.mrb[0].mxu0
      %v993 = vadd.f32 %v672, %v992
      %994 = vmatprep.mubr.bf16.mxu0 0
      %995 = vmatmul.mubr.bf16.gmra.mrb[0].mxu0 %v810
      %v996 = vpop.f32.mrb[0].mxu0
      %v997 = vadd.f32 %v677, %v996
      %v998 = vpop.f32.mrb[0].mxu0
      %v999 = vadd.f32 %v677, %v998
      %v1000 = vpop.f32.mrb[0].mxu0
      %v1001 = vadd.f32 %v682, %v1000
      %v1002 = vpop.f32.mrb[0].mxu0
      %v1003 = vadd.f32 %v682, %v1002
      %1004 = vdwg.mxu0
      %1005 = vmatprep.subr.bf16.mxu0 %v456
      %1006 = vmatpush1.bf16.msra.mxu0 %v455
      %1007 = vmatprep.subr.bf16.mxu0 0
      %1008 = vmatpush1.bf16.msra.mxu0 0
      %1009 = vmatprep.subr.bf16.mxu0 0
      %1010 = vmatpush1.bf16.msra.mxu0 0
      %1011 = vmatprep.subr.bf16.mxu0 0
      %1012 = vmatpush1.bf16.msra.mxu0 0
      %1013 = vmatprep.subr.bf16.mxu0 0
      %1014 = vmatpush1.bf16.msra.mxu0 0
      %1015 = vmatprep.subr.bf16.mxu0 0
      %1016 = vmatpush1.bf16.msra.mxu0 0
      %1017 = vmatprep.subr.bf16.mxu0 0
      %1018 = vmatpush1.bf16.msra.mxu0 0
      %1019 = vmatprep.subr.bf16.mxu0 0
      %1020 = vmatpush1.bf16.msra.mxu0 0
      %1021 = vmatprep.subr.bf16.mxu0 0
      %1022 = vmatpush1.bf16.msra.mxu0 0
      %1023 = vmatprep.subr.bf16.mxu0 0
      %1024 = vmatpush1.bf16.msra.mxu0 0
      %1025 = vmatprep.subr.bf16.mxu0 0
      %1026 = vmatpush1.bf16.msra.mxu0 0
      %1027 = vmatprep.subr.bf16.mxu0 0
      %1028 = vmatpush1.bf16.msra.mxu0 0
      %1029 = vmatprep.subr.bf16.mxu0 0
      %1030 = vmatpush1.bf16.msra.mxu0 0
      %1031 = vmatprep.subr.bf16.mxu0 0
      %1032 = vmatpush1.bf16.msra.mxu0 0
      %1033 = vmatprep.subr.bf16.mxu0 0
      %1034 = vmatpush1.bf16.msra.mxu0 0
      %1035 = vmatprep.subr.bf16.mxu0 0
      %1036 = vmatpush1.bf16.msra.mxu0 0
      %1037 = vmatprep.mubr.bf16.mxu0 0
      %1038 = vmatmul.mubr.bf16.gmra.mrb[0].mxu0 %v765
      %v1039 = vpop.f32.mrb[0].mxu0
      %v1040 = vadd.f32 %v527, %v1039
      %v1041 = vpop.f32.mrb[0].mxu0
      %v1042 = vadd.f32 %v527, %v1041
      %v1043 = vpop.f32.mrb[0].mxu0
      %v1044 = vadd.f32 %v532, %v1043
      %v1045 = vpop.f32.mrb[0].mxu0
      %v1046 = vadd.f32 %v532, %v1045
      %1047 = vmatprep.mubr.bf16.mxu0 0
      %1048 = vmatmul.mubr.bf16.gmra.mrb[0].mxu0 %v768
      %v1049 = vpop.f32.mrb[0].mxu0
      %v1050 = vadd.f32 %v537, %v1049
      %v1051 = vpop.f32.mrb[0].mxu0
      %v1052 = vadd.f32 %v537, %v1051
      %v1053 = vpop.f32.mrb[0].mxu0
      %v1054 = vadd.f32 %v542, %v1053
      %v1055 = vpop.f32.mrb[0].mxu0
      %v1056 = vadd.f32 %v542, %v1055
      %1057 = vmatprep.mubr.bf16.mxu0 0
      %1058 = vmatmul.mubr.bf16.gmra.mrb[0].mxu0 %v771
      %v1059 = vpop.f32.mrb[0].mxu0
      %v1060 = vadd.f32 %v547, %v1059
      %v1061 = vpop.f32.mrb[0].mxu0
      %v1062 = vadd.f32 %v547, %v1061
      %v1063 = vpop.f32.mrb[0].mxu0
      %v1064 = vadd.f32 %v552, %v1063
      %v1065 = vpop.f32.mrb[0].mxu0
      %v1066 = vadd.f32 %v552, %v1065
      %1067 = vmatprep.mubr.bf16.mxu0 0
      %1068 = vmatmul.mubr.bf16.gmra.mrb[0].mxu0 %v774
      %v1069 = vpop.f32.mrb[0].mxu0
      %v1070 = vadd.f32 %v557, %v1069
      %v1071 = vpop.f32.mrb[0].mxu0
      %v1072 = vadd.f32 %v557, %v1071
      %v1073 = vpop.f32.mrb[0].mxu0
      %v1074 = vadd.f32 %v562, %v1073
      %v1075 = vpop.f32.mrb[0].mxu0
      %v1076 = vadd.f32 %v562, %v1075
      %1077 = vmatprep.mubr.bf16.mxu0 0
      %1078 = vmatmul.mubr.bf16.gmra.mrb[0].mxu0 %v777
      %v1079 = vpop.f32.mrb[0].mxu0
      %v1080 = vadd.f32 %v567, %v1079
      %v1081 = vpop.f32.mrb[0].mxu0
      %v1082 = vadd.f32 %v567, %v1081
      %v1083 = vpop.f32.mrb[0].mxu0
      %v1084 = vadd.f32 %v572, %v1083
      %v1085 = vpop.f32.mrb[0].mxu0
      %v1086 = vadd.f32 %v572, %v1085
      %1087 = vmatprep.mubr.bf16.mxu0 0
      %1088 = vmatmul.mubr.bf16.gmra.mrb[0].mxu0 %v780
      %v1089 = vpop.f32.mrb[0].mxu0
      %v1090 = vadd.f32 %v577, %v1089
      %v1091 = vpop.f32.mrb[0].mxu0
      %v1092 = vadd.f32 %v577, %v1091
      %v1093 = vpop.f32.mrb[0].mxu0
      %v1094 = vadd.f32 %v582, %v1093
      %v1095 = vpop.f32.mrb[0].mxu0
      %v1096 = vadd.f32 %v582, %v1095
      %1097 = vmatprep.mubr.bf16.mxu0 0
      %1098 = vmatmul.mubr.bf16.gmra.mrb[0].mxu0 %v783
      %v1099 = vpop.f32.mrb[0].mxu0
      %v1100 = vadd.f32 %v587, %v1099
      %v1101 = vpop.f32.mrb[0].mxu0
      %v1102 = vadd.f32 %v587, %v1101
      %v1103 = vpop.f32.mrb[0].mxu0
      %v1104 = vadd.f32 %v592, %v1103
      %v1105 = vpop.f32.mrb[0].mxu0
      %v1106 = vadd.f32 %v592, %v1105
      %1107 = vmatprep.mubr.bf16.mxu0 0
      %1108 = vmatmul.mubr.bf16.gmra.mrb[0].mxu0 %v786
      %v1109 = vpop.f32.mrb[0].mxu0
      %v1110 = vadd.f32 %v597, %v1109
      %v1111 = vpop.f32.mrb[0].mxu0
      %v1112 = vadd.f32 %v597, %v1111
      %v1113 = vpop.f32.mrb[0].mxu0
      %v1114 = vadd.f32 %v602, %v1113
      %v1115 = vpop.f32.mrb[0].mxu0
      %v1116 = vadd.f32 %v602, %v1115
      %1117 = vmatprep.mubr.bf16.mxu0 0
      %1118 = vmatmul.mubr.bf16.gmra.mrb[0].mxu0 %v789
      %v1119 = vpop.f32.mrb[0].mxu0
      %v1120 = vadd.f32 %v607, %v1119
      %v1121 = vpop.f32.mrb[0].mxu0
      %v1122 = vadd.f32 %v607, %v1121
      %v1123 = vpop.f32.mrb[0].mxu0
      %v1124 = vadd.f32 %v612, %v1123
      %v1125 = vpop.f32.mrb[0].mxu0
      %v1126 = vadd.f32 %v612, %v1125
      %1127 = vmatprep.mubr.bf16.mxu0 0
      %1128 = vmatmul.mubr.bf16.gmra.mrb[0].mxu0 %v792
      %v1129 = vpop.f32.mrb[0].mxu0
      %v1130 = vadd.f32 %v617, %v1129
      %v1131 = vpop.f32.mrb[0].mxu0
      %v1132 = vadd.f32 %v617, %v1131
      %v1133 = vpop.f32.mrb[0].mxu0
      %v1134 = vadd.f32 %v622, %v1133
      %v1135 = vpop.f32.mrb[0].mxu0
      %v1136 = vadd.f32 %v622, %v1135
      %1137 = vmatprep.mubr.bf16.mxu0 0
      %1138 = vmatmul.mubr.bf16.gmra.mrb[0].mxu0 %v795
      %v1139 = vpop.f32.mrb[0].mxu0
      %v1140 = vadd.f32 %v627, %v1139
      %v1141 = vpop.f32.mrb[0].mxu0
      %v1142 = vadd.f32 %v627, %v1141
      %v1143 = vpop.f32.mrb[0].mxu0
      %v1144 = vadd.f32 %v632, %v1143
      %v1145 = vpop.f32.mrb[0].mxu0
      %v1146 = vadd.f32 %v632, %v1145
      %1147 = vmatprep.mubr.bf16.mxu0 0
      %1148 = vmatmul.mubr.bf16.gmra.mrb[0].mxu0 %v798
      %v1149 = vpop.f32.mrb[0].mxu0
      %v1150 = vadd.f32 %v637, %v1149
      %v1151 = vpop.f32.mrb[0].mxu0
      %v1152 = vadd.f32 %v637, %v1151
      %v1153 = vpop.f32.mrb[0].mxu0
      %v1154 = vadd.f32 %v642, %v1153
      %v1155 = vpop.f32.mrb[0].mxu0
      %v1156 = vadd.f32 %v642, %v1155
      %1157 = vmatprep.mubr.bf16.mxu0 0
      %1158 = vmatmul.mubr.bf16.gmra.mrb[0].mxu0 %v801
      %v1159 = vpop.f32.mrb[0].mxu0
      %v1160 = vadd.f32 %v647, %v1159
      %v1161 = vpop.f32.mrb[0].mxu0
      %v1162 = vadd.f32 %v647, %v1161
      %v1163 = vpop.f32.mrb[0].mxu0
      %v1164 = vadd.f32 %v652, %v1163
      %v1165 = vpop.f32.mrb[0].mxu0
      %v1166 = vadd.f32 %v652, %v1165
      %1167 = vmatprep.mubr.bf16.mxu0 0
      %1168 = vmatmul.mubr.bf16.gmra.mrb[0].mxu0 %v804
      %v1169 = vpop.f32.mrb[0].mxu0
      %v1170 = vadd.f32 %v657, %v1169
      %v1171 = vpop.f32.mrb[0].mxu0
      %v1172 = vadd.f32 %v657, %v1171
      %v1173 = vpop.f32.mrb[0].mxu0
      %v1174 = vadd.f32 %v662, %v1173
      %v1175 = vpop.f32.mrb[0].mxu0
      %v1176 = vadd.f32 %v662, %v1175
      %1177 = vmatprep.mubr.bf16.mxu0 0
      %1178 = vmatmul.mubr.bf16.gmra.mrb[0].mxu0 %v807
      %v1179 = vpop.f32.mrb[0].mxu0
      %v1180 = vadd.f32 %v667, %v1179
      %v1181 = vpop.f32.mrb[0].mxu0
      %v1182 = vadd.f32 %v667, %v1181
      %v1183 = vpop.f32.mrb[0].mxu0
      %v1184 = vadd.f32 %v672, %v1183
      %v1185 = vpop.f32.mrb[0].mxu0
      %v1186 = vadd.f32 %v672, %v1185
      %1187 = vmatprep.mubr.bf16.mxu0 0
      %1188 = vmatmul.mubr.bf16.gmra.mrb[0].mxu0 %v810
      %v1189 = vpop.f32.mrb[0].mxu0
      %v1190 = vadd.f32 %v677, %v1189
      %v1191 = vpop.f32.mrb[0].mxu0
      %v1192 = vadd.f32 %v677, %v1191
      %v1193 = vpop.f32.mrb[0].mxu0
      %v1194 = vadd.f32 %v682, %v1193
      %v1195 = vpop.f32.mrb[0].mxu0
      %v1196 = vadd.f32 %v682, %v1195
      %1197 = vdwg.mxu0
      %1198 = vmatprep.subr.bf16.mxu0 %v458
      %1199 = vmatpush1.bf16.msra.mxu0 %v457
      %1200 = vmatprep.subr.bf16.mxu0 0
      %1201 = vmatpush1.bf16.msra.mxu0 0
      %1202 = vmatprep.subr.bf16.mxu0 0
      %1203 = vmatpush1.bf16.msra.mxu0 0
      %1204 = vmatprep.subr.bf16.mxu0 0
      %1205 = vmatpush1.bf16.msra.mxu0 0
      %1206 = vmatprep.subr.bf16.mxu0 0
      %1207 = vmatpush1.bf16.msra.mxu0 0
      %1208 = vmatprep.subr.bf16.mxu0 0
      %1209 = vmatpush1.bf16.msra.mxu0 0
      %1210 = vmatprep.subr.bf16.mxu0 0
      %1211 = vmatpush1.bf16.msra.mxu0 0
      %1212 = vmatprep.subr.bf16.mxu0 0
      %1213 = vmatpush1.bf16.msra.mxu0 0
      %1214 = vmatprep.subr.bf16.mxu0 0
      %1215 = vmatpush1.bf16.msra.mxu0 0
      %1216 = vmatprep.subr.bf16.mxu0 0
      %1217 = vmatpush1.bf16.msra.mxu0 0
      %1218 = vmatprep.subr.bf16.mxu0 0
      %1219 = vmatpush1.bf16.msra.mxu0 0
      %1220 = vmatprep.subr.bf16.mxu0 0
      %1221 = vmatpush1.bf16.msra.mxu0 0
      %1222 = vmatprep.subr.bf16.mxu0 0
      %1223 = vmatpush1.bf16.msra.mxu0 0
      %1224 = vmatprep.subr.bf16.mxu0 0
      %1225 = vmatpush1.bf16.msra.mxu0 0
      %1226 = vmatprep.subr.bf16.mxu0 0
      %1227 = vmatpush1.bf16.msra.mxu0 0
      %1228 = vmatprep.subr.bf16.mxu0 0
      %1229 = vmatpush1.bf16.msra.mxu0 0
      %1230 = vmatprep.mubr.bf16.mxu0 0
      %1231 = vmatmul.mubr.bf16.gmra.mrb[0].mxu0 %v765
      %v1232 = vpop.f32.mrb[0].mxu0
      %v1233 = vadd.f32 %v527, %v1232
      %v1234 = vpop.f32.mrb[0].mxu0
      %v1235 = vadd.f32 %v527, %v1234
      %v1236 = vpop.f32.mrb[0].mxu0
      %v1237 = vadd.f32 %v532, %v1236
      %v1238 = vpop.f32.mrb[0].mxu0
      %v1239 = vadd.f32 %v532, %v1238
      %1240 = vmatprep.mubr.bf16.mxu0 0
      %1241 = vmatmul.mubr.bf16.gmra.mrb[0].mxu0 %v768
      %v1242 = vpop.f32.mrb[0].mxu0
      %v1243 = vadd.f32 %v537, %v1242
      %v1244 = vpop.f32.mrb[0].mxu0
      %v1245 = vadd.f32 %v537, %v1244
      %v1246 = vpop.f32.mrb[0].mxu0
      %v1247 = vadd.f32 %v542, %v1246
      %v1248 = vpop.f32.mrb[0].mxu0
      %v1249 = vadd.f32 %v542, %v1248
      %1250 = vmatprep.mubr.bf16.mxu0 0
      %1251 = vmatmul.mubr.bf16.gmra.mrb[0].mxu0 %v771
      %v1252 = vpop.f32.mrb[0].mxu0
      %v1253 = vadd.f32 %v547, %v1252
      %v1254 = vpop.f32.mrb[0].mxu0
      %v1255 = vadd.f32 %v547, %v1254
      %v1256 = vpop.f32.mrb[0].mxu0
      %v1257 = vadd.f32 %v552, %v1256
      %v1258 = vpop.f32.mrb[0].mxu0
      %v1259 = vadd.f32 %v552, %v1258
      %1260 = vmatprep.mubr.bf16.mxu0 0
      %1261 = vmatmul.mubr.bf16.gmra.mrb[0].mxu0 %v774
      %v1262 = vpop.f32.mrb[0].mxu0
      %v1263 = vadd.f32 %v557, %v1262
      %v1264 = vpop.f32.mrb[0].mxu0
      %v1265 = vadd.f32 %v557, %v1264
      %v1266 = vpop.f32.mrb[0].mxu0
      %v1267 = vadd.f32 %v562, %v1266
      %v1268 = vpop.f32.mrb[0].mxu0
      %v1269 = vadd.f32 %v562, %v1268
      %1270 = vmatprep.mubr.bf16.mxu0 0
      %1271 = vmatmul.mubr.bf16.gmra.mrb[0].mxu0 %v777
      %v1272 = vpop.f32.mrb[0].mxu0
      %v1273 = vadd.f32 %v567, %v1272
      %v1274 = vpop.f32.mrb[0].mxu0
      %v1275 = vadd.f32 %v567, %v1274
      %v1276 = vpop.f32.mrb[0].mxu0
      %v1277 = vadd.f32 %v572, %v1276
      %v1278 = vpop.f32.mrb[0].mxu0
      %v1279 = vadd.f32 %v572, %v1278
      %1280 = vmatprep.mubr.bf16.mxu0 0
      %1281 = vmatmul.mubr.bf16.gmra.mrb[0].mxu0 %v780
      %v1282 = vpop.f32.mrb[0].mxu0
      %v1283 = vadd.f32 %v577, %v1282
      %v1284 = vpop.f32.mrb[0].mxu0
      %v1285 = vadd.f32 %v577, %v1284
      %v1286 = vpop.f32.mrb[0].mxu0
      %v1287 = vadd.f32 %v582, %v1286
      %v1288 = vpop.f32.mrb[0].mxu0
      %v1289 = vadd.f32 %v582, %v1288
      %1290 = vmatprep.mubr.bf16.mxu0 0
      %1291 = vmatmul.mubr.bf16.gmra.mrb[0].mxu0 %v783
      %v1292 = vpop.f32.mrb[0].mxu0
      %v1293 = vadd.f32 %v587, %v1292
      %v1294 = vpop.f32.mrb[0].mxu0
      %v1295 = vadd.f32 %v587, %v1294
      %v1296 = vpop.f32.mrb[0].mxu0
      %v1297 = vadd.f32 %v592, %v1296
      %v1298 = vpop.f32.mrb[0].mxu0
      %v1299 = vadd.f32 %v592, %v1298
      %1300 = vmatprep.mubr.bf16.mxu0 0
      %1301 = vmatmul.mubr.bf16.gmra.mrb[0].mxu0 %v786
      %v1302 = vpop.f32.mrb[0].mxu0
      %v1303 = vadd.f32 %v597, %v1302
      %v1304 = vpop.f32.mrb[0].mxu0
      %v1305 = vadd.f32 %v597, %v1304
      %v1306 = vpop.f32.mrb[0].mxu0
      %v1307 = vadd.f32 %v602, %v1306
      %v1308 = vpop.f32.mrb[0].mxu0
      %v1309 = vadd.f32 %v602, %v1308
      %1310 = vmatprep.mubr.bf16.mxu0 0
      %1311 = vmatmul.mubr.bf16.gmra.mrb[0].mxu0 %v789
      %v1312 = vpop.f32.mrb[0].mxu0
      %v1313 = vadd.f32 %v607, %v1312
      %v1314 = vpop.f32.mrb[0].mxu0
      %v1315 = vadd.f32 %v607, %v1314
      %v1316 = vpop.f32.mrb[0].mxu0
      %v1317 = vadd.f32 %v612, %v1316
      %v1318 = vpop.f32.mrb[0].mxu0
      %v1319 = vadd.f32 %v612, %v1318
      %1320 = vmatprep.mubr.bf16.mxu0 0
      %1321 = vmatmul.mubr.bf16.gmra.mrb[0].mxu0 %v792
      %v1322 = vpop.f32.mrb[0].mxu0
      %v1323 = vadd.f32 %v617, %v1322
      %v1324 = vpop.f32.mrb[0].mxu0
      %v1325 = vadd.f32 %v617, %v1324
      %v1326 = vpop.f32.mrb[0].mxu0
      %v1327 = vadd.f32 %v622, %v1326
      %v1328 = vpop.f32.mrb[0].mxu0
      %v1329 = vadd.f32 %v622, %v1328
      %1330 = vmatprep.mubr.bf16.mxu0 0
      %1331 = vmatmul.mubr.bf16.gmra.mrb[0].mxu0 %v795
      %v1332 = vpop.f32.mrb[0].mxu0
      %v1333 = vadd.f32 %v627, %v1332
      %v1334 = vpop.f32.mrb[0].mxu0
      %v1335 = vadd.f32 %v627, %v1334
      %v1336 = vpop.f32.mrb[0].mxu0
      %v1337 = vadd.f32 %v632, %v1336
      %v1338 = vpop.f32.mrb[0].mxu0
      %v1339 = vadd.f32 %v632, %v1338
      %1340 = vmatprep.mubr.bf16.mxu0 0
      %1341 = vmatmul.mubr.bf16.gmra.mrb[0].mxu0 %v798
      %v1342 = vpop.f32.mrb[0].mxu0
      %v1343 = vadd.f32 %v637, %v1342
      %v1344 = vpop.f32.mrb[0].mxu0
      %v1345 = vadd.f32 %v637, %v1344
      %v1346 = vpop.f32.mrb[0].mxu0
      %v1347 = vadd.f32 %v642, %v1346
      %v1348 = vpop.f32.mrb[0].mxu0
      %v1349 = vadd.f32 %v642, %v1348
      %1350 = vmatprep.mubr.bf16.mxu0 0
      %1351 = vmatmul.mubr.bf16.gmra.mrb[0].mxu0 %v801
      %v1352 = vpop.f32.mrb[0].mxu0
      %v1353 = vadd.f32 %v647, %v1352
      %v1354 = vpop.f32.mrb[0].mxu0
      %v1355 = vadd.f32 %v647, %v1354
      %v1356 = vpop.f32.mrb[0].mxu0
      %v1357 = vadd.f32 %v652, %v1356
      %v1358 = vpop.f32.mrb[0].mxu0
      %v1359 = vadd.f32 %v652, %v1358
      %1360 = vmatprep.mubr.bf16.mxu0 0
      %1361 = vmatmul.mubr.bf16.gmra.mrb[0].mxu0 %v804
      %v1362 = vpop.f32.mrb[0].mxu0
      %v1363 = vadd.f32 %v657, %v1362
      %v1364 = vpop.f32.mrb[0].mxu0
      %v1365 = vadd.f32 %v657, %v1364
      %v1366 = vpop.f32.mrb[0].mxu0
      %v1367 = vadd.f32 %v662, %v1366
      %v1368 = vpop.f32.mrb[0].mxu0
      %v1369 = vadd.f32 %v662, %v1368
      %1370 = vmatprep.mubr.bf16.mxu0 0
      %1371 = vmatmul.mubr.bf16.gmra.mrb[0].mxu0 %v807
      %v1372 = vpop.f32.mrb[0].mxu0
      %v1373 = vadd.f32 %v667, %v1372
      %v1374 = vpop.f32.mrb[0].mxu0
      %v1375 = vadd.f32 %v667, %v1374
      %v1376 = vpop.f32.mrb[0].mxu0
      %v1377 = vadd.f32 %v672, %v1376
      %v1378 = vpop.f32.mrb[0].mxu0
      %v1379 = vadd.f32 %v672, %v1378
      %1380 = vmatprep.mubr.bf16.mxu0 0
      %1381 = vmatmul.mubr.bf16.gmra.mrb[0].mxu0 %v810
      %v1382 = vpop.f32.mrb[0].mxu0
      %v1383 = vadd.f32 %v677, %v1382
      %v1384 = vpop.f32.mrb[0].mxu0
      %v1385 = vadd.f32 %v677, %v1384
      %v1386 = vpop.f32.mrb[0].mxu0
      %v1387 = vadd.f32 %v682, %v1386
      %v1388 = vpop.f32.mrb[0].mxu0
      %v1389 = vadd.f32 %v682, %v1388
      %1390 = vdwg.mxu0
      %1391 = vmatprep.subr.bf16.mxu0 0
      %1392 = vmatpush1.bf16.msra.mxu0 %v459
      %1393 = vmatprep.subr.bf16.mxu0 0
      %1394 = vmatpush1.bf16.msra.mxu0 0
      %1395 = vmatprep.subr.bf16.mxu0 0
      %1396 = vmatpush1.bf16.msra.mxu0 0
      %1397 = vmatprep.subr.bf16.mxu0 0
      %1398 = vmatpush1.bf16.msra.mxu0 0
      %1399 = vmatprep.subr.bf16.mxu0 0
      %1400 = vmatpush1.bf16.msra.mxu0 0
      %1401 = vmatprep.subr.bf16.mxu0 0
      %1402 = vmatpush1.bf16.msra.mxu0 0
      %1403 = vmatprep.subr.bf16.mxu0 0
      %1404 = vmatpush1.bf16.msra.mxu0 0
      %1405 = vmatprep.subr.bf16.mxu0 0
      %1406 = vmatpush1.bf16.msra.mxu0 0
      %1407 = vmatprep.subr.bf16.mxu0 0
      %1408 = vmatpush1.bf16.msra.mxu0 0
      %1409 = vmatprep.subr.bf16.mxu0 0
      %1410 = vmatpush1.bf16.msra.mxu0 0
      %1411 = vmatprep.subr.bf16.mxu0 0
      %1412 = vmatpush1.bf16.msra.mxu0 0
      %1413 = vmatprep.subr.bf16.mxu0 0
      %1414 = vmatpush1.bf16.msra.mxu0 0
      %1415 = vmatprep.subr.bf16.mxu0 0
      %1416 = vmatpush1.bf16.msra.mxu0 0
      %1417 = vmatprep.subr.bf16.mxu0 0
      %1418 = vmatpush1.bf16.msra.mxu0 0
      %1419 = vmatprep.subr.bf16.mxu0 0
      %1420 = vmatpush1.bf16.msra.mxu0 0
      %1421 = vmatprep.subr.bf16.mxu0 0
      %1422 = vmatpush1.bf16.msra.mxu0 0
      %1423 = vmatprep.mubr.bf16.mxu0 0
      %1424 = vmatmul.mubr.bf16.gmra.mrb[0].mxu0 %v765
      %v1425 = vpop.f32.mrb[0].mxu0
      %v1426 = vadd.f32 %v527, %v1425
      %v1427 = vpop.f32.mrb[0].mxu0
      %v1428 = vpop.f32.mrb[0].mxu0
      %v1429 = vadd.f32 %v532, %v1428
      %v1430 = vpop.f32.mrb[0].mxu0
      %1431 = vmatprep.mubr.bf16.mxu0 0
      %1432 = vmatmul.mubr.bf16.gmra.mrb[0].mxu0 %v768
      %v1433 = vpop.f32.mrb[0].mxu0
      %v1434 = vadd.f32 %v537, %v1433
      %v1435 = vpop.f32.mrb[0].mxu0
      %v1436 = vpop.f32.mrb[0].mxu0
      %v1437 = vadd.f32 %v542, %v1436
      %v1438 = vpop.f32.mrb[0].mxu0
      %1439 = vmatprep.mubr.bf16.mxu0 0
      %1440 = vmatmul.mubr.bf16.gmra.mrb[0].mxu0 %v771
      %v1441 = vpop.f32.mrb[0].mxu0
      %v1442 = vadd.f32 %v547, %v1441
      %v1443 = vpop.f32.mrb[0].mxu0
      %v1444 = vpop.f32.mrb[0].mxu0
      %v1445 = vadd.f32 %v552, %v1444
      %v1446 = vpop.f32.mrb[0].mxu0
      %1447 = vmatprep.mubr.bf16.mxu0 0
      %1448 = vmatmul.mubr.bf16.gmra.mrb[0].mxu0 %v774
      %v1449 = vpop.f32.mrb[0].mxu0
      %v1450 = vadd.f32 %v557, %v1449
      %v1451 = vpop.f32.mrb[0].mxu0
      %v1452 = vpop.f32.mrb[0].mxu0
      %v1453 = vadd.f32 %v562, %v1452
      %v1454 = vpop.f32.mrb[0].mxu0
      %1455 = vmatprep.mubr.bf16.mxu0 0
      %1456 = vmatmul.mubr.bf16.gmra.mrb[0].mxu0 %v777
      %v1457 = vpop.f32.mrb[0].mxu0
      %v1458 = vadd.f32 %v567, %v1457
      %v1459 = vpop.f32.mrb[0].mxu0
      %v1460 = vpop.f32.mrb[0].mxu0
      %v1461 = vadd.f32 %v572, %v1460
      %v1462 = vpop.f32.mrb[0].mxu0
      %1463 = vmatprep.mubr.bf16.mxu0 0
      %1464 = vmatmul.mubr.bf16.gmra.mrb[0].mxu0 %v780
      %v1465 = vpop.f32.mrb[0].mxu0
      %v1466 = vadd.f32 %v577, %v1465
      %v1467 = vpop.f32.mrb[0].mxu0
      %v1468 = vpop.f32.mrb[0].mxu0
      %v1469 = vadd.f32 %v582, %v1468
      %v1470 = vpop.f32.mrb[0].mxu0
      %1471 = vmatprep.mubr.bf16.mxu0 0
      %1472 = vmatmul.mubr.bf16.gmra.mrb[0].mxu0 %v783
      %v1473 = vpop.f32.mrb[0].mxu0
      %v1474 = vadd.f32 %v587, %v1473
      %v1475 = vpop.f32.mrb[0].mxu0
      %v1476 = vpop.f32.mrb[0].mxu0
      %v1477 = vadd.f32 %v592, %v1476
      %v1478 = vpop.f32.mrb[0].mxu0
      %1479 = vmatprep.mubr.bf16.mxu0 0
      %1480 = vmatmul.mubr.bf16.gmra.mrb[0].mxu0 %v786
      %v1481 = vpop.f32.mrb[0].mxu0
      %v1482 = vadd.f32 %v597, %v1481
      %v1483 = vpop.f32.mrb[0].mxu0
      %v1484 = vpop.f32.mrb[0].mxu0
      %v1485 = vadd.f32 %v602, %v1484
      %v1486 = vpop.f32.mrb[0].mxu0
      %1487 = vmatprep.mubr.bf16.mxu0 0
      %1488 = vmatmul.mubr.bf16.gmra.mrb[0].mxu0 %v789
      %v1489 = vpop.f32.mrb[0].mxu0
      %v1490 = vadd.f32 %v607, %v1489
      %v1491 = vpop.f32.mrb[0].mxu0
      %v1492 = vpop.f32.mrb[0].mxu0
      %v1493 = vadd.f32 %v612, %v1492
      %v1494 = vpop.f32.mrb[0].mxu0
      %1495 = vmatprep.mubr.bf16.mxu0 0
      %1496 = vmatmul.mubr.bf16.gmra.mrb[0].mxu0 %v792
      %v1497 = vpop.f32.mrb[0].mxu0
      %v1498 = vadd.f32 %v617, %v1497
      %v1499 = vpop.f32.mrb[0].mxu0
      %v1500 = vpop.f32.mrb[0].mxu0
      %v1501 = vadd.f32 %v622, %v1500
      %v1502 = vpop.f32.mrb[0].mxu0
      %1503 = vmatprep.mubr.bf16.mxu0 0
      %1504 = vmatmul.mubr.bf16.gmra.mrb[0].mxu0 %v795
      %v1505 = vpop.f32.mrb[0].mxu0
      %v1506 = vadd.f32 %v627, %v1505
      %v1507 = vpop.f32.mrb[0].mxu0
      %v1508 = vpop.f32.mrb[0].mxu0
      %v1509 = vadd.f32 %v632, %v1508
      %v1510 = vpop.f32.mrb[0].mxu0
      %1511 = vmatprep.mubr.bf16.mxu0 0
      %1512 = vmatmul.mubr.bf16.gmra.mrb[0].mxu0 %v798
      %v1513 = vpop.f32.mrb[0].mxu0
      %v1514 = vadd.f32 %v637, %v1513
      %v1515 = vpop.f32.mrb[0].mxu0
      %v1516 = vpop.f32.mrb[0].mxu0
      %v1517 = vadd.f32 %v642, %v1516
      %v1518 = vpop.f32.mrb[0].mxu0
      %1519 = vmatprep.mubr.bf16.mxu0 0
      %1520 = vmatmul.mubr.bf16.gmra.mrb[0].mxu0 %v801
      %v1521 = vpop.f32.mrb[0].mxu0
      %v1522 = vadd.f32 %v647, %v1521
      %v1523 = vpop.f32.mrb[0].mxu0
      %v1524 = vpop.f32.mrb[0].mxu0
      %v1525 = vadd.f32 %v652, %v1524
      %v1526 = vpop.f32.mrb[0].mxu0
      %1527 = vmatprep.mubr.bf16.mxu0 0
      %1528 = vmatmul.mubr.bf16.gmra.mrb[0].mxu0 %v804
      %v1529 = vpop.f32.mrb[0].mxu0
      %v1530 = vadd.f32 %v657, %v1529
      %v1531 = vpop.f32.mrb[0].mxu0
      %v1532 = vpop.f32.mrb[0].mxu0
      %v1533 = vadd.f32 %v662, %v1532
      %v1534 = vpop.f32.mrb[0].mxu0
      %1535 = vmatprep.mubr.bf16.mxu0 0
      %1536 = vmatmul.mubr.bf16.gmra.mrb[0].mxu0 %v807
      %v1537 = vpop.f32.mrb[0].mxu0
      %v1538 = vadd.f32 %v667, %v1537
      %v1539 = vpop.f32.mrb[0].mxu0
      %v1540 = vpop.f32.mrb[0].mxu0
      %v1541 = vadd.f32 %v672, %v1540
      %v1542 = vpop.f32.mrb[0].mxu0
      %1543 = vmatprep.mubr.bf16.mxu0 0
      %1544 = vmatmul.mubr.bf16.gmra.mrb[0].mxu0 %v810
      %v1545 = vpop.f32.mrb[0].mxu0
      %v1546 = vadd.f32 %v677, %v1545
      %v1547 = vpop.f32.mrb[0].mxu0
      %v1548 = vpop.f32.mrb[0].mxu0
      %v1549 = vadd.f32 %v682, %v1548
      %v1550 = vpop.f32.mrb[0].mxu0
      %1551 = vdwg.mxu0
      %v1552 = vmax.f32 %v847, 0.0
      %v1553 = vmax.f32 %v849, 0.0
      %v1554 = vmax.f32 %v1040, 0.0
      %v1555 = vmax.f32 %v1042, 0.0
      %v1556 = vmax.f32 %v1233, 0.0
      %v1557 = vmax.f32 %v1235, 0.0
      %v1558 = vmax.f32 %v1426, 0.0
      %v1559 = vmax.f32 %v851, 0.0
      %v1560 = vmax.f32 %v853, 0.0
      %v1561 = vmax.f32 %v1044, 0.0
      %v1562 = vmax.f32 %v1046, 0.0
      %v1563 = vmax.f32 %v1237, 0.0
      %v1564 = vmax.f32 %v1239, 0.0
      %v1565 = vmax.f32 %v1429, 0.0
      %v1566 = vmax.f32 %v857, 0.0
      %v1567 = vmax.f32 %v859, 0.0
      %v1568 = vmax.f32 %v1050, 0.0
      %v1569 = vmax.f32 %v1052, 0.0
      %v1570 = vmax.f32 %v1243, 0.0
      %v1571 = vmax.f32 %v1245, 0.0
      %v1572 = vmax.f32 %v1434, 0.0
      %v1573 = vmax.f32 %v861, 0.0
      %v1574 = vmax.f32 %v863, 0.0
      %v1575 = vmax.f32 %v1054, 0.0
      %v1576 = vmax.f32 %v1056, 0.0
      %v1577 = vmax.f32 %v1247, 0.0
      %v1578 = vmax.f32 %v1249, 0.0
      %v1579 = vmax.f32 %v1437, 0.0
      %v1580 = vmax.f32 %v867, 0.0
      %v1581 = vmax.f32 %v869, 0.0
      %v1582 = vmax.f32 %v1060, 0.0
      %v1583 = vmax.f32 %v1062, 0.0
      %v1584 = vmax.f32 %v1253, 0.0
      %v1585 = vmax.f32 %v1255, 0.0
      %v1586 = vmax.f32 %v1442, 0.0
      %v1587 = vmax.f32 %v871, 0.0
      %v1588 = vmax.f32 %v873, 0.0
      %v1589 = vmax.f32 %v1064, 0.0
      %v1590 = vmax.f32 %v1066, 0.0
      %v1591 = vmax.f32 %v1257, 0.0
      %v1592 = vmax.f32 %v1259, 0.0
      %v1593 = vmax.f32 %v1445, 0.0
      %v1594 = vmax.f32 %v877, 0.0
      %v1595 = vmax.f32 %v879, 0.0
      %v1596 = vmax.f32 %v1070, 0.0
      %v1597 = vmax.f32 %v1072, 0.0
      %v1598 = vmax.f32 %v1263, 0.0
      %v1599 = vmax.f32 %v1265, 0.0
      %v1600 = vmax.f32 %v1450, 0.0
      %v1601 = vmax.f32 %v881, 0.0
      %v1602 = vmax.f32 %v883, 0.0
      %v1603 = vmax.f32 %v1074, 0.0
      %v1604 = vmax.f32 %v1076, 0.0
      %v1605 = vmax.f32 %v1267, 0.0
      %v1606 = vmax.f32 %v1269, 0.0
      %v1607 = vmax.f32 %v1453, 0.0
      %v1608 = vmax.f32 %v887, 0.0
      %v1609 = vmax.f32 %v889, 0.0
      %v1610 = vmax.f32 %v1080, 0.0
      %v1611 = vmax.f32 %v1082, 0.0
      %v1612 = vmax.f32 %v1273, 0.0
      %v1613 = vmax.f32 %v1275, 0.0
      %v1614 = vmax.f32 %v1458, 0.0
      %v1615 = vmax.f32 %v891, 0.0
      %v1616 = vmax.f32 %v893, 0.0
      %v1617 = vmax.f32 %v1084, 0.0
      %v1618 = vmax.f32 %v1086, 0.0
      %v1619 = vmax.f32 %v1277, 0.0
      %v1620 = vmax.f32 %v1279, 0.0
      %v1621 = vmax.f32 %v1461, 0.0
      %v1622 = vmax.f32 %v897, 0.0
      %v1623 = vmax.f32 %v899, 0.0
      %v1624 = vmax.f32 %v1090, 0.0
      %v1625 = vmax.f32 %v1092, 0.0
      %v1626 = vmax.f32 %v1283, 0.0
      %v1627 = vmax.f32 %v1285, 0.0
      %v1628 = vmax.f32 %v1466, 0.0
      %v1629 = vmax.f32 %v901, 0.0
      %v1630 = vmax.f32 %v903, 0.0
      %v1631 = vmax.f32 %v1094, 0.0
      %v1632 = vmax.f32 %v1096, 0.0
      %v1633 = vmax.f32 %v1287, 0.0
      %v1634 = vmax.f32 %v1289, 0.0
      %v1635 = vmax.f32 %v1469, 0.0
      %v1636 = vmax.f32 %v907, 0.0
      %v1637 = vmax.f32 %v909, 0.0
      %v1638 = vmax.f32 %v1100, 0.0
      %v1639 = vmax.f32 %v1102, 0.0
      %v1640 = vmax.f32 %v1293, 0.0
      %v1641 = vmax.f32 %v1295, 0.0
      %v1642 = vmax.f32 %v1474, 0.0
      %v1643 = vmax.f32 %v911, 0.0
      %v1644 = vmax.f32 %v913, 0.0
      %v1645 = vmax.f32 %v1104, 0.0
      %v1646 = vmax.f32 %v1106, 0.0
      %v1647 = vmax.f32 %v1297, 0.0
      %v1648 = vmax.f32 %v1299, 0.0
      %v1649 = vmax.f32 %v1477, 0.0
      %v1650 = vmax.f32 %v917, 0.0
      %v1651 = vmax.f32 %v919, 0.0
      %v1652 = vmax.f32 %v1110, 0.0
      %v1653 = vmax.f32 %v1112, 0.0
      %v1654 = vmax.f32 %v1303, 0.0
      %v1655 = vmax.f32 %v1305, 0.0
      %v1656 = vmax.f32 %v1482, 0.0
      %v1657 = vmax.f32 %v921, 0.0
      %v1658 = vmax.f32 %v923, 0.0
      %v1659 = vmax.f32 %v1114, 0.0
      %v1660 = vmax.f32 %v1116, 0.0
      %v1661 = vmax.f32 %v1307, 0.0
      %v1662 = vmax.f32 %v1309, 0.0
      %v1663 = vmax.f32 %v1485, 0.0
      %v1664 = vmax.f32 %v927, 0.0
      %v1665 = vmax.f32 %v929, 0.0
      %v1666 = vmax.f32 %v1120, 0.0
      %v1667 = vmax.f32 %v1122, 0.0
      %v1668 = vmax.f32 %v1313, 0.0
      %v1669 = vmax.f32 %v1315, 0.0
      %v1670 = vmax.f32 %v1490, 0.0
      %v1671 = vmax.f32 %v931, 0.0
      %v1672 = vmax.f32 %v933, 0.0
      %v1673 = vmax.f32 %v1124, 0.0
      %v1674 = vmax.f32 %v1126, 0.0
      %v1675 = vmax.f32 %v1317, 0.0
      %v1676 = vmax.f32 %v1319, 0.0
      %v1677 = vmax.f32 %v1493, 0.0
      %v1678 = vmax.f32 %v937, 0.0
      %v1679 = vmax.f32 %v939, 0.0
      %v1680 = vmax.f32 %v1130, 0.0
      %v1681 = vmax.f32 %v1132, 0.0
      %v1682 = vmax.f32 %v1323, 0.0
      %v1683 = vmax.f32 %v1325, 0.0
      %v1684 = vmax.f32 %v1498, 0.0
      %v1685 = vmax.f32 %v941, 0.0
      %v1686 = vmax.f32 %v943, 0.0
      %v1687 = vmax.f32 %v1134, 0.0
      %v1688 = vmax.f32 %v1136, 0.0
      %v1689 = vmax.f32 %v1327, 0.0
      %v1690 = vmax.f32 %v1329, 0.0
      %v1691 = vmax.f32 %v1501, 0.0
      %v1692 = vmax.f32 %v947, 0.0
      %v1693 = vmax.f32 %v949, 0.0
      %v1694 = vmax.f32 %v1140, 0.0
      %v1695 = vmax.f32 %v1142, 0.0
      %v1696 = vmax.f32 %v1333, 0.0
      %v1697 = vmax.f32 %v1335, 0.0
      %v1698 = vmax.f32 %v1506, 0.0
      %v1699 = vmax.f32 %v951, 0.0
      %v1700 = vmax.f32 %v953, 0.0
      %v1701 = vmax.f32 %v1144, 0.0
      %v1702 = vmax.f32 %v1146, 0.0
      %v1703 = vmax.f32 %v1337, 0.0
      %v1704 = vmax.f32 %v1339, 0.0
      %v1705 = vmax.f32 %v1509, 0.0
      %v1706 = vmax.f32 %v957, 0.0
      %v1707 = vmax.f32 %v959, 0.0
      %v1708 = vmax.f32 %v1150, 0.0
      %v1709 = vmax.f32 %v1152, 0.0
      %v1710 = vmax.f32 %v1343, 0.0
      %v1711 = vmax.f32 %v1345, 0.0
      %v1712 = vmax.f32 %v1514, 0.0
      %v1713 = vmax.f32 %v961, 0.0
      %v1714 = vmax.f32 %v963, 0.0
      %v1715 = vmax.f32 %v1154, 0.0
      %v1716 = vmax.f32 %v1156, 0.0
      %v1717 = vmax.f32 %v1347, 0.0
      %v1718 = vmax.f32 %v1349, 0.0
      %v1719 = vmax.f32 %v1517, 0.0
      %v1720 = vmax.f32 %v967, 0.0
      %v1721 = vmax.f32 %v969, 0.0
      %v1722 = vmax.f32 %v1160, 0.0
      %v1723 = vmax.f32 %v1162, 0.0
      %v1724 = vmax.f32 %v1353, 0.0
      %v1725 = vmax.f32 %v1355, 0.0
      %v1726 = vmax.f32 %v1522, 0.0
      %v1727 = vmax.f32 %v971, 0.0
      %v1728 = vmax.f32 %v973, 0.0
      %v1729 = vmax.f32 %v1164, 0.0
      %v1730 = vmax.f32 %v1166, 0.0
      %v1731 = vmax.f32 %v1357, 0.0
      %v1732 = vmax.f32 %v1359, 0.0
      %v1733 = vmax.f32 %v1525, 0.0
      %v1734 = vmax.f32 %v977, 0.0
      %v1735 = vmax.f32 %v979, 0.0
      %v1736 = vmax.f32 %v1170, 0.0
      %v1737 = vmax.f32 %v1172, 0.0
      %v1738 = vmax.f32 %v1363, 0.0
      %v1739 = vmax.f32 %v1365, 0.0
      %v1740 = vmax.f32 %v1530, 0.0
      %v1741 = vmax.f32 %v981, 0.0
      %v1742 = vmax.f32 %v983, 0.0
      %v1743 = vmax.f32 %v1174, 0.0
      %v1744 = vmax.f32 %v1176, 0.0
      %v1745 = vmax.f32 %v1367, 0.0
      %v1746 = vmax.f32 %v1369, 0.0
      %v1747 = vmax.f32 %v1533, 0.0
      %v1748 = vmax.f32 %v987, 0.0
      %v1749 = vmax.f32 %v989, 0.0
      %v1750 = vmax.f32 %v1180, 0.0
      %v1751 = vmax.f32 %v1182, 0.0
      %v1752 = vmax.f32 %v1373, 0.0
      %v1753 = vmax.f32 %v1375, 0.0
      %v1754 = vmax.f32 %v1538, 0.0
      %v1755 = vmax.f32 %v991, 0.0
      %v1756 = vmax.f32 %v993, 0.0
      %v1757 = vmax.f32 %v1184, 0.0
      %v1758 = vmax.f32 %v1186, 0.0
      %v1759 = vmax.f32 %v1377, 0.0
      %v1760 = vmax.f32 %v1379, 0.0
      %v1761 = vmax.f32 %v1541, 0.0
      %v1762 = vmax.f32 %v997, 0.0
      %v1763 = vmax.f32 %v999, 0.0
      %v1764 = vmax.f32 %v1190, 0.0
      %v1765 = vmax.f32 %v1192, 0.0
      %v1766 = vmax.f32 %v1383, 0.0
      %v1767 = vmax.f32 %v1385, 0.0
      %v1768 = vmax.f32 %v1546, 0.0
      %v1769 = vmax.f32 %v1001, 0.0
      %v1770 = vmax.f32 %v1003, 0.0
      %v1771 = vmax.f32 %v1194, 0.0
      %v1772 = vmax.f32 %v1196, 0.0
      %v1773 = vmax.f32 %v1387, 0.0
      %v1774 = vmax.f32 %v1389, 0.0
      %v1775 = vmax.f32 %v1549, 0.0
      %v1776 = vpack.c.bf16 %v1559, %v1552
      %v1777 = vpack.c.bf16 %v1560, %v1553
      %v1778 = vpack.c.bf16 %v1561, %v1554
      %v1779 = vpack.c.bf16 %v1562, %v1555
      %v1780 = vpack.c.bf16 %v1563, %v1556
      %v1781 = vpack.c.bf16 %v1564, %v1557
      %v1782 = vpack.c.bf16 %v1565, %v1558
      %v1783 = vpack.c.bf16 %v1573, %v1566
      %v1784 = vpack.c.bf16 %v1574, %v1567
      %v1785 = vpack.c.bf16 %v1575, %v1568
      %v1786 = vpack.c.bf16 %v1576, %v1569
      %v1787 = vpack.c.bf16 %v1577, %v1570
      %v1788 = vpack.c.bf16 %v1578, %v1571
      %v1789 = vpack.c.bf16 %v1579, %v1572
      %v1790 = vpack.c.bf16 %v1587, %v1580
      %v1791 = vpack.c.bf16 %v1588, %v1581
      %v1792 = vpack.c.bf16 %v1589, %v1582
      %v1793 = vpack.c.bf16 %v1590, %v1583
      %v1794 = vpack.c.bf16 %v1591, %v1584
      %v1795 = vpack.c.bf16 %v1592, %v1585
      %v1796 = vpack.c.bf16 %v1593, %v1586
      %v1797 = vpack.c.bf16 %v1601, %v1594
      %v1798 = vpack.c.bf16 %v1602, %v1595
      %v1799 = vpack.c.bf16 %v1603, %v1596
      %v1800 = vpack.c.bf16 %v1604, %v1597
      %v1801 = vpack.c.bf16 %v1605, %v1598
      %v1802 = vpack.c.bf16 %v1606, %v1599
      %v1803 = vpack.c.bf16 %v1607, %v1600
      %v1804 = vpack.c.bf16 %v1615, %v1608
      %v1805 = vpack.c.bf16 %v1616, %v1609
      %v1806 = vpack.c.bf16 %v1617, %v1610
      %v1807 = vpack.c.bf16 %v1618, %v1611
      %v1808 = vpack.c.bf16 %v1619, %v1612
      %v1809 = vpack.c.bf16 %v1620, %v1613
      %v1810 = vpack.c.bf16 %v1621, %v1614
      %v1811 = vpack.c.bf16 %v1629, %v1622
      %v1812 = vpack.c.bf16 %v1630, %v1623
      %v1813 = vpack.c.bf16 %v1631, %v1624
      %v1814 = vpack.c.bf16 %v1632, %v1625
      %v1815 = vpack.c.bf16 %v1633, %v1626
      %v1816 = vpack.c.bf16 %v1634, %v1627
      %v1817 = vpack.c.bf16 %v1635, %v1628
      %v1818 = vpack.c.bf16 %v1643, %v1636
      %v1819 = vpack.c.bf16 %v1644, %v1637
      %v1820 = vpack.c.bf16 %v1645, %v1638
      %v1821 = vpack.c.bf16 %v1646, %v1639
      %v1822 = vpack.c.bf16 %v1647, %v1640
      %v1823 = vpack.c.bf16 %v1648, %v1641
      %v1824 = vpack.c.bf16 %v1649, %v1642
      %v1825 = vpack.c.bf16 %v1657, %v1650
      %v1826 = vpack.c.bf16 %v1658, %v1651
      %v1827 = vpack.c.bf16 %v1659, %v1652
      %v1828 = vpack.c.bf16 %v1660, %v1653
      %v1829 = vpack.c.bf16 %v1661, %v1654
      %v1830 = vpack.c.bf16 %v1662, %v1655
      %v1831 = vpack.c.bf16 %v1663, %v1656
      %v1832 = vpack.c.bf16 %v1671, %v1664
      %v1833 = vpack.c.bf16 %v1672, %v1665
      %v1834 = vpack.c.bf16 %v1673, %v1666
      %v1835 = vpack.c.bf16 %v1674, %v1667
      %v1836 = vpack.c.bf16 %v1675, %v1668
      %v1837 = vpack.c.bf16 %v1676, %v1669
      %v1838 = vpack.c.bf16 %v1677, %v1670
      %v1839 = vpack.c.bf16 %v1685, %v1678
      %v1840 = vpack.c.bf16 %v1686, %v1679
      %v1841 = vpack.c.bf16 %v1687, %v1680
      %v1842 = vpack.c.bf16 %v1688, %v1681
      %v1843 = vpack.c.bf16 %v1689, %v1682
      %v1844 = vpack.c.bf16 %v1690, %v1683
      %v1845 = vpack.c.bf16 %v1691, %v1684
      %v1846 = vpack.c.bf16 %v1699, %v1692
      %v1847 = vpack.c.bf16 %v1700, %v1693
      %v1848 = vpack.c.bf16 %v1701, %v1694
      %v1849 = vpack.c.bf16 %v1702, %v1695
      %v1850 = vpack.c.bf16 %v1703, %v1696
      %v1851 = vpack.c.bf16 %v1704, %v1697
      %v1852 = vpack.c.bf16 %v1705, %v1698
      %v1853 = vpack.c.bf16 %v1713, %v1706
      %v1854 = vpack.c.bf16 %v1714, %v1707
      %v1855 = vpack.c.bf16 %v1715, %v1708
      %v1856 = vpack.c.bf16 %v1716, %v1709
      %v1857 = vpack.c.bf16 %v1717, %v1710
      %v1858 = vpack.c.bf16 %v1718, %v1711
      %v1859 = vpack.c.bf16 %v1719, %v1712
      %v1860 = vpack.c.bf16 %v1727, %v1720
      %v1861 = vpack.c.bf16 %v1728, %v1721
      %v1862 = vpack.c.bf16 %v1729, %v1722
      %v1863 = vpack.c.bf16 %v1730, %v1723
      %v1864 = vpack.c.bf16 %v1731, %v1724
      %v1865 = vpack.c.bf16 %v1732, %v1725
      %v1866 = vpack.c.bf16 %v1733, %v1726
      %v1867 = vpack.c.bf16 %v1741, %v1734
      %v1868 = vpack.c.bf16 %v1742, %v1735
      %v1869 = vpack.c.bf16 %v1743, %v1736
      %v1870 = vpack.c.bf16 %v1744, %v1737
      %v1871 = vpack.c.bf16 %v1745, %v1738
      %v1872 = vpack.c.bf16 %v1746, %v1739
      %v1873 = vpack.c.bf16 %v1747, %v1740
      %v1874 = vpack.c.bf16 %v1755, %v1748
      %v1875 = vpack.c.bf16 %v1756, %v1749
      %v1876 = vpack.c.bf16 %v1757, %v1750
      %v1877 = vpack.c.bf16 %v1758, %v1751
      %v1878 = vpack.c.bf16 %v1759, %v1752
      %v1879 = vpack.c.bf16 %v1760, %v1753
      %v1880 = vpack.c.bf16 %v1761, %v1754
      %v1881 = vpack.c.bf16 %v1769, %v1762
      %v1882 = vpack.c.bf16 %v1770, %v1763
      %v1883 = vpack.c.bf16 %v1771, %v1764
      %v1884 = vpack.c.bf16 %v1772, %v1765
      %v1885 = vpack.c.bf16 %v1773, %v1766
      %v1886 = vpack.c.bf16 %v1774, %v1767
      %v1887 = vpack.c.bf16 %v1775, %v1768
      %v1888 = vld [vmem:[%s3] sm:$0xff]
      %v1889 = vld [vmem:[%s3 + $0x8] sm:$0xff]
      %v1890 = vld [vmem:[%s3 + $0x10] sm:$0xff]
      %v1891 = vld [vmem:[%s3 + $0x18] sm:$0xff]
      %v1892 = vld [vmem:[%s4] sm:$0xff]
      %v1893 = vld [vmem:[%s4 + $0x8] sm:$0xff]
      %v1894 = vld [vmem:[%s4 + $0x10] sm:$0xff]
      %v1895 = vld [vmem:[%s4 + $0x18] sm:$0xff]
      %1897 = vset.pattern.permute.xlu0 0
      %1898 = vperm.xlu0 %1897, %v1892
      %v1899 = vpop.permute.xlu0 %1898
      %1902 = vset.pattern.permute.xlu0 0
      %1903 = vperm.xlu0 %1902, %v1893
      %v1904 = vpop.permute.xlu0 %1903
      %1907 = vset.pattern.permute.xlu0 0
      %1908 = vperm.xlu0 %1907, %v1894
      %v1909 = vpop.permute.xlu0 %1908
      %1912 = vset.pattern.permute.xlu0 0
      %1913 = vperm.xlu0 %1912, %v1895
      %v1914 = vpop.permute.xlu0 %1913
      %v1920 = vunpack.c.l.b16 %v1888
      %v1921 = vunpack.c.h.b16 %v1888
      %v1922 = vunpack.c.l.b16 %v1889
      %v1923 = vunpack.c.h.b16 %v1889
      %v1924 = vunpack.c.l.b16 %v1890
      %v1925 = vunpack.c.h.b16 %v1890
      %v1926 = vunpack.c.l.b16 %v1891
      %v1927 = vunpack.c.h.b16 %v1891
      %v1928 = vpack.c.b16 %v1922, %v1920
      %v1929 = vpack.c.b16 %v1923, %v1921
      %v1930 = vpack.c.b16 %v1926, %v1924
      %v1931 = vpack.c.b16 %v1927, %v1925
      %1936 = vmatprep.subr.bf16.mxu0 %v1777
      %1937 = vmatpush1.bf16.msra.mxu0 %v1776
      %1938 = vmatprep.subr.bf16.mxu0 %v1784
      %1939 = vmatpush1.bf16.msra.mxu0 %v1783
      %1940 = vmatprep.subr.bf16.mxu0 %v1791
      %1941 = vmatpush1.bf16.msra.mxu0 %v1790
      %1942 = vmatprep.subr.bf16.mxu0 %v1798
      %1943 = vmatpush1.bf16.msra.mxu0 %v1797
      %1944 = vmatprep.subr.bf16.mxu0 %v1805
      %1945 = vmatpush1.bf16.msra.mxu0 %v1804
      %1946 = vmatprep.subr.bf16.mxu0 %v1812
      %1947 = vmatpush1.bf16.msra.mxu0 %v1811
      %1948 = vmatprep.subr.bf16.mxu0 %v1819
      %1949 = vmatpush1.bf16.msra.mxu0 %v1818
      %1950 = vmatprep.subr.bf16.mxu0 %v1826
      %1951 = vmatpush1.bf16.msra.mxu0 %v1825
      %1952 = vmatprep.subr.bf16.mxu0 %v1833
      %1953 = vmatpush1.bf16.msra.mxu0 %v1832
      %1954 = vmatprep.subr.bf16.mxu0 %v1840
      %1955 = vmatpush1.bf16.msra.mxu0 %v1839
      %1956 = vmatprep.subr.bf16.mxu0 %v1847
      %1957 = vmatpush1.bf16.msra.mxu0 %v1846
      %1958 = vmatprep.subr.bf16.mxu0 %v1854
      %1959 = vmatpush1.bf16.msra.mxu0 %v1853
      %1960 = vmatprep.subr.bf16.mxu0 %v1861
      %1961 = vmatpush1.bf16.msra.mxu0 %v1860
      %1962 = vmatprep.subr.bf16.mxu0 %v1868
      %1963 = vmatpush1.bf16.msra.mxu0 %v1867
      %1964 = vmatprep.subr.bf16.mxu0 %v1875
      %1965 = vmatpush1.bf16.msra.mxu0 %v1874
      %1966 = vmatprep.subr.bf16.mxu0 %v1882
      %1967 = vmatpush1.bf16.msra.mxu0 %v1881
      %1968 = vmatprep.mubr.bf16.mxu0 %v1929
      %1969 = vmatmul.mubr.bf16.gmra.mrb[0].mxu0 %v1928
      %v1970 = vpop.f32.mrb[0].mxu0
      %v1971 = vadd.f32 %v1899, %v1970
      %v1972 = vpop.f32.mrb[0].mxu0
      %v1973 = vadd.f32 %v1899, %v1972
      %v1974 = vpop.f32.mrb[0].mxu0
      %v1975 = vadd.f32 %v1904, %v1974
      %v1976 = vpop.f32.mrb[0].mxu0
      %v1977 = vadd.f32 %v1904, %v1976
      %1978 = vmatprep.mubr.bf16.mxu0 %v1931
      %1979 = vmatmul.mubr.bf16.gmra.mrb[0].mxu0 %v1930
      %v1980 = vpop.f32.mrb[0].mxu0
      %v1981 = vadd.f32 %v1909, %v1980
      %v1982 = vpop.f32.mrb[0].mxu0
      %v1983 = vadd.f32 %v1909, %v1982
      %v1984 = vpop.f32.mrb[0].mxu0
      %v1985 = vadd.f32 %v1914, %v1984
      %v1986 = vpop.f32.mrb[0].mxu0
      %v1987 = vadd.f32 %v1914, %v1986
      %1988 = vdwg.mxu0
      %1989 = vmatprep.subr.bf16.mxu0 %v1779
      %1990 = vmatpush1.bf16.msra.mxu0 %v1778
      %1991 = vmatprep.subr.bf16.mxu0 %v1786
      %1992 = vmatpush1.bf16.msra.mxu0 %v1785
      %1993 = vmatprep.subr.bf16.mxu0 %v1793
      %1994 = vmatpush1.bf16.msra.mxu0 %v1792
      %1995 = vmatprep.subr.bf16.mxu0 %v1800
      %1996 = vmatpush1.bf16.msra.mxu0 %v1799
      %1997 = vmatprep.subr.bf16.mxu0 %v1807
      %1998 = vmatpush1.bf16.msra.mxu0 %v1806
      %1999 = vmatprep.subr.bf16.mxu0 %v1814
      %2000 = vmatpush1.bf16.msra.mxu0 %v1813
      %2001 = vmatprep.subr.bf16.mxu0 %v1821
      %2002 = vmatpush1.bf16.msra.mxu0 %v1820
      %2003 = vmatprep.subr.bf16.mxu0 %v1828
      %2004 = vmatpush1.bf16.msra.mxu0 %v1827
      %2005 = vmatprep.subr.bf16.mxu0 %v1835
      %2006 = vmatpush1.bf16.msra.mxu0 %v1834
      %2007 = vmatprep.subr.bf16.mxu0 %v1842
      %2008 = vmatpush1.bf16.msra.mxu0 %v1841
      %2009 = vmatprep.subr.bf16.mxu0 %v1849
      %2010 = vmatpush1.bf16.msra.mxu0 %v1848
      %2011 = vmatprep.subr.bf16.mxu0 %v1856
      %2012 = vmatpush1.bf16.msra.mxu0 %v1855
      %2013 = vmatprep.subr.bf16.mxu0 %v1863
      %2014 = vmatpush1.bf16.msra.mxu0 %v1862
      %2015 = vmatprep.subr.bf16.mxu0 %v1870
      %2016 = vmatpush1.bf16.msra.mxu0 %v1869
      %2017 = vmatprep.subr.bf16.mxu0 %v1877
      %2018 = vmatpush1.bf16.msra.mxu0 %v1876
      %2019 = vmatprep.subr.bf16.mxu0 %v1884
      %2020 = vmatpush1.bf16.msra.mxu0 %v1883
      %2021 = vmatprep.mubr.bf16.mxu0 %v1929
      %2022 = vmatmul.mubr.bf16.gmra.mrb[0].mxu0 %v1928
      %v2023 = vpop.f32.mrb[0].mxu0
      %v2024 = vadd.f32 %v1899, %v2023
      %v2025 = vpop.f32.mrb[0].mxu0
      %v2026 = vadd.f32 %v1899, %v2025
      %v2027 = vpop.f32.mrb[0].mxu0
      %v2028 = vadd.f32 %v1904, %v2027
      %v2029 = vpop.f32.mrb[0].mxu0
      %v2030 = vadd.f32 %v1904, %v2029
      %2031 = vmatprep.mubr.bf16.mxu0 %v1931
      %2032 = vmatmul.mubr.bf16.gmra.mrb[0].mxu0 %v1930
      %v2033 = vpop.f32.mrb[0].mxu0
      %v2034 = vadd.f32 %v1909, %v2033
      %v2035 = vpop.f32.mrb[0].mxu0
      %v2036 = vadd.f32 %v1909, %v2035
      %v2037 = vpop.f32.mrb[0].mxu0
      %v2038 = vadd.f32 %v1914, %v2037
      %v2039 = vpop.f32.mrb[0].mxu0
      %v2040 = vadd.f32 %v1914, %v2039
      %2041 = vdwg.mxu0
      %2042 = vmatprep.subr.bf16.mxu0 %v1781
      %2043 = vmatpush1.bf16.msra.mxu0 %v1780
      %2044 = vmatprep.subr.bf16.mxu0 %v1788
      %2045 = vmatpush1.bf16.msra.mxu0 %v1787
      %2046 = vmatprep.subr.bf16.mxu0 %v1795
      %2047 = vmatpush1.bf16.msra.mxu0 %v1794
      %2048 = vmatprep.subr.bf16.mxu0 %v1802
      %2049 = vmatpush1.bf16.msra.mxu0 %v1801
      %2050 = vmatprep.subr.bf16.mxu0 %v1809
      %2051 = vmatpush1.bf16.msra.mxu0 %v1808
      %2052 = vmatprep.subr.bf16.mxu0 %v1816
      %2053 = vmatpush1.bf16.msra.mxu0 %v1815
      %2054 = vmatprep.subr.bf16.mxu0 %v1823
      %2055 = vmatpush1.bf16.msra.mxu0 %v1822
      %2056 = vmatprep.subr.bf16.mxu0 %v1830
      %2057 = vmatpush1.bf16.msra.mxu0 %v1829
      %2058 = vmatprep.subr.bf16.mxu0 %v1837
      %2059 = vmatpush1.bf16.msra.mxu0 %v1836
      %2060 = vmatprep.subr.bf16.mxu0 %v1844
      %2061 = vmatpush1.bf16.msra.mxu0 %v1843
      %2062 = vmatprep.subr.bf16.mxu0 %v1851
      %2063 = vmatpush1.bf16.msra.mxu0 %v1850
      %2064 = vmatprep.subr.bf16.mxu0 %v1858
      %2065 = vmatpush1.bf16.msra.mxu0 %v1857
      %2066 = vmatprep.subr.bf16.mxu0 %v1865
      %2067 = vmatpush1.bf16.msra.mxu0 %v1864
      %2068 = vmatprep.subr.bf16.mxu0 %v1872
      %2069 = vmatpush1.bf16.msra.mxu0 %v1871
      %2070 = vmatprep.subr.bf16.mxu0 %v1879
      %2071 = vmatpush1.bf16.msra.mxu0 %v1878
      %2072 = vmatprep.subr.bf16.mxu0 %v1886
      %2073 = vmatpush1.bf16.msra.mxu0 %v1885
      %2074 = vmatprep.mubr.bf16.mxu0 %v1929
      %2075 = vmatmul.mubr.bf16.gmra.mrb[0].mxu0 %v1928
      %v2076 = vpop.f32.mrb[0].mxu0
      %v2077 = vadd.f32 %v1899, %v2076
      %v2078 = vpop.f32.mrb[0].mxu0
      %v2079 = vadd.f32 %v1899, %v2078
      %v2080 = vpop.f32.mrb[0].mxu0
      %v2081 = vadd.f32 %v1904, %v2080
      %v2082 = vpop.f32.mrb[0].mxu0
      %v2083 = vadd.f32 %v1904, %v2082
      %2084 = vmatprep.mubr.bf16.mxu0 %v1931
      %2085 = vmatmul.mubr.bf16.gmra.mrb[0].mxu0 %v1930
      %v2086 = vpop.f32.mrb[0].mxu0
      %v2087 = vadd.f32 %v1909, %v2086
      %v2088 = vpop.f32.mrb[0].mxu0
      %v2089 = vadd.f32 %v1909, %v2088
      %v2090 = vpop.f32.mrb[0].mxu0
      %v2091 = vadd.f32 %v1914, %v2090
      %v2092 = vpop.f32.mrb[0].mxu0
      %v2093 = vadd.f32 %v1914, %v2092
      %2094 = vdwg.mxu0
      %2095 = vmatprep.subr.bf16.mxu0 0
      %2096 = vmatpush1.bf16.msra.mxu0 %v1782
      %2097 = vmatprep.subr.bf16.mxu0 0
      %2098 = vmatpush1.bf16.msra.mxu0 %v1789
      %2099 = vmatprep.subr.bf16.mxu0 0
      %2100 = vmatpush1.bf16.msra.mxu0 %v1796
      %2101 = vmatprep.subr.bf16.mxu0 0
      %2102 = vmatpush1.bf16.msra.mxu0 %v1803
      %2103 = vmatprep.subr.bf16.mxu0 0
      %2104 = vmatpush1.bf16.msra.mxu0 %v1810
      %2105 = vmatprep.subr.bf16.mxu0 0
      %2106 = vmatpush1.bf16.msra.mxu0 %v1817
      %2107 = vmatprep.subr.bf16.mxu0 0
      %2108 = vmatpush1.bf16.msra.mxu0 %v1824
      %2109 = vmatprep.subr.bf16.mxu0 0
      %2110 = vmatpush1.bf16.msra.mxu0 %v1831
      %2111 = vmatprep.subr.bf16.mxu0 0
      %2112 = vmatpush1.bf16.msra.mxu0 %v1838
      %2113 = vmatprep.subr.bf16.mxu0 0
      %2114 = vmatpush1.bf16.msra.mxu0 %v1845
      %2115 = vmatprep.subr.bf16.mxu0 0
      %2116 = vmatpush1.bf16.msra.mxu0 %v1852
      %2117 = vmatprep.subr.bf16.mxu0 0
      %2118 = vmatpush1.bf16.msra.mxu0 %v1859
      %2119 = vmatprep.subr.bf16.mxu0 0
      %2120 = vmatpush1.bf16.msra.mxu0 %v1866
      %2121 = vmatprep.subr.bf16.mxu0 0
      %2122 = vmatpush1.bf16.msra.mxu0 %v1873
      %2123 = vmatprep.subr.bf16.mxu0 0
      %2124 = vmatpush1.bf16.msra.mxu0 %v1880
      %2125 = vmatprep.subr.bf16.mxu0 0
      %2126 = vmatpush1.bf16.msra.mxu0 %v1887
      %2127 = vmatprep.mubr.bf16.mxu0 %v1929
      %2128 = vmatmul.mubr.bf16.gmra.mrb[0].mxu0 %v1928
      %v2129 = vpop.f32.mrb[0].mxu0
      %v2130 = vadd.f32 %v1899, %v2129
      %v2131 = vpop.f32.mrb[0].mxu0
      %v2132 = vpop.f32.mrb[0].mxu0
      %v2133 = vadd.f32 %v1904, %v2132
      %v2134 = vpop.f32.mrb[0].mxu0
      %2135 = vmatprep.mubr.bf16.mxu0 %v1931
      %2136 = vmatmul.mubr.bf16.gmra.mrb[0].mxu0 %v1930
      %v2137 = vpop.f32.mrb[0].mxu0
      %v2138 = vadd.f32 %v1909, %v2137
      %v2139 = vpop.f32.mrb[0].mxu0
      %v2140 = vpop.f32.mrb[0].mxu0
      %v2141 = vadd.f32 %v1914, %v2140
      %v2142 = vpop.f32.mrb[0].mxu0
      %2143 = vdwg.mxu0
      %2144 = vst [vmem:[%s262] sm:$0xff] %v1971
      %2145 = vst [vmem:[%s262 + $0x8] sm:$0xff] %v1973
      %2146 = vst [vmem:[%s262 + $0x10] sm:$0xff] %v2024
      %2147 = vst [vmem:[%s262 + $0x18] sm:$0xff] %v2026
      %2148 = vst [vmem:[%s262 + $0x20] sm:$0xff] %v2077
      %2149 = vst [vmem:[%s262 + $0x28] sm:$0xff] %v2079
      %2150 = vst.msk [vmem:[%s262 + $0x30] sm:$0xff] %vm321, %v2130
      %2151 = vst [vmem:[%s262 + $0x38] sm:$0xff] %v1975
      %2152 = vst [vmem:[%s262 + $0x40] sm:$0xff] %v1977
      %2153 = vst [vmem:[%s262 + $0x48] sm:$0xff] %v2028
      %2154 = vst [vmem:[%s262 + $0x50] sm:$0xff] %v2030
      %2155 = vst [vmem:[%s262 + $0x58] sm:$0xff] %v2081
      %2156 = vst [vmem:[%s262 + $0x60] sm:$0xff] %v2083
      %2157 = vst.msk [vmem:[%s262 + $0x68] sm:$0xff] %vm321, %v2133
      %2158 = vst [vmem:[%s262 + $0x70] sm:$0xff] %v1981
      %2159 = vst [vmem:[%s262 + $0x78] sm:$0xff] %v1983
      %2160 = vst [vmem:[%s262 + $0x80] sm:$0xff] %v2034
      %2161 = vst [vmem:[%s262 + $0x88] sm:$0xff] %v2036
      %2162 = vst [vmem:[%s262 + $0x90] sm:$0xff] %v2087
      %2163 = vst [vmem:[%s262 + $0x98] sm:$0xff] %v2089
      %2164 = vst.msk [vmem:[%s262 + $0xa0] sm:$0xff] %vm321, %v2138
      %2165 = vst [vmem:[%s262 + $0xa8] sm:$0xff] %v1985
      %2166 = vst [vmem:[%s262 + $0xb0] sm:$0xff] %v1987
      %2167 = vst [vmem:[%s262 + $0xb8] sm:$0xff] %v2038
      %2168 = vst [vmem:[%s262 + $0xc0] sm:$0xff] %v2040
      %2169 = vst [vmem:[%s262 + $0xc8] sm:$0xff] %v2091
      %2170 = vst [vmem:[%s262 + $0xd0] sm:$0xff] %v2093
      %2171 = vst.msk [vmem:[%s262 + $0xd8] sm:$0xff] %vm321, %v2141
      %s2172 = smul.u32 7, %s21
      %p2173 = scmp.lt.s32.totalorder %s20, 1
      %s2174 = scalar_select %p2173, %s20, 1
      %p2175 = scmp.lt.s32.totalorder %s2172, 6
      %s2176 = scalar_select %p2175, %s2172, 6
      %s2177 = smul.addr %s2174, 28
      %s2178 = sadd.s32 %s2176, %s2177
      %s2179 = smul.addr %s2178, 8
      %s2180 = scalar_lea.vmem %s5, %s2179
      // Predicated region
      $region41: #{projector3_forward.3} parent=39 // pred_check
        %p2181 = pneg %p160
      $region42: #{projector3_forward.3} parent=39 // pred_check_branch
        %2183 = sbr.rel (%p2181) target = $region44
      $region43: #{projector3_forward.3} parent=39 // pred_region
        %s2184 = smul.u32 7, %s21
      $region44: #{projector3_forward.3} parent=39 // pred_fallthru
        _
    $region40: #{projector3_forward.3} parent=5 // pred_fallthru
      _
    %p2185 = scmp.le.s32.totalorder 2, %s11
    // Predicated region
    $region45: #{projector3_forward.3} parent=5 // pred_check
      %p2186 = pneg %p2185
    $region46: #{projector3_forward.3} parent=5 // pred_check_branch
      %2188 = sbr.rel (%p2186) target = $region48
    $region47: #{projector3_forward.3} parent=5 // pred_region
      %s2189 = ssub.s32 %s11, 2
      // Predicated region
      $region49: #{projector3_forward.3} parent=47 // pred_check
        %p2190 = pneg %p166
      $region50: #{projector3_forward.3} parent=47 // pred_check_branch
        %2192 = sbr.rel (%p2190) target = $region52
      $region51: #{projector3_forward.3} parent=47 // pred_region
        %s2193 = smul.u32 7, %s23
        %p2194 = scmp.lt.s32.totalorder %s22, 1
        %s2195 = scalar_select %p2194, %s22, 1
        %p2196 = scmp.lt.s32.totalorder %s2193, 6
        %s2197 = scalar_select %p2196, %s2193, 6
        %s2198 = smul.addr %s2195, 28
        %s2199 = sadd.s32 %s2197, %s2198
        %s2200 = smul.addr %s2199, 8
        %s2201 = scalar_lea.vmem %s5, %s2200
      $region52: #{projector3_forward.3} parent=47 // pred_fallthru
        _
    $region48: #{projector3_forward.3} parent=5 // pred_fallthru
      _
  $region6: #{projector3_forward.3} parent=0 // loop_footer
    %s15 = sadd.s32 1, %s11
  $region7: #{projector3_forward.3} parent=0 // loop_footer_branch
    %10 = sbr.rel target = $region3
  $region8: #{projector3_forward.3} parent=0 // loop_exit
    _

</llo_original>
